<compile_context>
chip_gen: v7x
topology: tpu7x:2x2x1
jax: 0.10.0
libtpu: 0.0.40
codegen_flags: <defaults>
</compile_context>

<pallas_src>
import jax
import jax.numpy as jnp
from jax.experimental import pallas as pl
from jax.experimental.pallas import tpu as pltpu


def _fused_kernel(x1_ref, x2_ref, gamma_ref, beta_ref, w_ref, b_ref,
                  o_ref, xn_ref):
    # Shapes seen by the kernel:
    #   x1, x2 : (T, C) f32      gamma/beta : (1, C) f32
    #   w      : (C, tn) bf16    (leading tile axis squeezed away)
    #   b      : (1, tn) f32     o : (T, tn) f32
    #   xn_ref : (T, C) bf16 VMEM scratch holding the LayerNorm output.

    # add + LayerNorm computed once per core (first step of the inner,
    # "arbitrary" axis) and reused for every output-feature tile.
    @pl.when(pl.program_id(1) == 0)
    def _():
        x = x1_ref[...] + x2_ref[...]
        # Single-pass statistics: var = E[x^2] - mean^2 (independent
        # reductions, no extra centering pass).
        mean = jnp.mean(x, axis=-1, keepdims=True)
        mean_sq = jnp.mean(x * x, axis=-1, keepdims=True)
        var = mean_sq - mean * mean
        inv = jax.lax.rsqrt(var + jnp.float32(1e-5))
        xn = (x - mean) * inv * gamma_ref[...] + beta_ref[...]
        # bf16 storage is numerically free: the MXU matmul below (DEFAULT
        # precision) rounds its operands to bf16 anyway.
        xn_ref[...] = xn.astype(xn_ref.dtype)

    # Linear for this F tile: bf16 inputs on the MXU, f32 accumulation + bias.
    y = jnp.dot(xn_ref[...], w_ref[...],
                preferred_element_type=jnp.float32) + b_ref[...]

    # Exact GELU (approximate='none'): 0.5 * y * (1 + erf(y / sqrt(2))).
    # TODO(synk): a tanh/sigmoid GELU would move the transcendental to the EUP
    # slot (helps VALU-bound v7x) but changes the module's exact-erf semantics.
    inv_sqrt2 = jnp.float32(0.7071067811865476)
    o_ref[...] = (0.5 * y * (1.0 + jax.lax.erf(y * inv_sqrt2))).astype(o_ref.dtype)


def _default_tiling():
    """Return (tn, n_parallel).

    v7x (2 TensorCores): one 768-wide F-half per core, a single grid step each.
    v5e/v6e (1 TensorCore): sequential 384-wide F tiles so LayerNorm is
    computed exactly once and the bf16 weight DMA pipelines against compute.
    """
    try:
        kind = jax.devices()[0].device_kind.lower()
    except Exception:
        kind = ""
    if "v7" in kind or "7x" in kind:
        return 768, 2
    return 384, 1


def fused_forward(x249, x263, gamma, beta, w, b, *, tn=None, n_parallel=None):
    N, H, W, C = x249.shape
    F = w.shape[1]
    T = N * H * W

    d_tn, d_np = _default_tiling()
    tn = d_tn if tn is None else tn
    n_parallel = d_np if n_parallel is None else n_parallel

    nj = F // (tn * n_parallel)              # inner ("arbitrary") tiles per core
    assert tn * n_parallel * nj == F, "F must divide evenly into tiles"
    assert tn % 128 == 0, "feature tile must be lane-aligned"
    n_tiles = n_parallel * nj

    x1 = x249.reshape(T, C)
    x2 = x263.reshape(T, C)
    gamma2 = gamma.reshape(1, C)
    beta2 = beta.reshape(1, C)
    b2 = b.reshape(1, F)

    # Pre-tile the weight into contiguous (C, tn) slabs, stored bf16: each
    # per-step DMA is one contiguous stream at half the bytes. One-time
    # wrapper cost (w is a static parameter in the original module).
    w_tiles = (w.astype(jnp.bfloat16)
                 .reshape(C, n_tiles, tn)
                 .transpose(1, 0, 2))        # (n_tiles, C, tn)

    const_map = lambda i, j: (0, 0)          # resident, DMA'd once
    ftile_map = lambda i, j: (0, i * nj + j)  # walk the F dimension
    wtile_map = lambda i, j: (i * nj + j, 0, 0)

    cost = pl.CostEstimate(
        flops=2 * T * C * F + 10 * T * C + 8 * T * F,
        transcendentals=T * F,               # one erf per output element
        bytes_accessed=(x1.size + x2.size + gamma2.size + beta2.size) * 4
                       + w_tiles.size * 2 + b2.size * 4 + T * F * 4,
    )

    out = pl.pallas_call(
        _fused_kernel,
        out_shape=jax.ShapeDtypeStruct((T, F), jnp.float32),
        grid_spec=pltpu.PrefetchScalarGridSpec(
            num_scalar_prefetch=0,
            grid=(n_parallel, nj),
            in_specs=[
                pl.BlockSpec((T, C), const_map),         # x1  (resident)
                pl.BlockSpec((T, C), const_map),         # x2  (resident)
                pl.BlockSpec((1, C), const_map),         # gamma
                pl.BlockSpec((1, C), const_map),         # beta
                pl.BlockSpec((None, C, tn), wtile_map),  # weight tile (bf16, pipelined)
                pl.BlockSpec((1, tn), ftile_map),        # bias tile
            ],
            out_specs=pl.BlockSpec((T, tn), ftile_map),
            scratch_shapes=[pltpu.VMEM((T, C), jnp.bfloat16)],
        ),
        compiler_params=pltpu.CompilerParams(
            dimension_semantics=("parallel", "arbitrary"),
        ),
        cost_estimate=cost,
    )(x1, x2, gamma2, beta2, w_tiles, b2)

    return out.reshape(N, H, W, F)


if __name__ == "__main__":
    key = jax.random.PRNGKey(0)
    k1, k2, k3, k4, k5, k6 = jax.random.split(key, 6)

    C, F = 384, 1536
    x249 = jax.random.normal(k1, (1, 14, 14, C), dtype=jnp.float32)
    x263 = jax.random.normal(k2, (1, 14, 14, C), dtype=jnp.float32)

    # Deterministic synthetic parameters (shapes match the PyTorch module).
    gamma = 1.0 + 0.02 * jax.random.normal(k3, (C,), dtype=jnp.float32)
    beta = 0.02 * jax.random.normal(k4, (C,), dtype=jnp.float32)
    # PyTorch Linear stores weight as (out, in); we use (in, out) for x @ W.
    w = jax.random.normal(k5, (C, F), dtype=jnp.float32) * (1.0 / jnp.sqrt(C))
    b = 0.02 * jax.random.normal(k6, (F,), dtype=jnp.float32)

    out = fused_forward(x249, x263, gamma, beta, w, b)
    jax.block_until_ready(out)

    inv_sqrt2 = jnp.float32(0.7071067811865476)

    # Reference 1: matched numerics (bf16 matmul inputs, f32 accumulation),
    # i.e. exactly what the kernel computes — tight tolerance.
    x = (x249 + x263).reshape(-1, C)
    mu = jnp.mean(x, axis=-1, keepdims=True)
    var = jnp.mean(x * x, axis=-1, keepdims=True) - mu * mu
    xn = (x - mu) * jax.lax.rsqrt(var + jnp.float32(1e-5)) * gamma + beta
    y = jnp.dot(xn.astype(jnp.bfloat16), w.astype(jnp.bfloat16),
                preferred_element_type=jnp.float32) + b
    ref = (0.5 * y * (1.0 + jax.lax.erf(y * inv_sqrt2))).reshape(1, 14, 14, F)
    assert jnp.allclose(out, ref, atol=2e-3, rtol=2e-3), \
        "mismatch vs matched-precision reference"

    # Reference 2: full-f32 "PyTorch semantics" truth. The MXU rounds matmul
    # inputs to bf16 (same as jnp.dot DEFAULT precision), so compare loosely.
    y32 = jnp.dot(xn, w, precision=jax.lax.Precision.HIGHEST) + b
    ref32 = (0.5 * y32 * (1.0 + jax.lax.erf(y32 * inv_sqrt2))).reshape(1, 14, 14, F)
    assert jnp.allclose(out, ref32, atol=5e-2, rtol=5e-2), \
        "mismatch vs f32 reference"

    print("KERNEL_OK")
</pallas_src>

<mosaic_0001>
module attributes {stable_mosaic.version = 11 : i64} {
  func.func @_fused_kernel(%arg0: i32, %arg1: i32, %arg2: memref<196x384xf32, #tpu.memory_space<vmem>>, %arg3: memref<196x384xf32, #tpu.memory_space<vmem>>, %arg4: memref<1x384xf32, #tpu.memory_space<vmem>>, %arg5: memref<1x384xf32, #tpu.memory_space<vmem>>, %arg6: memref<1x384x384xbf16, #tpu.memory_space<vmem>>, %arg7: memref<1x384xf32, #tpu.memory_space<vmem>>, %arg8: memref<196x384xf32, #tpu.memory_space<vmem>>, %arg9: memref<196x384xbf16, #tpu.memory_space<vmem>>) attributes {dimension_semantics = [#tpu.dimension_semantics<parallel>, #tpu.dimension_semantics<arbitrary>], iteration_bounds = array<i64: 1, 4>, scalar_prefetch = 0 : i64, scratch_operands = 1 : i64, tpu.core_type = #tpu.core_type<tc>, window_params = [{pipeline_mode = #tpu.pipeline_mode<synchronous>, transform_indices = @transform_0, window_bounds = array<i64: 196, 384>}, {pipeline_mode = #tpu.pipeline_mode<synchronous>, transform_indices = @transform_1, window_bounds = array<i64: 196, 384>}, {pipeline_mode = #tpu.pipeline_mode<synchronous>, transform_indices = @transform_2, window_bounds = array<i64: 1, 384>}, {pipeline_mode = #tpu.pipeline_mode<synchronous>, transform_indices = @transform_3, window_bounds = array<i64: 1, 384>}, {transform_indices = @transform_4, window_bounds = array<i64: 1, 384, 384>}, {transform_indices = @transform_5, window_bounds = array<i64: 1, 384>}, {transform_indices = @transform_6, window_bounds = array<i64: 196, 384>}]} {
    %c0_i32 = arith.constant 0 : i32
    %0 = arith.cmpi eq, %arg1, %c0_i32 : i32
    %1 = arith.extui %0 : i1 to i32
    %c0_i32_0 = arith.constant 0 : i32
    %2 = arith.cmpi ne, %1, %c0_i32_0 : i32
    scf.if %2 {
      %c0_12 = arith.constant 0 : index
      %c0_13 = arith.constant 0 : index
      %19 = vector.load %arg2[%c0_12, %c0_13] : memref<196x384xf32, #tpu.memory_space<vmem>>, vector<196x384xf32>
      %c0_14 = arith.constant 0 : index
      %c0_15 = arith.constant 0 : index
      %20 = vector.load %arg3[%c0_14, %c0_15] : memref<196x384xf32, #tpu.memory_space<vmem>>, vector<196x384xf32>
      %21 = arith.addf %19, %20 : vector<196x384xf32>
      %cst_16 = arith.constant dense<0.000000e+00> : vector<196xf32>
      %22 = vector.multi_reduction <add>, %21, %cst_16 [1] : vector<196x384xf32> to vector<196xf32>
      %23 = vector.shape_cast %22 : vector<196xf32> to vector<196x1xf32>
      %cst_17 = arith.constant 3.840000e+02 : f32
      %24 = vector.broadcast %cst_17 : f32 to vector<196x1xf32>
      %25 = arith.divf %23, %24 : vector<196x1xf32>
      %26 = arith.mulf %21, %21 : vector<196x384xf32>
      %cst_18 = arith.constant dense<0.000000e+00> : vector<196xf32>
      %27 = vector.multi_reduction <add>, %26, %cst_18 [1] : vector<196x384xf32> to vector<196xf32>
      %28 = vector.shape_cast %27 : vector<196xf32> to vector<196x1xf32>
      %cst_19 = arith.constant 3.840000e+02 : f32
      %29 = vector.broadcast %cst_19 : f32 to vector<196x1xf32>
      %30 = arith.divf %28, %29 : vector<196x1xf32>
      %31 = arith.mulf %25, %25 : vector<196x1xf32>
      %32 = arith.subf %30, %31 : vector<196x1xf32>
      %cst_20 = arith.constant 9.99999974E-6 : f32
      %33 = vector.broadcast %cst_20 : f32 to vector<196x1xf32>
      %34 = arith.addf %32, %33 : vector<196x1xf32>
      %35 = math.rsqrt %34 : vector<196x1xf32>
      %36 = vector.broadcast %25 : vector<196x1xf32> to vector<196x384xf32>
      %37 = arith.subf %21, %36 : vector<196x384xf32>
      %38 = vector.broadcast %35 : vector<196x1xf32> to vector<196x384xf32>
      %39 = arith.mulf %37, %38 : vector<196x384xf32>
      %c0_21 = arith.constant 0 : index
      %c0_22 = arith.constant 0 : index
      %40 = vector.load %arg4[%c0_21, %c0_22] : memref<1x384xf32, #tpu.memory_space<vmem>>, vector<1x384xf32>
      %41 = vector.broadcast %40 : vector<1x384xf32> to vector<196x384xf32>
      %42 = arith.mulf %39, %41 : vector<196x384xf32>
      %c0_23 = arith.constant 0 : index
      %c0_24 = arith.constant 0 : index
      %43 = vector.load %arg5[%c0_23, %c0_24] : memref<1x384xf32, #tpu.memory_space<vmem>>, vector<1x384xf32>
      %44 = vector.broadcast %43 : vector<1x384xf32> to vector<196x384xf32>
      %45 = arith.addf %42, %44 : vector<196x384xf32>
      %46 = arith.truncf %45 : vector<196x384xf32> to vector<196x384xbf16>
      %c0_25 = arith.constant 0 : index
      %c0_26 = arith.constant 0 : index
      %47 = vector.load %arg9[%c0_25, %c0_26] : memref<196x384xbf16, #tpu.memory_space<vmem>>, vector<196x384xbf16>
      tpu.vector_store %arg9[%c0_25, %c0_26], %46 {strides = array<i32>} : memref<196x384xbf16, #tpu.memory_space<vmem>>, vector<196x384xbf16>,
    } else {
    }
    %c0 = arith.constant 0 : index
    %c0_1 = arith.constant 0 : index
    %3 = vector.load %arg9[%c0, %c0_1] : memref<196x384xbf16, #tpu.memory_space<vmem>>, vector<196x384xbf16>
    %c0_2 = arith.constant 0 : index
    %c0_3 = arith.constant 0 : index
    %c0_4 = arith.constant 0 : index
    %4 = vector.load %arg6[%c0_2, %c0_3, %c0_4] : memref<1x384x384xbf16, #tpu.memory_space<vmem>>, vector<1x384x384xbf16>
    %5 = vector.shape_cast %4 : vector<1x384x384xbf16> to vector<384x384xbf16>
    %cst = arith.constant dense<0.000000e+00> : vector<196x384xf32>
    %6 = tpu.matmul %3, %5, %cst {dimension_numbers = #tpu.dot_dimension_numbers<[1], [0], [0], [1], [0, 0, 1, 1], [], []>} : vector<196x384xbf16>, vector<384x384xbf16>, vector<196x384xf32> -> vector<196x384xf32>
    %c0_5 = arith.constant 0 : index
    %c0_6 = arith.constant 0 : index
    %7 = vector.load %arg7[%c0_5, %c0_6] : memref<1x384xf32, #tpu.memory_space<vmem>>, vector<1x384xf32>
    %8 = vector.broadcast %7 : vector<1x384xf32> to vector<196x384xf32>
    %9 = arith.addf %6, %8 : vector<196x384xf32>
    %cst_7 = arith.constant 5.000000e-01 : f32
    %10 = vector.broadcast %cst_7 : f32 to vector<196x384xf32>
    %11 = arith.mulf %10, %9 : vector<196x384xf32>
    %cst_8 = arith.constant 0.707106769 : f32
    %12 = vector.broadcast %cst_8 : f32 to vector<196x384xf32>
    %13 = arith.mulf %9, %12 : vector<196x384xf32>
    %14 = math.erf %13 : vector<196x384xf32>
    %cst_9 = arith.constant 1.000000e+00 : f32
    %15 = vector.broadcast %cst_9 : f32 to vector<196x384xf32>
    %16 = arith.addf %15, %14 : vector<196x384xf32>
    %17 = arith.mulf %11, %16 : vector<196x384xf32>
    %c0_10 = arith.constant 0 : index
    %c0_11 = arith.constant 0 : index
    %18 = vector.load %arg8[%c0_10, %c0_11] : memref<196x384xf32, #tpu.memory_space<vmem>>, vector<196x384xf32>
    tpu.vector_store %arg8[%c0_10, %c0_11], %17 {strides = array<i32>} : memref<196x384xf32, #tpu.memory_space<vmem>>, vector<196x384xf32>,
    return
  }
  func.func @transform_0(%arg0: i32, %arg1: i32) -> (i32, i32) {
    %c0_i32 = arith.constant 0 : i32
    %c0_i32_0 = arith.constant 0 : i32
    %c0_i32_1 = arith.constant 0 : i32
    return %c0_i32, %c0_i32_0 : i32, i32
  }
  func.func @transform_1(%arg0: i32, %arg1: i32) -> (i32, i32) {
    %c0_i32 = arith.constant 0 : i32
    %c0_i32_0 = arith.constant 0 : i32
    %c0_i32_1 = arith.constant 0 : i32
    return %c0_i32, %c0_i32_0 : i32, i32
  }
  func.func @transform_2(%arg0: i32, %arg1: i32) -> (i32, i32) {
    %c0_i32 = arith.constant 0 : i32
    %c0_i32_0 = arith.constant 0 : i32
    %c0_i32_1 = arith.constant 0 : i32
    return %c0_i32, %c0_i32_0 : i32, i32
  }
  func.func @transform_3(%arg0: i32, %arg1: i32) -> (i32, i32) {
    %c0_i32 = arith.constant 0 : i32
    %c0_i32_0 = arith.constant 0 : i32
    %c0_i32_1 = arith.constant 0 : i32
    return %c0_i32, %c0_i32_0 : i32, i32
  }
  func.func @transform_4(%arg0: i32, %arg1: i32) -> (i32, i32, i32) {
    %c4_i32 = arith.constant 4 : i32
    %0 = arith.muli %arg0, %c4_i32 : i32
    %1 = arith.addi %0, %arg1 : i32
    %c0_i32 = arith.constant 0 : i32
    %c0_i32_0 = arith.constant 0 : i32
    %c0_i32_1 = arith.constant 0 : i32
    return %1, %c0_i32, %c0_i32_0 : i32, i32, i32
  }
  func.func @transform_5(%arg0: i32, %arg1: i32) -> (i32, i32) {
    %c4_i32 = arith.constant 4 : i32
    %0 = arith.muli %arg0, %c4_i32 : i32
    %1 = arith.addi %0, %arg1 : i32
    %c0_i32 = arith.constant 0 : i32
    %c0_i32_0 = arith.constant 0 : i32
    return %c0_i32, %1 : i32, i32
  }
  func.func @transform_6(%arg0: i32, %arg1: i32) -> (i32, i32) {
    %c4_i32 = arith.constant 4 : i32
    %0 = arith.muli %arg0, %c4_i32 : i32
    %1 = arith.addi %0, %arg1 : i32
    %c0_i32 = arith.constant 0 : i32
    %c0_i32_0 = arith.constant 0 : i32
    return %c0_i32, %1 : i32, i32
  }
}

</mosaic_0001>

<llo_original>
// kernel: tpu_custom_call.1
$region0: #{tpu_custom_call.1}
  #allocation0 [shape = 'u32[]', space=smem, size = 0x4, offset = 0x4, fixed_abs, tag = 'smem constant byte address 0x4 - core index']
  #allocation1 [shape = 'u32[144,128]{1,0:T(1,128)}', space=vmem, size = 0x12000, scoped, tag = 'internal scratch']
  #allocation2 [shape = 'bf16[196,384]{1,0:T(8,128)(2,1)}', space=vmem, size = 0x25800, scoped, tag = 'scratch operand']
  %s0 = inlined_call_operand.hbm [shape: f32[196,384], index: 0, kind: input, shape index: {}]
  %s1 = inlined_call_operand.hbm [shape: f32[196,384], index: 1, kind: input, shape index: {}]
  %s2 = inlined_call_operand.hbm [shape: f32[1,384], index: 2, kind: input, shape index: {}]
  %s3 = inlined_call_operand.hbm [shape: f32[1,384], index: 3, kind: input, shape index: {}]
  %s4 = inlined_call_operand.hbm [shape: bf16[4,384,384], index: 4, kind: input, shape index: {}]
  %s5 = inlined_call_operand.hbm [shape: f32[1,1536], index: 5, kind: input, shape index: {}]
  %s6 = inlined_call_operand.hbm [shape: f32[196,1536], index: 6, kind: output, shape index: {}]
  %s7 = sld [smem:[#allocation0]]
  $region85: #{tpu_custom_call.1} parent=0
    _
  %s9 = ssub.s32 1, %s7
  %s10 = scalar_select 0, %s9, %s7
  $region1: #{tpu_custom_call.1} parent=0
    #allocation3 [shape = 'u8[307200]{0}', space=vmem, size = 0x4b000, scoped, tag = 'input window, operand 0, single buffered']
    #allocation4 [shape = 's32[2]{0}', space=sflag, size = 0x8, scoped, tag = 'scoped memory for tpu_custom_call.1']
    #allocation5 [shape = 's32[2]{0}', space=sflag, size = 0x8, scoped, tag = 'scoped memory for tpu_custom_call.1']
    #allocation6 [shape = 'u8[307200]{0}', space=vmem, size = 0x4b000, scoped, tag = 'input window, operand 1, single buffered']
    #allocation7 [shape = 's32[1]{0}', space=sflag, size = 0x4, scoped, tag = 'scoped memory for tpu_custom_call.1']
    #allocation8 [shape = 'u8[1536]{0}', space=vmem, size = 0x800, scoped, tag = 'input window, operand 2, single buffered']
    #allocation9 [shape = 'u8[1536]{0}', space=vmem, size = 0x800, scoped, tag = 'input window, operand 3, single buffered']
    #allocation10 [shape = 's32[1]{0}', space=sflag, size = 0x4, scoped, tag = 'scoped memory for tpu_custom_call.1']
    #allocation11 [shape = 'u8[589824]{0}', space=vmem, size = 0x90000, scoped, tag = 'input window, operand 4']
    #allocation12 [shape = 'u8[3072]{0}', space=vmem, size = 0xc00, scoped, tag = 'input window, operand 5']
    #allocation13 [shape = 'u8[614400]{0}', space=vmem, size = 0x96000, scoped, tag = 'output window, operand 0']
    %11 = vsyncpa [#allocation4], 0
    %12 = vsyncpa [#allocation7], 0
    %13 = vsyncpa [#allocation10], 0
    %14 = vsyncpa [#allocation5], 0
    %s15 = scalar_lea.sflag [#allocation5], 1
    %16 = vsyncpa %s15, 0
    loop: start=0, step=1, limit=6
    $region2: #{tpu_custom_call.1} parent=1 // loop_pre_header
      _
    $region3: #{tpu_custom_call.1} parent=1 // loop_header
      %s18 = sphi 0, %s22
      %p19 = scmp.ge.s32.totalorder %s18, 6
      %s25 = sphi 0, %s37
      %s26 = sphi 0, %s33
      %s27 = sphi 0, %s25
      %s28 = sphi 0, %s26
      %s29 = sphi 0, %s27
      %s30 = sphi 0, %s28
      %s38 = sphi 0, %s38
      %s40 = sphi 0, %s38
      %s41 = sphi 0, %s40
      %s55 = sphi 0, %s41
      %s59 = sphi 0, %s59
      %s61 = sphi 0, %s59
      %s62 = sphi 0, %s61
      %s76 = sphi 0, %s62
      %s80 = sphi 0, %s80
      %s82 = sphi 0, %s80
      %s83 = sphi 0, %s82
      %s97 = sphi 0, %s83
      %s101 = sphi 0, %s101
      %s103 = sphi 0, %s101
      %s104 = sphi 0, %s103
      %s118 = sphi 0, %s104
      %s128 = sphi 0, %s130
      %s131 = sphi 0, %s128
      %s132 = sphi 0, %s131
      %s148 = sphi 0, %s132
      %s158 = sphi 0, %s160
      %s161 = sphi 0, %s158
      %s162 = sphi 0, %s161
      %s178 = sphi 0, %s162
      %s188 = sphi 0, %s190
      %s191 = sphi 0, %s188
      %s192 = sphi 0, %s191
      %s208 = sphi 0, %s192
    $region4: #{tpu_custom_call.1} parent=1 // loop_header_branch
      %21 = sbr.rel (%p19) target = $region8
    $region5: #{tpu_custom_call.1} parent=1 // loop_body
      %s23 = ssub.s32 %s18, 1
      %s24 = ssub.s32 %s18, 2
      %s31 = sadd.s32 1, %s26
      %p32 = scmp.ge.s32.totalorder %s31, 4
      %s33 = scalar_select %p32, 0, %s31
      %s34 = sadd.s32 1, %s25
      %s35 = scalar_select %p32, %s34, %s25
      %p36 = scmp.ge.s32.totalorder %s35, 1
      %s37 = scalar_select %p36, 0, %s35
      %s39 = sadd.s32 %s38, 1
      %p42 = scmp.eq.s32.totalorder %s18, 3
      %p43 = scmp.ne.s32.totalorder %s38, %s40
      %p44 = scmp.eq.s32.totalorder %s18, 0
      %p45 = por %p43, %p44
      %p46 = scmp.ne.s32.totalorder %s38, %s40
      %p47 = scmp.eq.s32.totalorder %s23, 3
      %p48 = por %p46, %p47
      %p49 = scmp.ne.s32.totalorder %s40, %s41
      %p50 = scmp.eq.s32.totalorder %s23, 0
      %p51 = por %p49, %p50
      %p52 = scmp.ne.s32.totalorder %s40, %s41
      %p53 = scmp.eq.s32.totalorder %s24, 3
      %p54 = por %p52, %p53
      %p56 = scmp.ne.s32.totalorder %s41, %s55
      %p57 = scmp.eq.s32.totalorder %s24, 0
      %p58 = por %p56, %p57
      %s60 = sadd.s32 %s59, 1
      %p63 = scmp.eq.s32.totalorder %s18, 3
      %p64 = scmp.ne.s32.totalorder %s59, %s61
      %p65 = scmp.eq.s32.totalorder %s18, 0
      %p66 = por %p64, %p65
      %p67 = scmp.ne.s32.totalorder %s59, %s61
      %p68 = scmp.eq.s32.totalorder %s23, 3
      %p69 = por %p67, %p68
      %p70 = scmp.ne.s32.totalorder %s61, %s62
      %p71 = scmp.eq.s32.totalorder %s23, 0
      %p72 = por %p70, %p71
      %p73 = scmp.ne.s32.totalorder %s61, %s62
      %p74 = scmp.eq.s32.totalorder %s24, 3
      %p75 = por %p73, %p74
      %p77 = scmp.ne.s32.totalorder %s62, %s76
      %p78 = scmp.eq.s32.totalorder %s24, 0
      %p79 = por %p77, %p78
      %s81 = sadd.s32 %s80, 1
      %p84 = scmp.eq.s32.totalorder %s18, 3
      %p85 = scmp.ne.s32.totalorder %s80, %s82
      %p86 = scmp.eq.s32.totalorder %s18, 0
      %p87 = por %p85, %p86
      %p88 = scmp.ne.s32.totalorder %s80, %s82
      %p89 = scmp.eq.s32.totalorder %s23, 3
      %p90 = por %p88, %p89
      %p91 = scmp.ne.s32.totalorder %s82, %s83
      %p92 = scmp.eq.s32.totalorder %s23, 0
      %p93 = por %p91, %p92
      %p94 = scmp.ne.s32.totalorder %s82, %s83
      %p95 = scmp.eq.s32.totalorder %s24, 3
      %p96 = por %p94, %p95
      %p98 = scmp.ne.s32.totalorder %s83, %s97
      %p99 = scmp.eq.s32.totalorder %s24, 0
      %p100 = por %p98, %p99
      %s102 = sadd.s32 %s101, 1
      %p105 = scmp.eq.s32.totalorder %s18, 3
      %p106 = scmp.ne.s32.totalorder %s101, %s103
      %p107 = scmp.eq.s32.totalorder %s18, 0
      %p108 = por %p106, %p107
      %p109 = scmp.ne.s32.totalorder %s101, %s103
      %p110 = scmp.eq.s32.totalorder %s23, 3
      %p111 = por %p109, %p110
      %p112 = scmp.ne.s32.totalorder %s103, %s104
      %p113 = scmp.eq.s32.totalorder %s23, 0
      %p114 = por %p112, %p113
      %p115 = scmp.ne.s32.totalorder %s103, %s104
      %p116 = scmp.eq.s32.totalorder %s24, 3
      %p117 = por %p115, %p116
      %p119 = scmp.ne.s32.totalorder %s104, %s118
      %p120 = scmp.eq.s32.totalorder %s24, 0
      %p121 = por %p119, %p120
      %s122 = smul.u32 %s25, 4
      %s123 = sadd.s32 %s122, %s26
      %s124 = smul.u32 %s37, 4
      %s125 = sadd.s32 %s124, %s33
      %s126 = ssub.s32 %s123, %s125
      %p127 = scmp.eq.s32.totalorder %s126, 0
      %s129 = sadd.s32 %s128, 1
      %s130 = scalar_select %p127, %s128, %s129
      %p133 = pneg %p127
      %p134 = scmp.eq.s32.totalorder %s18, 3
      %p135 = por %p133, %p134
      %p136 = scmp.ne.s32.totalorder %s128, %s131
      %p137 = scmp.eq.s32.totalorder %s18, 0
      %p138 = por %p136, %p137
      %p139 = scmp.ne.s32.totalorder %s128, %s131
      %p140 = scmp.eq.s32.totalorder %s23, 3
      %p141 = por %p139, %p140
      %p142 = scmp.ne.s32.totalorder %s131, %s132
      %p143 = scmp.eq.s32.totalorder %s23, 0
      %p144 = por %p142, %p143
      %p145 = scmp.ne.s32.totalorder %s131, %s132
      %p146 = scmp.eq.s32.totalorder %s24, 3
      %p147 = por %p145, %p146
      %p149 = scmp.ne.s32.totalorder %s132, %s148
      %p150 = scmp.eq.s32.totalorder %s24, 0
      %p151 = por %p149, %p150
      %s152 = smul.u32 %s25, 4
      %s153 = sadd.s32 %s152, %s26
      %s154 = smul.u32 %s37, 4
      %s155 = sadd.s32 %s154, %s33
      %s156 = ssub.s32 %s153, %s155
      %p157 = scmp.eq.s32.totalorder %s156, 0
      %s159 = sadd.s32 %s158, 1
      %s160 = scalar_select %p157, %s158, %s159
      %p163 = pneg %p157
      %p164 = scmp.eq.s32.totalorder %s18, 3
      %p165 = por %p163, %p164
      %p166 = scmp.ne.s32.totalorder %s158, %s161
      %p167 = scmp.eq.s32.totalorder %s18, 0
      %p168 = por %p166, %p167
      %p169 = scmp.ne.s32.totalorder %s158, %s161
      %p170 = scmp.eq.s32.totalorder %s23, 3
      %p171 = por %p169, %p170
      %p172 = scmp.ne.s32.totalorder %s161, %s162
      %p173 = scmp.eq.s32.totalorder %s23, 0
      %p174 = por %p172, %p173
      %p175 = scmp.ne.s32.totalorder %s161, %s162
      %p176 = scmp.eq.s32.totalorder %s24, 3
      %p177 = por %p175, %p176
      %p179 = scmp.ne.s32.totalorder %s162, %s178
      %p180 = scmp.eq.s32.totalorder %s24, 0
      %p181 = por %p179, %p180
      %s182 = smul.u32 %s25, 4
      %s183 = sadd.s32 %s182, %s26
      %s184 = smul.u32 %s37, 4
      %s185 = sadd.s32 %s184, %s33
      %s186 = ssub.s32 %s183, %s185
      %p187 = scmp.eq.s32.totalorder %s186, 0
      %s189 = sadd.s32 %s188, 1
      %s190 = scalar_select %p187, %s188, %s189
      %p193 = pneg %p187
      %p194 = scmp.eq.s32.totalorder %s18, 3
      %p195 = por %p193, %p194
      %p196 = scmp.ne.s32.totalorder %s188, %s191
      %p197 = scmp.eq.s32.totalorder %s18, 0
      %p198 = por %p196, %p197
      %p199 = scmp.ne.s32.totalorder %s188, %s191
      %p200 = scmp.eq.s32.totalorder %s23, 3
      %p201 = por %p199, %p200
      %p202 = scmp.ne.s32.totalorder %s191, %s192
      %p203 = scmp.eq.s32.totalorder %s23, 0
      %p204 = por %p202, %p203
      %p205 = scmp.ne.s32.totalorder %s191, %s192
      %p206 = scmp.eq.s32.totalorder %s24, 3
      %p207 = por %p205, %p206
      %p209 = scmp.ne.s32.totalorder %s192, %s208
      %p210 = scmp.eq.s32.totalorder %s24, 0
      %p211 = por %p209, %p210
      %p212 = scmp.le.s32.totalorder 1, %s18
      %p213 = scmp.lt.s32.totalorder %s18, 5
      %p214 = pnand %p212, %p213
      %p215 = pneg %p214
      // Predicated region
      $region9: #{tpu_custom_call.1} parent=5 // pred_check
        _
      $region10: #{tpu_custom_call.1} parent=5 // pred_check_branch
        %217 = sbr.rel (%p214) target = $region12
      $region11: #{tpu_custom_call.1} parent=5 // pred_region
        %s218 = ssub.s32 %s18, 1
        // Predicated region
        $region13: #{tpu_custom_call.1} parent=11 // pred_check
          %p219 = pneg %p51
        $region14: #{tpu_custom_call.1} parent=11 // pred_check_branch
          %221 = sbr.rel (%p219) target = $region16
        $region15: #{tpu_custom_call.1} parent=11 // pred_region
          %s223 = ssub.s32 9600, 9600
          %224 = vsyncadd [#allocation4], %s223
          %s225 = sshll.u32 [#allocation3], 4
          %s226 = int_to_ptr.vmem [resolvable:$true] %s225
          %231 = dma.hbm_to_vmem [thread:$0]  %s0, 9600, %s226, [#allocation4], 384, 384, 24
        $region16: #{tpu_custom_call.1} parent=11 // pred_fallthru
          _
        // Predicated region
        $region17: #{tpu_custom_call.1} parent=11 // pred_check
          %p232 = pneg %p72
        $region18: #{tpu_custom_call.1} parent=11 // pred_check_branch
          %234 = sbr.rel (%p232) target = $region20
        $region19: #{tpu_custom_call.1} parent=11 // pred_region
          %s236 = ssub.s32 9600, 9600
          %237 = vsyncadd [#allocation7], %s236
          %s238 = sshll.u32 [#allocation6], 4
          %s239 = int_to_ptr.vmem [resolvable:$true] %s238
          %244 = dma.hbm_to_vmem [thread:$0]  %s1, 9600, %s239, [#allocation7], 384, 384, 24
        $region20: #{tpu_custom_call.1} parent=11 // pred_fallthru
          _
        // Predicated region
        $region21: #{tpu_custom_call.1} parent=11 // pred_check
          %p245 = pneg %p93
        $region22: #{tpu_custom_call.1} parent=11 // pred_check_branch
          %247 = sbr.rel (%p245) target = $region24
        $region23: #{tpu_custom_call.1} parent=11 // pred_region
          %s249 = ssub.s32 48, 48
          %250 = vsyncadd [#allocation7], %s249
          %s252 = sshll.u32 [#allocation8], 4
          %s253 = int_to_ptr.vmem [resolvable:$true] %s252
          %255 = dma.hbm_to_vmem [thread:$0]  %s2, 48, %s253, [#allocation7]
        $region24: #{tpu_custom_call.1} parent=11 // pred_fallthru
          _
        // Predicated region
        $region25: #{tpu_custom_call.1} parent=11 // pred_check
          %p256 = pneg %p114
        $region26: #{tpu_custom_call.1} parent=11 // pred_check_branch
          %258 = sbr.rel (%p256) target = $region28
        $region27: #{tpu_custom_call.1} parent=11 // pred_region
          %s260 = ssub.s32 48, 48
          %261 = vsyncadd [#allocation10], %s260
          %s263 = sshll.u32 [#allocation9], 4
          %s264 = int_to_ptr.vmem [resolvable:$true] %s263
          %266 = dma.hbm_to_vmem [thread:$0]  %s3, 48, %s264, [#allocation10]
        $region28: #{tpu_custom_call.1} parent=11 // pred_fallthru
          _
      $region12: #{tpu_custom_call.1} parent=5 // pred_fallthru
        _
      %p267 = scmp.lt.s32.totalorder %s18, 4
      // Predicated region
      $region29: #{tpu_custom_call.1} parent=5 // pred_check
        %p268 = pneg %p267
      $region30: #{tpu_custom_call.1} parent=5 // pred_check_branch
        %270 = sbr.rel (%p268) target = $region32
      $region31: #{tpu_custom_call.1} parent=5 // pred_region
        // Predicated region
        $region33: #{tpu_custom_call.1} parent=31 // pred_check
          %p271 = pneg %p138
        $region34: #{tpu_custom_call.1} parent=31 // pred_check_branch
          %273 = sbr.rel (%p271) target = $region36
        $region35: #{tpu_custom_call.1} parent=31 // pred_region
          %s274 = sand.u32 %s18, 1
          %s275 = scalar_lea.sflag [#allocation4], %s274
          %s276 = sand.u32 %s128, 1
          %s277 = smul.addr %s276, 576
          %s278 = scalar_lea.vmem [#allocation11], %s277
          %s279 = smul.u32 %s25, 4
          %s280 = sadd.s32 %s279, %s26
          %s282 = ssub.s32 9216, 9216
          %283 = vsyncadd %s275, %s282
          %s284 = smul.addr %s280, 144
          %s285 = smul.addr %s284, 64
          %s286 = scalar_lea.hbm %s4, %s285
          %s287 = sshll.u32 %s278, 4
          %s288 = int_to_ptr.vmem [resolvable:$true] %s287
          %293 = dma.hbm_to_vmem [thread:$0]  %s286, 9216, %s288, %s275, 192, 192, 12
        $region36: #{tpu_custom_call.1} parent=31 // pred_fallthru
          _
        // Predicated region
        $region37: #{tpu_custom_call.1} parent=31 // pred_check
          %p294 = pneg %p168
        $region38: #{tpu_custom_call.1} parent=31 // pred_check_branch
          %296 = sbr.rel (%p294) target = $region40
        $region39: #{tpu_custom_call.1} parent=31 // pred_region
          %s297 = sand.u32 %s18, 1
          %s298 = scalar_lea.sflag [#allocation4], %s297
          %s299 = sand.u32 %s158, 1
          %s300 = smul.addr %s299, 3
          %s301 = scalar_lea.vmem [#allocation12], %s300
          %s302 = smul.u32 %s25, 4
          %s303 = sadd.s32 %s302, %s26
          %s304 = smul.u32 3, %s303
          %s306 = ssub.s32 48, 48
          %307 = vsyncadd %s298, %s306
          %s308 = smul.addr %s304, 16
          %s309 = scalar_lea.hbm %s5, %s308
          %s311 = sshll.u32 %s301, 4
          %s312 = int_to_ptr.vmem [resolvable:$true] %s311
          %314 = dma.hbm_to_vmem [thread:$0]  %s309, 48, %s312, %s298
        $region40: #{tpu_custom_call.1} parent=31 // pred_fallthru
          _
      $region32: #{tpu_custom_call.1} parent=5 // pred_fallthru
        _
      %p315 = scmp.le.s32.totalorder 1, %s18
      %p316 = scmp.lt.s32.totalorder %s18, 5
      %p317 = pnand %p315, %p316
      %p318 = pneg %p317
      // Predicated region
      $region41: #{tpu_custom_call.1} parent=5 // pred_check
        _
      $region42: #{tpu_custom_call.1} parent=5 // pred_check_branch
        %320 = sbr.rel (%p317) target = $region44
      $region43: #{tpu_custom_call.1} parent=5 // pred_region
        %s321 = ssub.s32 %s18, 1
        // Predicated region
        $region45: #{tpu_custom_call.1} parent=43 // pred_check
          %p322 = pneg %p51
        $region46: #{tpu_custom_call.1} parent=43 // pred_check_branch
          %324 = sbr.rel (%p322) target = $region48
        $region47: #{tpu_custom_call.1} parent=43 // pred_region
          %325 = dma.done [#allocation4], 9600
        $region48: #{tpu_custom_call.1} parent=43 // pred_fallthru
          _
        // Predicated region
        $region49: #{tpu_custom_call.1} parent=43 // pred_check
          %p326 = pneg %p72
        $region50: #{tpu_custom_call.1} parent=43 // pred_check_branch
          %328 = sbr.rel (%p326) target = $region52
        $region51: #{tpu_custom_call.1} parent=43 // pred_region
          %329 = dma.done [#allocation7], 9600
        $region52: #{tpu_custom_call.1} parent=43 // pred_fallthru
          _
        // Predicated region
        $region53: #{tpu_custom_call.1} parent=43 // pred_check
          %p330 = pneg %p93
        $region54: #{tpu_custom_call.1} parent=43 // pred_check_branch
          %332 = sbr.rel (%p330) target = $region56
        $region55: #{tpu_custom_call.1} parent=43 // pred_region
          %333 = dma.done [#allocation7], 48
        $region56: #{tpu_custom_call.1} parent=43 // pred_fallthru
          _
        // Predicated region
        $region57: #{tpu_custom_call.1} parent=43 // pred_check
          %p334 = pneg %p114
        $region58: #{tpu_custom_call.1} parent=43 // pred_check_branch
          %336 = sbr.rel (%p334) target = $region60
        $region59: #{tpu_custom_call.1} parent=43 // pred_region
          %337 = dma.done [#allocation10], 48
        $region60: #{tpu_custom_call.1} parent=43 // pred_fallthru
          _
        %s338 = sand.u32 %s23, 1
        %s339 = scalar_lea.sflag [#allocation4], %s338
        %s340 = sand.u32 %s131, 1
        %s341 = smul.addr %s340, 576
        %s342 = scalar_lea.vmem [#allocation11], %s341
        // Predicated region
        $region61: #{tpu_custom_call.1} parent=43 // pred_check
          %p343 = pneg %p144
        $region62: #{tpu_custom_call.1} parent=43 // pred_check_branch
          %345 = sbr.rel (%p343) target = $region64
        $region63: #{tpu_custom_call.1} parent=43 // pred_region
          %346 = dma.done %s339, 9216
        $region64: #{tpu_custom_call.1} parent=43 // pred_fallthru
          _
        %s347 = sand.u32 %s23, 1
        %s348 = scalar_lea.sflag [#allocation4], %s347
        %s349 = sand.u32 %s161, 1
        %s350 = smul.addr %s349, 3
        %s351 = scalar_lea.vmem [#allocation12], %s350
        // Predicated region
        $region65: #{tpu_custom_call.1} parent=43 // pred_check
          %p352 = pneg %p174
        $region66: #{tpu_custom_call.1} parent=43 // pred_check_branch
          %354 = sbr.rel (%p352) target = $region68
        $region67: #{tpu_custom_call.1} parent=43 // pred_region
          %355 = dma.done %s348, 48
        $region68: #{tpu_custom_call.1} parent=43 // pred_fallthru
          _
        %p356 = pneg %p51
        %p357 = pneg %p48
        %p358 = pneg %p72
        %p359 = pneg %p69
        %p360 = pneg %p93
        %p361 = pneg %p90
        %p362 = pneg %p114
        %p363 = pneg %p111
        %s364 = sand.u32 %s23, 1
        %s365 = scalar_lea.sflag [#allocation4], %s364
        %s366 = sand.u32 %s131, 1
        %s367 = smul.addr %s366, 576
        %s368 = scalar_lea.vmem [#allocation11], %s367
        %p369 = pneg %p144
        %p370 = pneg %p141
        %s371 = sand.u32 %s23, 1
        %s372 = scalar_lea.sflag [#allocation4], %s371
        %s373 = sand.u32 %s161, 1
        %s374 = smul.addr %s373, 3
        %s375 = scalar_lea.vmem [#allocation12], %s374
        %p376 = pneg %p174
        %p377 = pneg %p171
        %p378 = pneg %p204
        %p379 = pneg %p201
        %s380 = sand.u32 %s191, 1
        %s381 = scalar_lea.sflag [#allocation5], %s380
        %s382 = sand.u32 %s191, 1
        %s383 = smul.addr %s382, 600
        %s384 = scalar_lea.vmem [#allocation13], %s383
        %s385 = smul.u32 %s27, 4
        %s386 = sadd.s32 %s385, %s28
        %s387 = smul.u32 %s27, 4
        %s388 = sadd.s32 %s387, %s28
        %s389 = smul.u32 3, %s388
        %s390 = smul.u32 %s27, 4
        %s391 = sadd.s32 %s390, %s28
        %s392 = smul.u32 3, %s391
        %p394 = scmp.eq.s32.totalorder %s28, 0
        // Predicated region
        $region69: #{tpu_custom_call.1} parent=43 // pred_check
          %p395 = pneg %p394
        $region70: #{tpu_custom_call.1} parent=43 // pred_check_branch
          %397 = sbr.rel (%p395) target = $region72
        $region71: #{tpu_custom_call.1} parent=43 // pred_region
          %v398 = vld [vmem:[#allocation3] sm:$0xff]
          %v399 = vld [vmem:[#allocation3 + $0x8] sm:$0xff]
          %v400 = vld [vmem:[#allocation3 + $0x10] sm:$0xff]
          %v401 = vld [vmem:[#allocation3 + $0x18] sm:$0xff]
          %v402 = vld [vmem:[#allocation3 + $0x20] sm:$0xff]
          %v403 = vld [vmem:[#allocation3 + $0x28] sm:$0xff]
          %v404 = vld [vmem:[#allocation3 + $0x30] sm:$0xff]
          %v405 = vld [vmem:[#allocation3 + $0x38] sm:$0xff]
          %v406 = vld [vmem:[#allocation3 + $0x40] sm:$0xff]
          %v407 = vld [vmem:[#allocation3 + $0x48] sm:$0xff]
          %v408 = vld [vmem:[#allocation3 + $0x50] sm:$0xff]
          %v409 = vld [vmem:[#allocation3 + $0x58] sm:$0xff]
          %v410 = vld [vmem:[#allocation3 + $0x60] sm:$0xff]
          %v411 = vld [vmem:[#allocation3 + $0x68] sm:$0xff]
          %v412 = vld [vmem:[#allocation3 + $0x70] sm:$0xff]
          %v413 = vld [vmem:[#allocation3 + $0x78] sm:$0xff]
          %v414 = vld [vmem:[#allocation3 + $0x80] sm:$0xff]
          %v415 = vld [vmem:[#allocation3 + $0x88] sm:$0xff]
          %v416 = vld [vmem:[#allocation3 + $0x90] sm:$0xff]
          %v417 = vld [vmem:[#allocation3 + $0x98] sm:$0xff]
          %v418 = vld [vmem:[#allocation3 + $0xa0] sm:$0xff]
          %v419 = vld [vmem:[#allocation3 + $0xa8] sm:$0xff]
          %v420 = vld [vmem:[#allocation3 + $0xb0] sm:$0xff]
          %v421 = vld [vmem:[#allocation3 + $0xb8] sm:$0xff]
          %v422 = vld [vmem:[#allocation3 + $0xc0] sm:$0xff]
          %v423 = vld [vmem:[#allocation3 + $0xc8] sm:$0xff]
          %v424 = vld [vmem:[#allocation3 + $0xd0] sm:$0xff]
          %v425 = vld [vmem:[#allocation3 + $0xd8] sm:$0xff]
          %v426 = vld [vmem:[#allocation3 + $0xe0] sm:$0xff]
          %v427 = vld [vmem:[#allocation3 + $0xe8] sm:$0xff]
          %v428 = vld [vmem:[#allocation3 + $0xf0] sm:$0xff]
          %v429 = vld [vmem:[#allocation3 + $0xf8] sm:$0xff]
          %v430 = vld [vmem:[#allocation3 + $0x100] sm:$0xff]
          %v431 = vld [vmem:[#allocation3 + $0x108] sm:$0xff]
          %v432 = vld [vmem:[#allocation3 + $0x110] sm:$0xff]
          %v433 = vld [vmem:[#allocation3 + $0x118] sm:$0xff]
          %v434 = vld [vmem:[#allocation3 + $0x120] sm:$0xff]
          %v435 = vld [vmem:[#allocation3 + $0x128] sm:$0xff]
          %v436 = vld [vmem:[#allocation3 + $0x130] sm:$0xff]
          %v437 = vld [vmem:[#allocation3 + $0x138] sm:$0xff]
          %v438 = vld [vmem:[#allocation3 + $0x140] sm:$0xff]
          %v439 = vld [vmem:[#allocation3 + $0x148] sm:$0xff]
          %v440 = vld [vmem:[#allocation3 + $0x150] sm:$0xff]
          %v441 = vld [vmem:[#allocation3 + $0x158] sm:$0xff]
          %v442 = vld [vmem:[#allocation3 + $0x160] sm:$0xff]
          %v443 = vld [vmem:[#allocation3 + $0x168] sm:$0xff]
          %v444 = vld [vmem:[#allocation3 + $0x170] sm:$0xff]
          %v445 = vld [vmem:[#allocation3 + $0x178] sm:$0xff]
          %v446 = vld [vmem:[#allocation3 + $0x180] sm:$0xff]
          %v447 = vld [vmem:[#allocation3 + $0x188] sm:$0xff]
          %v448 = vld [vmem:[#allocation3 + $0x190] sm:$0xff]
          %v449 = vld [vmem:[#allocation3 + $0x198] sm:$0xff]
          %v450 = vld [vmem:[#allocation3 + $0x1a0] sm:$0xff]
          %v451 = vld [vmem:[#allocation3 + $0x1a8] sm:$0xff]
          %v452 = vld [vmem:[#allocation3 + $0x1b0] sm:$0xff]
          %v453 = vld [vmem:[#allocation3 + $0x1b8] sm:$0xff]
          %v454 = vld [vmem:[#allocation3 + $0x1c0] sm:$0xff]
          %v455 = vld [vmem:[#allocation3 + $0x1c8] sm:$0xff]
          %v456 = vld [vmem:[#allocation3 + $0x1d0] sm:$0xff]
          %v457 = vld [vmem:[#allocation3 + $0x1d8] sm:$0xff]
          %v458 = vld [vmem:[#allocation3 + $0x1e0] sm:$0xff]
          %v459 = vld [vmem:[#allocation3 + $0x1e8] sm:$0xff]
          %v460 = vld [vmem:[#allocation3 + $0x1f0] sm:$0xff]
          %v461 = vld [vmem:[#allocation3 + $0x1f8] sm:$0xff]
          %v462 = vld [vmem:[#allocation3 + $0x200] sm:$0xff]
          %v463 = vld [vmem:[#allocation3 + $0x208] sm:$0xff]
          %v464 = vld [vmem:[#allocation3 + $0x210] sm:$0xff]
          %v465 = vld [vmem:[#allocation3 + $0x218] sm:$0xff]
          %v466 = vld [vmem:[#allocation3 + $0x220] sm:$0xff]
          %v467 = vld [vmem:[#allocation3 + $0x228] sm:$0xff]
          %v468 = vld [vmem:[#allocation3 + $0x230] sm:$0xff]
          %v469 = vld [vmem:[#allocation3 + $0x238] sm:$0xff]
          %v470 = vld [vmem:[#allocation3 + $0x240] sm:$0xf]
          %v471 = vld [vmem:[#allocation3 + $0x248] sm:$0xf]
          %v472 = vld [vmem:[#allocation3 + $0x250] sm:$0xf]
          %v473 = vld [vmem:[#allocation6] sm:$0xff]
          %v474 = vld [vmem:[#allocation6 + $0x8] sm:$0xff]
          %v475 = vld [vmem:[#allocation6 + $0x10] sm:$0xff]
          %v476 = vld [vmem:[#allocation6 + $0x18] sm:$0xff]
          %v477 = vld [vmem:[#allocation6 + $0x20] sm:$0xff]
          %v478 = vld [vmem:[#allocation6 + $0x28] sm:$0xff]
          %v479 = vld [vmem:[#allocation6 + $0x30] sm:$0xff]
          %v480 = vld [vmem:[#allocation6 + $0x38] sm:$0xff]
          %v481 = vld [vmem:[#allocation6 + $0x40] sm:$0xff]
          %v482 = vld [vmem:[#allocation6 + $0x48] sm:$0xff]
          %v483 = vld [vmem:[#allocation6 + $0x50] sm:$0xff]
          %v484 = vld [vmem:[#allocation6 + $0x58] sm:$0xff]
          %v485 = vld [vmem:[#allocation6 + $0x60] sm:$0xff]
          %v486 = vld [vmem:[#allocation6 + $0x68] sm:$0xff]
          %v487 = vld [vmem:[#allocation6 + $0x70] sm:$0xff]
          %v488 = vld [vmem:[#allocation6 + $0x78] sm:$0xff]
          %v489 = vld [vmem:[#allocation6 + $0x80] sm:$0xff]
          %v490 = vld [vmem:[#allocation6 + $0x88] sm:$0xff]
          %v491 = vld [vmem:[#allocation6 + $0x90] sm:$0xff]
          %v492 = vld [vmem:[#allocation6 + $0x98] sm:$0xff]
          %v493 = vld [vmem:[#allocation6 + $0xa0] sm:$0xff]
          %v494 = vld [vmem:[#allocation6 + $0xa8] sm:$0xff]
          %v495 = vld [vmem:[#allocation6 + $0xb0] sm:$0xff]
          %v496 = vld [vmem:[#allocation6 + $0xb8] sm:$0xff]
          %v497 = vld [vmem:[#allocation6 + $0xc0] sm:$0xff]
          %v498 = vld [vmem:[#allocation6 + $0xc8] sm:$0xff]
          %v499 = vld [vmem:[#allocation6 + $0xd0] sm:$0xff]
          %v500 = vld [vmem:[#allocation6 + $0xd8] sm:$0xff]
          %v501 = vld [vmem:[#allocation6 + $0xe0] sm:$0xff]
          %v502 = vld [vmem:[#allocation6 + $0xe8] sm:$0xff]
          %v503 = vld [vmem:[#allocation6 + $0xf0] sm:$0xff]
          %v504 = vld [vmem:[#allocation6 + $0xf8] sm:$0xff]
          %v505 = vld [vmem:[#allocation6 + $0x100] sm:$0xff]
          %v506 = vld [vmem:[#allocation6 + $0x108] sm:$0xff]
          %v507 = vld [vmem:[#allocation6 + $0x110] sm:$0xff]
          %v508 = vld [vmem:[#allocation6 + $0x118] sm:$0xff]
          %v509 = vld [vmem:[#allocation6 + $0x120] sm:$0xff]
          %v510 = vld [vmem:[#allocation6 + $0x128] sm:$0xff]
          %v511 = vld [vmem:[#allocation6 + $0x130] sm:$0xff]
          %v512 = vld [vmem:[#allocation6 + $0x138] sm:$0xff]
          %v513 = vld [vmem:[#allocation6 + $0x140] sm:$0xff]
          %v514 = vld [vmem:[#allocation6 + $0x148] sm:$0xff]
          %v515 = vld [vmem:[#allocation6 + $0x150] sm:$0xff]
          %v516 = vld [vmem:[#allocation6 + $0x158] sm:$0xff]
          %v517 = vld [vmem:[#allocation6 + $0x160] sm:$0xff]
          %v518 = vld [vmem:[#allocation6 + $0x168] sm:$0xff]
          %v519 = vld [vmem:[#allocation6 + $0x170] sm:$0xff]
          %v520 = vld [vmem:[#allocation6 + $0x178] sm:$0xff]
          %v521 = vld [vmem:[#allocation6 + $0x180] sm:$0xff]
          %v522 = vld [vmem:[#allocation6 + $0x188] sm:$0xff]
          %v523 = vld [vmem:[#allocation6 + $0x190] sm:$0xff]
          %v524 = vld [vmem:[#allocation6 + $0x198] sm:$0xff]
          %v525 = vld [vmem:[#allocation6 + $0x1a0] sm:$0xff]
          %v526 = vld [vmem:[#allocation6 + $0x1a8] sm:$0xff]
          %v527 = vld [vmem:[#allocation6 + $0x1b0] sm:$0xff]
          %v528 = vld [vmem:[#allocation6 + $0x1b8] sm:$0xff]
          %v529 = vld [vmem:[#allocation6 + $0x1c0] sm:$0xff]
          %v530 = vld [vmem:[#allocation6 + $0x1c8] sm:$0xff]
          %v531 = vld [vmem:[#allocation6 + $0x1d0] sm:$0xff]
          %v532 = vld [vmem:[#allocation6 + $0x1d8] sm:$0xff]
          %v533 = vld [vmem:[#allocation6 + $0x1e0] sm:$0xff]
          %v534 = vld [vmem:[#allocation6 + $0x1e8] sm:$0xff]
          %v535 = vld [vmem:[#allocation6 + $0x1f0] sm:$0xff]
          %v536 = vld [vmem:[#allocation6 + $0x1f8] sm:$0xff]
          %v537 = vld [vmem:[#allocation6 + $0x200] sm:$0xff]
          %v538 = vld [vmem:[#allocation6 + $0x208] sm:$0xff]
          %v539 = vld [vmem:[#allocation6 + $0x210] sm:$0xff]
          %v540 = vld [vmem:[#allocation6 + $0x218] sm:$0xff]
          %v541 = vld [vmem:[#allocation6 + $0x220] sm:$0xff]
          %v542 = vld [vmem:[#allocation6 + $0x228] sm:$0xff]
          %v543 = vld [vmem:[#allocation6 + $0x230] sm:$0xff]
          %v544 = vld [vmem:[#allocation6 + $0x238] sm:$0xff]
          %v545 = vld [vmem:[#allocation6 + $0x240] sm:$0xf]
          %v546 = vld [vmem:[#allocation6 + $0x248] sm:$0xf]
          %v547 = vld [vmem:[#allocation6 + $0x250] sm:$0xf]
          %v548 = vadd.f32 %v398, %v473
          %v549 = vadd.f32 %v399, %v474
          %v550 = vadd.f32 %v400, %v475
          %v551 = vadd.f32 %v401, %v476
          %v552 = vadd.f32 %v402, %v477
          %v553 = vadd.f32 %v403, %v478
          %v554 = vadd.f32 %v404, %v479
          %v555 = vadd.f32 %v405, %v480
          %v556 = vadd.f32 %v406, %v481
          %v557 = vadd.f32 %v407, %v482
          %v558 = vadd.f32 %v408, %v483
          %v559 = vadd.f32 %v409, %v484
          %v560 = vadd.f32 %v410, %v485
          %v561 = vadd.f32 %v411, %v486
          %v562 = vadd.f32 %v412, %v487
          %v563 = vadd.f32 %v413, %v488
          %v564 = vadd.f32 %v414, %v489
          %v565 = vadd.f32 %v415, %v490
          %v566 = vadd.f32 %v416, %v491
          %v567 = vadd.f32 %v417, %v492
          %v568 = vadd.f32 %v418, %v493
          %v569 = vadd.f32 %v419, %v494
          %v570 = vadd.f32 %v420, %v495
          %v571 = vadd.f32 %v421, %v496
          %v572 = vadd.f32 %v422, %v497
          %v573 = vadd.f32 %v423, %v498
          %v574 = vadd.f32 %v424, %v499
          %v575 = vadd.f32 %v425, %v500
          %v576 = vadd.f32 %v426, %v501
          %v577 = vadd.f32 %v427, %v502
          %v578 = vadd.f32 %v428, %v503
          %v579 = vadd.f32 %v429, %v504
          %v580 = vadd.f32 %v430, %v505
          %v581 = vadd.f32 %v431, %v506
          %v582 = vadd.f32 %v432, %v507
          %v583 = vadd.f32 %v433, %v508
          %v584 = vadd.f32 %v434, %v509
          %v585 = vadd.f32 %v435, %v510
          %v586 = vadd.f32 %v436, %v511
          %v587 = vadd.f32 %v437, %v512
          %v588 = vadd.f32 %v438, %v513
          %v589 = vadd.f32 %v439, %v514
          %v590 = vadd.f32 %v440, %v515
          %v591 = vadd.f32 %v441, %v516
          %v592 = vadd.f32 %v442, %v517
          %v593 = vadd.f32 %v443, %v518
          %v594 = vadd.f32 %v444, %v519
          %v595 = vadd.f32 %v445, %v520
          %v596 = vadd.f32 %v446, %v521
          %v597 = vadd.f32 %v447, %v522
          %v598 = vadd.f32 %v448, %v523
          %v599 = vadd.f32 %v449, %v524
          %v600 = vadd.f32 %v450, %v525
          %v601 = vadd.f32 %v451, %v526
          %v602 = vadd.f32 %v452, %v527
          %v603 = vadd.f32 %v453, %v528
          %v604 = vadd.f32 %v454, %v529
          %v605 = vadd.f32 %v455, %v530
          %v606 = vadd.f32 %v456, %v531
          %v607 = vadd.f32 %v457, %v532
          %v608 = vadd.f32 %v458, %v533
          %v609 = vadd.f32 %v459, %v534
          %v610 = vadd.f32 %v460, %v535
          %v611 = vadd.f32 %v461, %v536
          %v612 = vadd.f32 %v462, %v537
          %v613 = vadd.f32 %v463, %v538
          %v614 = vadd.f32 %v464, %v539
          %v615 = vadd.f32 %v465, %v540
          %v616 = vadd.f32 %v466, %v541
          %v617 = vadd.f32 %v467, %v542
          %v618 = vadd.f32 %v468, %v543
          %v619 = vadd.f32 %v469, %v544
          %v620 = vadd.f32 %v470, %v545
          %v621 = vadd.f32 %v471, %v546
          %v622 = vadd.f32 %v472, %v547
          %v623 = vadd.f32 %v548, %v549
          %v624 = vadd.f32 %v623, %v550
          %625 = vadd.xlane.f32.xlu0 %v624
          %v626 = vpop.xlane.xlu0 %625
          %v627 = vadd.f32 %v551, %v552
          %v628 = vadd.f32 %v627, %v553
          %629 = vadd.xlane.f32.xlu0 %v628
          %v630 = vpop.xlane.xlu0 %629
          %v631 = vadd.f32 %v554, %v555
          %v632 = vadd.f32 %v631, %v556
          %633 = vadd.xlane.f32.xlu0 %v632
          %v634 = vpop.xlane.xlu0 %633
          %v635 = vadd.f32 %v557, %v558
          %v636 = vadd.f32 %v635, %v559
          %637 = vadd.xlane.f32.xlu0 %v636
          %v638 = vpop.xlane.xlu0 %637
          %v639 = vadd.f32 %v560, %v561
          %v640 = vadd.f32 %v639, %v562
          %641 = vadd.xlane.f32.xlu0 %v640
          %v642 = vpop.xlane.xlu0 %641
          %v643 = vadd.f32 %v563, %v564
          %v644 = vadd.f32 %v643, %v565
          %645 = vadd.xlane.f32.xlu0 %v644
          %v646 = vpop.xlane.xlu0 %645
          %v647 = vadd.f32 %v566, %v567
          %v648 = vadd.f32 %v647, %v568
          %649 = vadd.xlane.f32.xlu0 %v648
          %v650 = vpop.xlane.xlu0 %649
          %v651 = vadd.f32 %v569, %v570
          %v652 = vadd.f32 %v651, %v571
          %653 = vadd.xlane.f32.xlu0 %v652
          %v654 = vpop.xlane.xlu0 %653
          %v655 = vadd.f32 %v572, %v573
          %v656 = vadd.f32 %v655, %v574
          %657 = vadd.xlane.f32.xlu0 %v656
          %v658 = vpop.xlane.xlu0 %657
          %v659 = vadd.f32 %v575, %v576
          %v660 = vadd.f32 %v659, %v577
          %661 = vadd.xlane.f32.xlu0 %v660
          %v662 = vpop.xlane.xlu0 %661
          %v663 = vadd.f32 %v578, %v579
          %v664 = vadd.f32 %v663, %v580
          %665 = vadd.xlane.f32.xlu0 %v664
          %v666 = vpop.xlane.xlu0 %665
          %v667 = vadd.f32 %v581, %v582
          %v668 = vadd.f32 %v667, %v583
          %669 = vadd.xlane.f32.xlu0 %v668
          %v670 = vpop.xlane.xlu0 %669
          %v671 = vadd.f32 %v584, %v585
          %v672 = vadd.f32 %v671, %v586
          %673 = vadd.xlane.f32.xlu0 %v672
          %v674 = vpop.xlane.xlu0 %673
          %v675 = vadd.f32 %v587, %v588
          %v676 = vadd.f32 %v675, %v589
          %677 = vadd.xlane.f32.xlu0 %v676
          %v678 = vpop.xlane.xlu0 %677
          %v679 = vadd.f32 %v590, %v591
          %v680 = vadd.f32 %v679, %v592
          %681 = vadd.xlane.f32.xlu0 %v680
          %v682 = vpop.xlane.xlu0 %681
          %v683 = vadd.f32 %v593, %v594
          %v684 = vadd.f32 %v683, %v595
          %685 = vadd.xlane.f32.xlu0 %v684
          %v686 = vpop.xlane.xlu0 %685
          %v687 = vadd.f32 %v596, %v597
          %v688 = vadd.f32 %v687, %v598
          %689 = vadd.xlane.f32.xlu0 %v688
          %v690 = vpop.xlane.xlu0 %689
          %v691 = vadd.f32 %v599, %v600
          %v692 = vadd.f32 %v691, %v601
          %693 = vadd.xlane.f32.xlu0 %v692
          %v694 = vpop.xlane.xlu0 %693
          %v695 = vadd.f32 %v602, %v603
          %v696 = vadd.f32 %v695, %v604
          %697 = vadd.xlane.f32.xlu0 %v696
          %v698 = vpop.xlane.xlu0 %697
          %v699 = vadd.f32 %v605, %v606
          %v700 = vadd.f32 %v699, %v607
          %701 = vadd.xlane.f32.xlu0 %v700
          %v702 = vpop.xlane.xlu0 %701
          %v703 = vadd.f32 %v608, %v609
          %v704 = vadd.f32 %v703, %v610
          %705 = vadd.xlane.f32.xlu0 %v704
          %v706 = vpop.xlane.xlu0 %705
          %v707 = vadd.f32 %v611, %v612
          %v708 = vadd.f32 %v707, %v613
          %709 = vadd.xlane.f32.xlu0 %v708
          %v710 = vpop.xlane.xlu0 %709
          %v711 = vadd.f32 %v614, %v615
          %v712 = vadd.f32 %v711, %v616
          %713 = vadd.xlane.f32.xlu0 %v712
          %v714 = vpop.xlane.xlu0 %713
          %v715 = vadd.f32 %v617, %v618
          %v716 = vadd.f32 %v715, %v619
          %717 = vadd.xlane.f32.xlu0 %v716
          %v718 = vpop.xlane.xlu0 %717
          %vm719 = vcmask 1043456
          %v720 = vsel %vm719, %v620, 0.0
          %v721 = vsel %vm719, %v621, 0.0
          %v722 = vadd.f32 %v720, %v721
          %v723 = vsel %vm719, %v622, 0.0
          %v724 = vadd.f32 %v722, %v723
          %725 = vadd.xlane.f32.xlu0 %v724
          %v726 = vpop.xlane.xlu0 %725
          %v727 = vrcp.pop 384.0
          %v728 = vmul.f32 %v626, %v727
          %v729 = vmul.f32 %v630, %v727
          %v730 = vmul.f32 %v634, %v727
          %v731 = vmul.f32 %v638, %v727
          %v732 = vmul.f32 %v642, %v727
          %v733 = vmul.f32 %v646, %v727
          %v734 = vmul.f32 %v650, %v727
          %v735 = vmul.f32 %v654, %v727
          %v736 = vmul.f32 %v658, %v727
          %v737 = vmul.f32 %v662, %v727
          %v738 = vmul.f32 %v666, %v727
          %v739 = vmul.f32 %v670, %v727
          %v740 = vmul.f32 %v674, %v727
          %v741 = vmul.f32 %v678, %v727
          %v742 = vmul.f32 %v682, %v727
          %v743 = vmul.f32 %v686, %v727
          %v744 = vmul.f32 %v690, %v727
          %v745 = vmul.f32 %v694, %v727
          %v746 = vmul.f32 %v698, %v727
          %v747 = vmul.f32 %v702, %v727
          %v748 = vmul.f32 %v706, %v727
          %v749 = vmul.f32 %v710, %v727
          %v750 = vmul.f32 %v714, %v727
          %v751 = vmul.f32 %v718, %v727
          %v752 = vmul.f32 %v726, %v727
          %v753 = vmul.f32 %v548, %v548
          %v754 = vmul.f32 %v549, %v549
          %v755 = vmul.f32 %v550, %v550
          %v756 = vmul.f32 %v551, %v551
          %v757 = vmul.f32 %v552, %v552
          %v758 = vmul.f32 %v553, %v553
          %v759 = vmul.f32 %v554, %v554
          %v760 = vmul.f32 %v555, %v555
          %v761 = vmul.f32 %v556, %v556
          %v762 = vmul.f32 %v557, %v557
          %v763 = vmul.f32 %v558, %v558
          %v764 = vmul.f32 %v559, %v559
          %v765 = vmul.f32 %v560, %v560
          %v766 = vmul.f32 %v561, %v561
          %v767 = vmul.f32 %v562, %v562
          %v768 = vmul.f32 %v563, %v563
          %v769 = vmul.f32 %v564, %v564
          %v770 = vmul.f32 %v565, %v565
          %v771 = vmul.f32 %v566, %v566
          %v772 = vmul.f32 %v567, %v567
          %v773 = vmul.f32 %v568, %v568
          %v774 = vmul.f32 %v569, %v569
          %v775 = vmul.f32 %v570, %v570
          %v776 = vmul.f32 %v571, %v571
          %v777 = vmul.f32 %v572, %v572
          %v778 = vmul.f32 %v573, %v573
          %v779 = vmul.f32 %v574, %v574
          %v780 = vmul.f32 %v575, %v575
          %v781 = vmul.f32 %v576, %v576
          %v782 = vmul.f32 %v577, %v577
          %v783 = vmul.f32 %v578, %v578
          %v784 = vmul.f32 %v579, %v579
          %v785 = vmul.f32 %v580, %v580
          %v786 = vmul.f32 %v581, %v581
          %v787 = vmul.f32 %v582, %v582
          %v788 = vmul.f32 %v583, %v583
          %v789 = vmul.f32 %v584, %v584
          %v790 = vmul.f32 %v585, %v585
          %v791 = vmul.f32 %v586, %v586
          %v792 = vmul.f32 %v587, %v587
          %v793 = vmul.f32 %v588, %v588
          %v794 = vmul.f32 %v589, %v589
          %v795 = vmul.f32 %v590, %v590
          %v796 = vmul.f32 %v591, %v591
          %v797 = vmul.f32 %v592, %v592
          %v798 = vmul.f32 %v593, %v593
          %v799 = vmul.f32 %v594, %v594
          %v800 = vmul.f32 %v595, %v595
          %v801 = vmul.f32 %v596, %v596
          %v802 = vmul.f32 %v597, %v597
          %v803 = vmul.f32 %v598, %v598
          %v804 = vmul.f32 %v599, %v599
          %v805 = vmul.f32 %v600, %v600
          %v806 = vmul.f32 %v601, %v601
          %v807 = vmul.f32 %v602, %v602
          %v808 = vmul.f32 %v603, %v603
          %v809 = vmul.f32 %v604, %v604
          %v810 = vmul.f32 %v605, %v605
          %v811 = vmul.f32 %v606, %v606
          %v812 = vmul.f32 %v607, %v607
          %v813 = vmul.f32 %v608, %v608
          %v814 = vmul.f32 %v609, %v609
          %v815 = vmul.f32 %v610, %v610
          %v816 = vmul.f32 %v611, %v611
          %v817 = vmul.f32 %v612, %v612
          %v818 = vmul.f32 %v613, %v613
          %v819 = vmul.f32 %v614, %v614
          %v820 = vmul.f32 %v615, %v615
          %v821 = vmul.f32 %v616, %v616
          %v822 = vmul.f32 %v617, %v617
          %v823 = vmul.f32 %v618, %v618
          %v824 = vmul.f32 %v619, %v619
          %v825 = vmul.f32 %v620, %v620
          %v826 = vmul.f32 %v621, %v621
          %v827 = vmul.f32 %v622, %v622
          %v828 = vadd.f32 %v753, %v754
          %v829 = vadd.f32 %v828, %v755
          %830 = vadd.xlane.f32.xlu0 %v829
          %v831 = vpop.xlane.xlu0 %830
          %v832 = vadd.f32 %v756, %v757
          %v833 = vadd.f32 %v832, %v758
          %834 = vadd.xlane.f32.xlu0 %v833
          %v835 = vpop.xlane.xlu0 %834
          %v836 = vadd.f32 %v759, %v760
          %v837 = vadd.f32 %v836, %v761
          %838 = vadd.xlane.f32.xlu0 %v837
          %v839 = vpop.xlane.xlu0 %838
          %v840 = vadd.f32 %v762, %v763
          %v841 = vadd.f32 %v840, %v764
          %842 = vadd.xlane.f32.xlu0 %v841
          %v843 = vpop.xlane.xlu0 %842
          %v844 = vadd.f32 %v765, %v766
          %v845 = vadd.f32 %v844, %v767
          %846 = vadd.xlane.f32.xlu0 %v845
          %v847 = vpop.xlane.xlu0 %846
          %v848 = vadd.f32 %v768, %v769
          %v849 = vadd.f32 %v848, %v770
          %850 = vadd.xlane.f32.xlu0 %v849
          %v851 = vpop.xlane.xlu0 %850
          %v852 = vadd.f32 %v771, %v772
          %v853 = vadd.f32 %v852, %v773
          %854 = vadd.xlane.f32.xlu0 %v853
          %v855 = vpop.xlane.xlu0 %854
          %v856 = vadd.f32 %v774, %v775
          %v857 = vadd.f32 %v856, %v776
          %858 = vadd.xlane.f32.xlu0 %v857
          %v859 = vpop.xlane.xlu0 %858
          %v860 = vadd.f32 %v777, %v778
          %v861 = vadd.f32 %v860, %v779
          %862 = vadd.xlane.f32.xlu0 %v861
          %v863 = vpop.xlane.xlu0 %862
          %v864 = vadd.f32 %v780, %v781
          %v865 = vadd.f32 %v864, %v782
          %866 = vadd.xlane.f32.xlu0 %v865
          %v867 = vpop.xlane.xlu0 %866
          %v868 = vadd.f32 %v783, %v784
          %v869 = vadd.f32 %v868, %v785
          %870 = vadd.xlane.f32.xlu0 %v869
          %v871 = vpop.xlane.xlu0 %870
          %v872 = vadd.f32 %v786, %v787
          %v873 = vadd.f32 %v872, %v788
          %874 = vadd.xlane.f32.xlu0 %v873
          %v875 = vpop.xlane.xlu0 %874
          %v876 = vadd.f32 %v789, %v790
          %v877 = vadd.f32 %v876, %v791
          %878 = vadd.xlane.f32.xlu0 %v877
          %v879 = vpop.xlane.xlu0 %878
          %v880 = vadd.f32 %v792, %v793
          %v881 = vadd.f32 %v880, %v794
          %882 = vadd.xlane.f32.xlu0 %v881
          %v883 = vpop.xlane.xlu0 %882
          %v884 = vadd.f32 %v795, %v796
          %v885 = vadd.f32 %v884, %v797
          %886 = vadd.xlane.f32.xlu0 %v885
          %v887 = vpop.xlane.xlu0 %886
          %v888 = vadd.f32 %v798, %v799
          %v889 = vadd.f32 %v888, %v800
          %890 = vadd.xlane.f32.xlu0 %v889
          %v891 = vpop.xlane.xlu0 %890
          %v892 = vadd.f32 %v801, %v802
          %v893 = vadd.f32 %v892, %v803
          %894 = vadd.xlane.f32.xlu0 %v893
          %v895 = vpop.xlane.xlu0 %894
          %v896 = vadd.f32 %v804, %v805
          %v897 = vadd.f32 %v896, %v806
          %898 = vadd.xlane.f32.xlu0 %v897
          %v899 = vpop.xlane.xlu0 %898
          %v900 = vadd.f32 %v807, %v808
          %v901 = vadd.f32 %v900, %v809
          %902 = vadd.xlane.f32.xlu0 %v901
          %v903 = vpop.xlane.xlu0 %902
          %v904 = vadd.f32 %v810, %v811
          %v905 = vadd.f32 %v904, %v812
          %906 = vadd.xlane.f32.xlu0 %v905
          %v907 = vpop.xlane.xlu0 %906
          %v908 = vadd.f32 %v813, %v814
          %v909 = vadd.f32 %v908, %v815
          %910 = vadd.xlane.f32.xlu0 %v909
          %v911 = vpop.xlane.xlu0 %910
          %v912 = vadd.f32 %v816, %v817
          %v913 = vadd.f32 %v912, %v818
          %914 = vadd.xlane.f32.xlu0 %v913
          %v915 = vpop.xlane.xlu0 %914
          %v916 = vadd.f32 %v819, %v820
          %v917 = vadd.f32 %v916, %v821
          %918 = vadd.xlane.f32.xlu0 %v917
          %v919 = vpop.xlane.xlu0 %918
          %v920 = vadd.f32 %v822, %v823
          %v921 = vadd.f32 %v920, %v824
          %922 = vadd.xlane.f32.xlu0 %v921
          %v923 = vpop.xlane.xlu0 %922
          %v924 = vsel %vm719, %v825, 0.0
          %v925 = vsel %vm719, %v826, 0.0
          %v926 = vadd.f32 %v924, %v925
          %v927 = vsel %vm719, %v827, 0.0
          %v928 = vadd.f32 %v926, %v927
          %929 = vadd.xlane.f32.xlu0 %v928
          %v930 = vpop.xlane.xlu0 %929
          %v931 = vmul.f32 %v831, %v727
          %v932 = vmul.f32 %v835, %v727
          %v933 = vmul.f32 %v839, %v727
          %v934 = vmul.f32 %v843, %v727
          %v935 = vmul.f32 %v847, %v727
          %v936 = vmul.f32 %v851, %v727
          %v937 = vmul.f32 %v855, %v727
          %v938 = vmul.f32 %v859, %v727
          %v939 = vmul.f32 %v863, %v727
          %v940 = vmul.f32 %v867, %v727
          %v941 = vmul.f32 %v871, %v727
          %v942 = vmul.f32 %v875, %v727
          %v943 = vmul.f32 %v879, %v727
          %v944 = vmul.f32 %v883, %v727
          %v945 = vmul.f32 %v887, %v727
          %v946 = vmul.f32 %v891, %v727
          %v947 = vmul.f32 %v895, %v727
          %v948 = vmul.f32 %v899, %v727
          %v949 = vmul.f32 %v903, %v727
          %v950 = vmul.f32 %v907, %v727
          %v951 = vmul.f32 %v911, %v727
          %v952 = vmul.f32 %v915, %v727
          %v953 = vmul.f32 %v919, %v727
          %v954 = vmul.f32 %v923, %v727
          %v955 = vmul.f32 %v930, %v727
          %v956 = vmul.f32 %v728, %v728
          %v957 = vmul.f32 %v729, %v729
          %v958 = vmul.f32 %v730, %v730
          %v959 = vmul.f32 %v731, %v731
          %v960 = vmul.f32 %v732, %v732
          %v961 = vmul.f32 %v733, %v733
          %v962 = vmul.f32 %v734, %v734
          %v963 = vmul.f32 %v735, %v735
          %v964 = vmul.f32 %v736, %v736
          %v965 = vmul.f32 %v737, %v737
          %v966 = vmul.f32 %v738, %v738
          %v967 = vmul.f32 %v739, %v739
          %v968 = vmul.f32 %v740, %v740
          %v969 = vmul.f32 %v741, %v741
          %v970 = vmul.f32 %v742, %v742
          %v971 = vmul.f32 %v743, %v743
          %v972 = vmul.f32 %v744, %v744
          %v973 = vmul.f32 %v745, %v745
          %v974 = vmul.f32 %v746, %v746
          %v975 = vmul.f32 %v747, %v747
          %v976 = vmul.f32 %v748, %v748
          %v977 = vmul.f32 %v749, %v749
          %v978 = vmul.f32 %v750, %v750
          %v979 = vmul.f32 %v751, %v751
          %v980 = vmul.f32 %v752, %v752
          %v981 = vsub.f32 %v931, %v956
          %v982 = vsub.f32 %v932, %v957
          %v983 = vsub.f32 %v933, %v958
          %v984 = vsub.f32 %v934, %v959
          %v985 = vsub.f32 %v935, %v960
          %v986 = vsub.f32 %v936, %v961
          %v987 = vsub.f32 %v937, %v962
          %v988 = vsub.f32 %v938, %v963
          %v989 = vsub.f32 %v939, %v964
          %v990 = vsub.f32 %v940, %v965
          %v991 = vsub.f32 %v941, %v966
          %v992 = vsub.f32 %v942, %v967
          %v993 = vsub.f32 %v943, %v968
          %v994 = vsub.f32 %v944, %v969
          %v995 = vsub.f32 %v945, %v970
          %v996 = vsub.f32 %v946, %v971
          %v997 = vsub.f32 %v947, %v972
          %v998 = vsub.f32 %v948, %v973
          %v999 = vsub.f32 %v949, %v974
          %v1000 = vsub.f32 %v950, %v975
          %v1001 = vsub.f32 %v951, %v976
          %v1002 = vsub.f32 %v952, %v977
          %v1003 = vsub.f32 %v953, %v978
          %v1004 = vsub.f32 %v954, %v979
          %v1005 = vsub.f32 %v955, %v980
          %v1006 = vadd.f32 %v981, 1e-05
          %v1007 = vadd.f32 %v982, 1e-05
          %v1008 = vadd.f32 %v983, 1e-05
          %v1009 = vadd.f32 %v984, 1e-05
          %v1010 = vadd.f32 %v985, 1e-05
          %v1011 = vadd.f32 %v986, 1e-05
          %v1012 = vadd.f32 %v987, 1e-05
          %v1013 = vadd.f32 %v988, 1e-05
          %v1014 = vadd.f32 %v989, 1e-05
          %v1015 = vadd.f32 %v990, 1e-05
          %v1016 = vadd.f32 %v991, 1e-05
          %v1017 = vadd.f32 %v992, 1e-05
          %v1018 = vadd.f32 %v993, 1e-05
          %v1019 = vadd.f32 %v994, 1e-05
          %v1020 = vadd.f32 %v995, 1e-05
          %v1021 = vadd.f32 %v996, 1e-05
          %v1022 = vadd.f32 %v997, 1e-05
          %v1023 = vadd.f32 %v998, 1e-05
          %v1024 = vadd.f32 %v999, 1e-05
          %v1025 = vadd.f32 %v1000, 1e-05
          %v1026 = vadd.f32 %v1001, 1e-05
          %v1027 = vadd.f32 %v1002, 1e-05
          %v1028 = vadd.f32 %v1003, 1e-05
          %v1029 = vadd.f32 %v1004, 1e-05
          %v1030 = vadd.f32 %v1005, 1e-05
          %v1031 = vrsqrt.pop %v1006
          %v1032 = vrsqrt.pop %v1007
          %v1033 = vrsqrt.pop %v1008
          %v1034 = vrsqrt.pop %v1009
          %v1035 = vrsqrt.pop %v1010
          %v1036 = vrsqrt.pop %v1011
          %v1037 = vrsqrt.pop %v1012
          %v1038 = vrsqrt.pop %v1013
          %v1039 = vrsqrt.pop %v1014
          %v1040 = vrsqrt.pop %v1015
          %v1041 = vrsqrt.pop %v1016
          %v1042 = vrsqrt.pop %v1017
          %v1043 = vrsqrt.pop %v1018
          %v1044 = vrsqrt.pop %v1019
          %v1045 = vrsqrt.pop %v1020
          %v1046 = vrsqrt.pop %v1021
          %v1047 = vrsqrt.pop %v1022
          %v1048 = vrsqrt.pop %v1023
          %v1049 = vrsqrt.pop %v1024
          %v1050 = vrsqrt.pop %v1025
          %v1051 = vrsqrt.pop %v1026
          %v1052 = vrsqrt.pop %v1027
          %v1053 = vrsqrt.pop %v1028
          %v1054 = vrsqrt.pop %v1029
          %v1055 = vrsqrt.pop %v1030
          %v1056 = vsub.f32 %v548, %v728
          %v1057 = vsub.f32 %v549, %v728
          %v1058 = vsub.f32 %v550, %v728
          %v1059 = vsub.f32 %v551, %v729
          %v1060 = vsub.f32 %v552, %v729
          %v1061 = vsub.f32 %v553, %v729
          %v1062 = vsub.f32 %v554, %v730
          %v1063 = vsub.f32 %v555, %v730
          %v1064 = vsub.f32 %v556, %v730
          %v1065 = vsub.f32 %v557, %v731
          %v1066 = vsub.f32 %v558, %v731
          %v1067 = vsub.f32 %v559, %v731
          %v1068 = vsub.f32 %v560, %v732
          %v1069 = vsub.f32 %v561, %v732
          %v1070 = vsub.f32 %v562, %v732
          %v1071 = vsub.f32 %v563, %v733
          %v1072 = vsub.f32 %v564, %v733
          %v1073 = vsub.f32 %v565, %v733
          %v1074 = vsub.f32 %v566, %v734
          %v1075 = vsub.f32 %v567, %v734
          %v1076 = vsub.f32 %v568, %v734
          %v1077 = vsub.f32 %v569, %v735
          %v1078 = vsub.f32 %v570, %v735
          %v1079 = vsub.f32 %v571, %v735
          %v1080 = vsub.f32 %v572, %v736
          %v1081 = vsub.f32 %v573, %v736
          %v1082 = vsub.f32 %v574, %v736
          %v1083 = vsub.f32 %v575, %v737
          %v1084 = vsub.f32 %v576, %v737
          %v1085 = vsub.f32 %v577, %v737
          %v1086 = vsub.f32 %v578, %v738
          %v1087 = vsub.f32 %v579, %v738
          %v1088 = vsub.f32 %v580, %v738
          %v1089 = vsub.f32 %v581, %v739
          %v1090 = vsub.f32 %v582, %v739
          %v1091 = vsub.f32 %v583, %v739
          %v1092 = vsub.f32 %v584, %v740
          %v1093 = vsub.f32 %v585, %v740
          %v1094 = vsub.f32 %v586, %v740
          %v1095 = vsub.f32 %v587, %v741
          %v1096 = vsub.f32 %v588, %v741
          %v1097 = vsub.f32 %v589, %v741
          %v1098 = vsub.f32 %v590, %v742
          %v1099 = vsub.f32 %v591, %v742
          %v1100 = vsub.f32 %v592, %v742
          %v1101 = vsub.f32 %v593, %v743
          %v1102 = vsub.f32 %v594, %v743
          %v1103 = vsub.f32 %v595, %v743
          %v1104 = vsub.f32 %v596, %v744
          %v1105 = vsub.f32 %v597, %v744
          %v1106 = vsub.f32 %v598, %v744
          %v1107 = vsub.f32 %v599, %v745
          %v1108 = vsub.f32 %v600, %v745
          %v1109 = vsub.f32 %v601, %v745
          %v1110 = vsub.f32 %v602, %v746
          %v1111 = vsub.f32 %v603, %v746
          %v1112 = vsub.f32 %v604, %v746
          %v1113 = vsub.f32 %v605, %v747
          %v1114 = vsub.f32 %v606, %v747
          %v1115 = vsub.f32 %v607, %v747
          %v1116 = vsub.f32 %v608, %v748
          %v1117 = vsub.f32 %v609, %v748
          %v1118 = vsub.f32 %v610, %v748
          %v1119 = vsub.f32 %v611, %v749
          %v1120 = vsub.f32 %v612, %v749
          %v1121 = vsub.f32 %v613, %v749
          %v1122 = vsub.f32 %v614, %v750
          %v1123 = vsub.f32 %v615, %v750
          %v1124 = vsub.f32 %v616, %v750
          %v1125 = vsub.f32 %v617, %v751
          %v1126 = vsub.f32 %v618, %v751
          %v1127 = vsub.f32 %v619, %v751
          %v1128 = vsub.f32 %v620, %v752
          %v1129 = vsub.f32 %v621, %v752
          %v1130 = vsub.f32 %v622, %v752
          %v1131 = vmul.f32 %v1056, %v1031
          %v1132 = vmul.f32 %v1057, %v1031
          %v1133 = vmul.f32 %v1058, %v1031
          %v1134 = vmul.f32 %v1059, %v1032
          %v1135 = vmul.f32 %v1060, %v1032
          %v1136 = vmul.f32 %v1061, %v1032
          %v1137 = vmul.f32 %v1062, %v1033
          %v1138 = vmul.f32 %v1063, %v1033
          %v1139 = vmul.f32 %v1064, %v1033
          %v1140 = vmul.f32 %v1065, %v1034
          %v1141 = vmul.f32 %v1066, %v1034
          %v1142 = vmul.f32 %v1067, %v1034
          %v1143 = vmul.f32 %v1068, %v1035
          %v1144 = vmul.f32 %v1069, %v1035
          %v1145 = vmul.f32 %v1070, %v1035
          %v1146 = vmul.f32 %v1071, %v1036
          %v1147 = vmul.f32 %v1072, %v1036
          %v1148 = vmul.f32 %v1073, %v1036
          %v1149 = vmul.f32 %v1074, %v1037
          %v1150 = vmul.f32 %v1075, %v1037
          %v1151 = vmul.f32 %v1076, %v1037
          %v1152 = vmul.f32 %v1077, %v1038
          %v1153 = vmul.f32 %v1078, %v1038
          %v1154 = vmul.f32 %v1079, %v1038
          %v1155 = vmul.f32 %v1080, %v1039
          %v1156 = vmul.f32 %v1081, %v1039
          %v1157 = vmul.f32 %v1082, %v1039
          %v1158 = vmul.f32 %v1083, %v1040
          %v1159 = vmul.f32 %v1084, %v1040
          %v1160 = vmul.f32 %v1085, %v1040
          %v1161 = vmul.f32 %v1086, %v1041
          %v1162 = vmul.f32 %v1087, %v1041
          %v1163 = vmul.f32 %v1088, %v1041
          %v1164 = vmul.f32 %v1089, %v1042
          %v1165 = vmul.f32 %v1090, %v1042
          %v1166 = vmul.f32 %v1091, %v1042
          %v1167 = vmul.f32 %v1092, %v1043
          %v1168 = vmul.f32 %v1093, %v1043
          %v1169 = vmul.f32 %v1094, %v1043
          %v1170 = vmul.f32 %v1095, %v1044
          %v1171 = vmul.f32 %v1096, %v1044
          %v1172 = vmul.f32 %v1097, %v1044
          %v1173 = vmul.f32 %v1098, %v1045
          %v1174 = vmul.f32 %v1099, %v1045
          %v1175 = vmul.f32 %v1100, %v1045
          %v1176 = vmul.f32 %v1101, %v1046
          %v1177 = vmul.f32 %v1102, %v1046
          %v1178 = vmul.f32 %v1103, %v1046
          %v1179 = vmul.f32 %v1104, %v1047
          %v1180 = vmul.f32 %v1105, %v1047
          %v1181 = vmul.f32 %v1106, %v1047
          %v1182 = vmul.f32 %v1107, %v1048
          %v1183 = vmul.f32 %v1108, %v1048
          %v1184 = vmul.f32 %v1109, %v1048
          %v1185 = vmul.f32 %v1110, %v1049
          %v1186 = vmul.f32 %v1111, %v1049
          %v1187 = vmul.f32 %v1112, %v1049
          %v1188 = vmul.f32 %v1113, %v1050
          %v1189 = vmul.f32 %v1114, %v1050
          %v1190 = vmul.f32 %v1115, %v1050
          %v1191 = vmul.f32 %v1116, %v1051
          %v1192 = vmul.f32 %v1117, %v1051
          %v1193 = vmul.f32 %v1118, %v1051
          %v1194 = vmul.f32 %v1119, %v1052
          %v1195 = vmul.f32 %v1120, %v1052
          %v1196 = vmul.f32 %v1121, %v1052
          %v1197 = vmul.f32 %v1122, %v1053
          %v1198 = vmul.f32 %v1123, %v1053
          %v1199 = vmul.f32 %v1124, %v1053
          %v1200 = vmul.f32 %v1125, %v1054
          %v1201 = vmul.f32 %v1126, %v1054
          %v1202 = vmul.f32 %v1127, %v1054
          %v1203 = vmul.f32 %v1128, %v1055
          %v1204 = vmul.f32 %v1129, %v1055
          %v1205 = vmul.f32 %v1130, %v1055
          %v1206 = vld [vmem:[#allocation8] sm:$0x7]
          %v1208 = vlaneseq
          %v1209 = vshrl.u32 %v1208, 7
          %v1210 = vsub.s32 0, %v1209
          %v1211 = vrot.slane %v1206, %v1210
          %v1212 = vlaneseq
          %v1213 = vshrl.u32 %v1212, 7
          %v1214 = vsub.s32 1, %v1213
          %v1215 = vrot.slane %v1206, %v1214
          %v1216 = vlaneseq
          %v1217 = vshrl.u32 %v1216, 7
          %v1218 = vsub.s32 2, %v1217
          %v1219 = vrot.slane %v1206, %v1218
          %v1223 = vmul.f32 %v1131, %v1211
          %v1224 = vmul.f32 %v1132, %v1215
          %v1225 = vmul.f32 %v1133, %v1219
          %v1226 = vmul.f32 %v1134, %v1211
          %v1227 = vmul.f32 %v1135, %v1215
          %v1228 = vmul.f32 %v1136, %v1219
          %v1229 = vmul.f32 %v1137, %v1211
          %v1230 = vmul.f32 %v1138, %v1215
          %v1231 = vmul.f32 %v1139, %v1219
          %v1232 = vmul.f32 %v1140, %v1211
          %v1233 = vmul.f32 %v1141, %v1215
          %v1234 = vmul.f32 %v1142, %v1219
          %v1235 = vmul.f32 %v1143, %v1211
          %v1236 = vmul.f32 %v1144, %v1215
          %v1237 = vmul.f32 %v1145, %v1219
          %v1238 = vmul.f32 %v1146, %v1211
          %v1239 = vmul.f32 %v1147, %v1215
          %v1240 = vmul.f32 %v1148, %v1219
          %v1241 = vmul.f32 %v1149, %v1211
          %v1242 = vmul.f32 %v1150, %v1215
          %v1243 = vmul.f32 %v1151, %v1219
          %v1244 = vmul.f32 %v1152, %v1211
          %v1245 = vmul.f32 %v1153, %v1215
          %v1246 = vmul.f32 %v1154, %v1219
          %v1247 = vmul.f32 %v1155, %v1211
          %v1248 = vmul.f32 %v1156, %v1215
          %v1249 = vmul.f32 %v1157, %v1219
          %v1250 = vmul.f32 %v1158, %v1211
          %v1251 = vmul.f32 %v1159, %v1215
          %v1252 = vmul.f32 %v1160, %v1219
          %v1253 = vmul.f32 %v1161, %v1211
          %v1254 = vmul.f32 %v1162, %v1215
          %v1255 = vmul.f32 %v1163, %v1219
          %v1256 = vmul.f32 %v1164, %v1211
          %v1257 = vmul.f32 %v1165, %v1215
          %v1258 = vmul.f32 %v1166, %v1219
          %v1259 = vmul.f32 %v1167, %v1211
          %v1260 = vmul.f32 %v1168, %v1215
          %v1261 = vmul.f32 %v1169, %v1219
          %v1262 = vmul.f32 %v1170, %v1211
          %v1263 = vmul.f32 %v1171, %v1215
          %v1264 = vmul.f32 %v1172, %v1219
          %v1265 = vmul.f32 %v1173, %v1211
          %v1266 = vmul.f32 %v1174, %v1215
          %v1267 = vmul.f32 %v1175, %v1219
          %v1268 = vmul.f32 %v1176, %v1211
          %v1269 = vmul.f32 %v1177, %v1215
          %v1270 = vmul.f32 %v1178, %v1219
          %v1271 = vmul.f32 %v1179, %v1211
          %v1272 = vmul.f32 %v1180, %v1215
          %v1273 = vmul.f32 %v1181, %v1219
          %v1274 = vmul.f32 %v1182, %v1211
          %v1275 = vmul.f32 %v1183, %v1215
          %v1276 = vmul.f32 %v1184, %v1219
          %v1277 = vmul.f32 %v1185, %v1211
          %v1278 = vmul.f32 %v1186, %v1215
          %v1279 = vmul.f32 %v1187, %v1219
          %v1280 = vmul.f32 %v1188, %v1211
          %v1281 = vmul.f32 %v1189, %v1215
          %v1282 = vmul.f32 %v1190, %v1219
          %v1283 = vmul.f32 %v1191, %v1211
          %v1284 = vmul.f32 %v1192, %v1215
          %v1285 = vmul.f32 %v1193, %v1219
          %v1286 = vmul.f32 %v1194, %v1211
          %v1287 = vmul.f32 %v1195, %v1215
          %v1288 = vmul.f32 %v1196, %v1219
          %v1289 = vmul.f32 %v1197, %v1211
          %v1290 = vmul.f32 %v1198, %v1215
          %v1291 = vmul.f32 %v1199, %v1219
          %v1292 = vmul.f32 %v1200, %v1211
          %v1293 = vmul.f32 %v1201, %v1215
          %v1294 = vmul.f32 %v1202, %v1219
          %v1295 = vmul.f32 %v1203, %v1211
          %v1296 = vmul.f32 %v1204, %v1215
          %v1297 = vmul.f32 %v1205, %v1219
          %v1298 = vld [vmem:[#allocation9] sm:$0x7]
          %v1300 = vlaneseq
          %v1301 = vshrl.u32 %v1300, 7
          %v1302 = vsub.s32 0, %v1301
          %v1303 = vrot.slane %v1298, %v1302
          %v1304 = vlaneseq
          %v1305 = vshrl.u32 %v1304, 7
          %v1306 = vsub.s32 1, %v1305
          %v1307 = vrot.slane %v1298, %v1306
          %v1308 = vlaneseq
          %v1309 = vshrl.u32 %v1308, 7
          %v1310 = vsub.s32 2, %v1309
          %v1311 = vrot.slane %v1298, %v1310
          %v1315 = vadd.f32 %v1223, %v1303
          %v1316 = vadd.f32 %v1224, %v1307
          %v1317 = vadd.f32 %v1225, %v1311
          %v1318 = vadd.f32 %v1226, %v1303
          %v1319 = vadd.f32 %v1227, %v1307
          %v1320 = vadd.f32 %v1228, %v1311
          %v1321 = vadd.f32 %v1229, %v1303
          %v1322 = vadd.f32 %v1230, %v1307
          %v1323 = vadd.f32 %v1231, %v1311
          %v1324 = vadd.f32 %v1232, %v1303
          %v1325 = vadd.f32 %v1233, %v1307
          %v1326 = vadd.f32 %v1234, %v1311
          %v1327 = vadd.f32 %v1235, %v1303
          %v1328 = vadd.f32 %v1236, %v1307
          %v1329 = vadd.f32 %v1237, %v1311
          %v1330 = vadd.f32 %v1238, %v1303
          %v1331 = vadd.f32 %v1239, %v1307
          %v1332 = vadd.f32 %v1240, %v1311
          %v1333 = vadd.f32 %v1241, %v1303
          %v1334 = vadd.f32 %v1242, %v1307
          %v1335 = vadd.f32 %v1243, %v1311
          %v1336 = vadd.f32 %v1244, %v1303
          %v1337 = vadd.f32 %v1245, %v1307
          %v1338 = vadd.f32 %v1246, %v1311
          %v1339 = vadd.f32 %v1247, %v1303
          %v1340 = vadd.f32 %v1248, %v1307
          %v1341 = vadd.f32 %v1249, %v1311
          %v1342 = vadd.f32 %v1250, %v1303
          %v1343 = vadd.f32 %v1251, %v1307
          %v1344 = vadd.f32 %v1252, %v1311
          %v1345 = vadd.f32 %v1253, %v1303
          %v1346 = vadd.f32 %v1254, %v1307
          %v1347 = vadd.f32 %v1255, %v1311
          %v1348 = vadd.f32 %v1256, %v1303
          %v1349 = vadd.f32 %v1257, %v1307
          %v1350 = vadd.f32 %v1258, %v1311
          %v1351 = vadd.f32 %v1259, %v1303
          %v1352 = vadd.f32 %v1260, %v1307
          %v1353 = vadd.f32 %v1261, %v1311
          %v1354 = vadd.f32 %v1262, %v1303
          %v1355 = vadd.f32 %v1263, %v1307
          %v1356 = vadd.f32 %v1264, %v1311
          %v1357 = vadd.f32 %v1265, %v1303
          %v1358 = vadd.f32 %v1266, %v1307
          %v1359 = vadd.f32 %v1267, %v1311
          %v1360 = vadd.f32 %v1268, %v1303
          %v1361 = vadd.f32 %v1269, %v1307
          %v1362 = vadd.f32 %v1270, %v1311
          %v1363 = vadd.f32 %v1271, %v1303
          %v1364 = vadd.f32 %v1272, %v1307
          %v1365 = vadd.f32 %v1273, %v1311
          %v1366 = vadd.f32 %v1274, %v1303
          %v1367 = vadd.f32 %v1275, %v1307
          %v1368 = vadd.f32 %v1276, %v1311
          %v1369 = vadd.f32 %v1277, %v1303
          %v1370 = vadd.f32 %v1278, %v1307
          %v1371 = vadd.f32 %v1279, %v1311
          %v1372 = vadd.f32 %v1280, %v1303
          %v1373 = vadd.f32 %v1281, %v1307
          %v1374 = vadd.f32 %v1282, %v1311
          %v1375 = vadd.f32 %v1283, %v1303
          %v1376 = vadd.f32 %v1284, %v1307
          %v1377 = vadd.f32 %v1285, %v1311
          %v1378 = vadd.f32 %v1286, %v1303
          %v1379 = vadd.f32 %v1287, %v1307
          %v1380 = vadd.f32 %v1288, %v1311
          %v1381 = vadd.f32 %v1289, %v1303
          %v1382 = vadd.f32 %v1290, %v1307
          %v1383 = vadd.f32 %v1291, %v1311
          %v1384 = vadd.f32 %v1292, %v1303
          %v1385 = vadd.f32 %v1293, %v1307
          %v1386 = vadd.f32 %v1294, %v1311
          %v1387 = vadd.f32 %v1295, %v1303
          %v1388 = vadd.f32 %v1296, %v1307
          %v1389 = vadd.f32 %v1297, %v1311
          %v1390 = vpack.c.bf16 %v1318, %v1315
          %v1391 = vpack.c.bf16 %v1319, %v1316
          %v1392 = vpack.c.bf16 %v1320, %v1317
          %v1393 = vpack.c.bf16 %v1324, %v1321
          %v1394 = vpack.c.bf16 %v1325, %v1322
          %v1395 = vpack.c.bf16 %v1326, %v1323
          %v1396 = vpack.c.bf16 %v1330, %v1327
          %v1397 = vpack.c.bf16 %v1331, %v1328
          %v1398 = vpack.c.bf16 %v1332, %v1329
          %v1399 = vpack.c.bf16 %v1336, %v1333
          %v1400 = vpack.c.bf16 %v1337, %v1334
          %v1401 = vpack.c.bf16 %v1338, %v1335
          %v1402 = vpack.c.bf16 %v1342, %v1339
          %v1403 = vpack.c.bf16 %v1343, %v1340
          %v1404 = vpack.c.bf16 %v1344, %v1341
          %v1405 = vpack.c.bf16 %v1348, %v1345
          %v1406 = vpack.c.bf16 %v1349, %v1346
          %v1407 = vpack.c.bf16 %v1350, %v1347
          %v1408 = vpack.c.bf16 %v1354, %v1351
          %v1409 = vpack.c.bf16 %v1355, %v1352
          %v1410 = vpack.c.bf16 %v1356, %v1353
          %v1411 = vpack.c.bf16 %v1360, %v1357
          %v1412 = vpack.c.bf16 %v1361, %v1358
          %v1413 = vpack.c.bf16 %v1362, %v1359
          %v1414 = vpack.c.bf16 %v1366, %v1363
          %v1415 = vpack.c.bf16 %v1367, %v1364
          %v1416 = vpack.c.bf16 %v1368, %v1365
          %v1417 = vpack.c.bf16 %v1372, %v1369
          %v1418 = vpack.c.bf16 %v1373, %v1370
          %v1419 = vpack.c.bf16 %v1374, %v1371
          %v1420 = vpack.c.bf16 %v1378, %v1375
          %v1421 = vpack.c.bf16 %v1379, %v1376
          %v1422 = vpack.c.bf16 %v1380, %v1377
          %v1423 = vpack.c.bf16 %v1384, %v1381
          %v1424 = vpack.c.bf16 %v1385, %v1382
          %v1425 = vpack.c.bf16 %v1386, %v1383
          %v1426 = vpack.c.bf16 %v1387, %v1387
          %v1427 = vpack.c.bf16 %v1388, %v1388
          %v1428 = vpack.c.bf16 %v1389, %v1389
          %v1468 = vunpack.c.l.b16 %v1390
          %v1469 = vunpack.c.l.b16 %v1391
          %v1470 = vunpack.c.l.b16 %v1392
          %v1471 = vunpack.c.h.b16 %v1390
          %v1472 = vunpack.c.h.b16 %v1391
          %v1473 = vunpack.c.h.b16 %v1392
          %v1474 = vunpack.c.l.b16 %v1393
          %v1475 = vunpack.c.l.b16 %v1394
          %v1476 = vunpack.c.l.b16 %v1395
          %v1477 = vunpack.c.h.b16 %v1393
          %v1478 = vunpack.c.h.b16 %v1394
          %v1479 = vunpack.c.h.b16 %v1395
          %v1480 = vunpack.c.l.b16 %v1396
          %v1481 = vunpack.c.l.b16 %v1397
          %v1482 = vunpack.c.l.b16 %v1398
          %v1483 = vunpack.c.h.b16 %v1396
          %v1484 = vunpack.c.h.b16 %v1397
          %v1485 = vunpack.c.h.b16 %v1398
          %v1486 = vunpack.c.l.b16 %v1399
          %v1487 = vunpack.c.l.b16 %v1400
          %v1488 = vunpack.c.l.b16 %v1401
          %v1489 = vunpack.c.h.b16 %v1399
          %v1490 = vunpack.c.h.b16 %v1400
          %v1491 = vunpack.c.h.b16 %v1401
          %v1492 = vunpack.c.l.b16 %v1402
          %v1493 = vunpack.c.l.b16 %v1403
          %v1494 = vunpack.c.l.b16 %v1404
          %v1495 = vunpack.c.h.b16 %v1402
          %v1496 = vunpack.c.h.b16 %v1403
          %v1497 = vunpack.c.h.b16 %v1404
          %v1498 = vunpack.c.l.b16 %v1405
          %v1499 = vunpack.c.l.b16 %v1406
          %v1500 = vunpack.c.l.b16 %v1407
          %v1501 = vunpack.c.h.b16 %v1405
          %v1502 = vunpack.c.h.b16 %v1406
          %v1503 = vunpack.c.h.b16 %v1407
          %v1504 = vunpack.c.l.b16 %v1408
          %v1505 = vunpack.c.l.b16 %v1409
          %v1506 = vunpack.c.l.b16 %v1410
          %v1507 = vunpack.c.h.b16 %v1408
          %v1508 = vunpack.c.h.b16 %v1409
          %v1509 = vunpack.c.h.b16 %v1410
          %v1510 = vunpack.c.l.b16 %v1411
          %v1511 = vunpack.c.l.b16 %v1412
          %v1512 = vunpack.c.l.b16 %v1413
          %v1513 = vunpack.c.h.b16 %v1411
          %v1514 = vunpack.c.h.b16 %v1412
          %v1515 = vunpack.c.h.b16 %v1413
          %v1516 = vunpack.c.l.b16 %v1414
          %v1517 = vunpack.c.l.b16 %v1415
          %v1518 = vunpack.c.l.b16 %v1416
          %v1519 = vunpack.c.h.b16 %v1414
          %v1520 = vunpack.c.h.b16 %v1415
          %v1521 = vunpack.c.h.b16 %v1416
          %v1522 = vunpack.c.l.b16 %v1417
          %v1523 = vunpack.c.l.b16 %v1418
          %v1524 = vunpack.c.l.b16 %v1419
          %v1525 = vunpack.c.h.b16 %v1417
          %v1526 = vunpack.c.h.b16 %v1418
          %v1527 = vunpack.c.h.b16 %v1419
          %v1528 = vunpack.c.l.b16 %v1420
          %v1529 = vunpack.c.l.b16 %v1421
          %v1530 = vunpack.c.l.b16 %v1422
          %v1531 = vunpack.c.h.b16 %v1420
          %v1532 = vunpack.c.h.b16 %v1421
          %v1533 = vunpack.c.h.b16 %v1422
          %v1534 = vunpack.c.l.b16 %v1423
          %v1535 = vunpack.c.l.b16 %v1424
          %v1536 = vunpack.c.l.b16 %v1425
          %v1537 = vunpack.c.h.b16 %v1423
          %v1538 = vunpack.c.h.b16 %v1424
          %v1539 = vunpack.c.h.b16 %v1425
          %v1540 = vunpack.c.l.b16 %v1426
          %v1541 = vunpack.c.l.b16 %v1427
          %v1542 = vunpack.c.l.b16 %v1428
          %v1543 = vpack.c.b16 %v1469, %v1468
          %v1544 = vpack.c.b16 %v1470, %v1470
          %v1545 = vpack.c.b16 %v1472, %v1471
          %v1546 = vpack.c.b16 %v1473, %v1473
          %v1547 = vpack.c.b16 %v1475, %v1474
          %v1548 = vpack.c.b16 %v1476, %v1476
          %v1549 = vpack.c.b16 %v1478, %v1477
          %v1550 = vpack.c.b16 %v1479, %v1479
          %v1551 = vpack.c.b16 %v1481, %v1480
          %v1552 = vpack.c.b16 %v1482, %v1482
          %v1553 = vpack.c.b16 %v1484, %v1483
          %v1554 = vpack.c.b16 %v1485, %v1485
          %v1555 = vpack.c.b16 %v1487, %v1486
          %v1556 = vpack.c.b16 %v1488, %v1488
          %v1557 = vpack.c.b16 %v1490, %v1489
          %v1558 = vpack.c.b16 %v1491, %v1491
          %v1559 = vpack.c.b16 %v1493, %v1492
          %v1560 = vpack.c.b16 %v1494, %v1494
          %v1561 = vpack.c.b16 %v1496, %v1495
          %v1562 = vpack.c.b16 %v1497, %v1497
          %v1563 = vpack.c.b16 %v1499, %v1498
          %v1564 = vpack.c.b16 %v1500, %v1500
          %v1565 = vpack.c.b16 %v1502, %v1501
          %v1566 = vpack.c.b16 %v1503, %v1503
          %v1567 = vpack.c.b16 %v1505, %v1504
          %v1568 = vpack.c.b16 %v1506, %v1506
          %v1569 = vpack.c.b16 %v1508, %v1507
          %v1570 = vpack.c.b16 %v1509, %v1509
          %v1571 = vpack.c.b16 %v1511, %v1510
          %v1572 = vpack.c.b16 %v1512, %v1512
          %v1573 = vpack.c.b16 %v1514, %v1513
          %v1574 = vpack.c.b16 %v1515, %v1515
          %v1575 = vpack.c.b16 %v1517, %v1516
          %v1576 = vpack.c.b16 %v1518, %v1518
          %v1577 = vpack.c.b16 %v1520, %v1519
          %v1578 = vpack.c.b16 %v1521, %v1521
          %v1579 = vpack.c.b16 %v1523, %v1522
          %v1580 = vpack.c.b16 %v1524, %v1524
          %v1581 = vpack.c.b16 %v1526, %v1525
          %v1582 = vpack.c.b16 %v1527, %v1527
          %v1583 = vpack.c.b16 %v1529, %v1528
          %v1584 = vpack.c.b16 %v1530, %v1530
          %v1585 = vpack.c.b16 %v1532, %v1531
          %v1586 = vpack.c.b16 %v1533, %v1533
          %v1587 = vpack.c.b16 %v1535, %v1534
          %v1588 = vpack.c.b16 %v1536, %v1536
          %v1589 = vpack.c.b16 %v1538, %v1537
          %v1590 = vpack.c.b16 %v1539, %v1539
          %v1591 = vpack.c.b16 %v1541, %v1540
          %v1592 = vpack.c.b16 %v1542, %v1542
          %1643 = vst [vmem:[#allocation2] sm:$0xff] %v1543
          %1644 = vst [vmem:[#allocation2 + $0x8] sm:$0xf] %v1544
          %1645 = vst [vmem:[#allocation2 + $0xc] sm:$0xff] %v1545
          %1646 = vst [vmem:[#allocation2 + $0x14] sm:$0xf] %v1546
          %1647 = vst [vmem:[#allocation2 + $0x18] sm:$0xff] %v1547
          %1648 = vst [vmem:[#allocation2 + $0x20] sm:$0xf] %v1548
          %1649 = vst [vmem:[#allocation2 + $0x24] sm:$0xff] %v1549
          %1650 = vst [vmem:[#allocation2 + $0x2c] sm:$0xf] %v1550
          %1651 = vst [vmem:[#allocation2 + $0x30] sm:$0xff] %v1551
          %1652 = vst [vmem:[#allocation2 + $0x38] sm:$0xf] %v1552
          %1653 = vst [vmem:[#allocation2 + $0x3c] sm:$0xff] %v1553
          %1654 = vst [vmem:[#allocation2 + $0x44] sm:$0xf] %v1554
          %1655 = vst [vmem:[#allocation2 + $0x48] sm:$0xff] %v1555
          %1656 = vst [vmem:[#allocation2 + $0x50] sm:$0xf] %v1556
          %1657 = vst [vmem:[#allocation2 + $0x54] sm:$0xff] %v1557
          %1658 = vst [vmem:[#allocation2 + $0x5c] sm:$0xf] %v1558
          %1659 = vst [vmem:[#allocation2 + $0x60] sm:$0xff] %v1559
          %1660 = vst [vmem:[#allocation2 + $0x68] sm:$0xf] %v1560
          %1661 = vst [vmem:[#allocation2 + $0x6c] sm:$0xff] %v1561
          %1662 = vst [vmem:[#allocation2 + $0x74] sm:$0xf] %v1562
          %1663 = vst [vmem:[#allocation2 + $0x78] sm:$0xff] %v1563
          %1664 = vst [vmem:[#allocation2 + $0x80] sm:$0xf] %v1564
          %1665 = vst [vmem:[#allocation2 + $0x84] sm:$0xff] %v1565
          %1666 = vst [vmem:[#allocation2 + $0x8c] sm:$0xf] %v1566
          %1667 = vst [vmem:[#allocation2 + $0x90] sm:$0xff] %v1567
          %1668 = vst [vmem:[#allocation2 + $0x98] sm:$0xf] %v1568
          %1669 = vst [vmem:[#allocation2 + $0x9c] sm:$0xff] %v1569
          %1670 = vst [vmem:[#allocation2 + $0xa4] sm:$0xf] %v1570
          %1671 = vst [vmem:[#allocation2 + $0xa8] sm:$0xff] %v1571
          %1672 = vst [vmem:[#allocation2 + $0xb0] sm:$0xf] %v1572
          %1673 = vst [vmem:[#allocation2 + $0xb4] sm:$0xff] %v1573
          %1674 = vst [vmem:[#allocation2 + $0xbc] sm:$0xf] %v1574
          %1675 = vst [vmem:[#allocation2 + $0xc0] sm:$0xff] %v1575
          %1676 = vst [vmem:[#allocation2 + $0xc8] sm:$0xf] %v1576
          %1677 = vst [vmem:[#allocation2 + $0xcc] sm:$0xff] %v1577
          %1678 = vst [vmem:[#allocation2 + $0xd4] sm:$0xf] %v1578
          %1679 = vst [vmem:[#allocation2 + $0xd8] sm:$0xff] %v1579
          %1680 = vst [vmem:[#allocation2 + $0xe0] sm:$0xf] %v1580
          %1681 = vst [vmem:[#allocation2 + $0xe4] sm:$0xff] %v1581
          %1682 = vst [vmem:[#allocation2 + $0xec] sm:$0xf] %v1582
          %1683 = vst [vmem:[#allocation2 + $0xf0] sm:$0xff] %v1583
          %1684 = vst [vmem:[#allocation2 + $0xf8] sm:$0xf] %v1584
          %1685 = vst [vmem:[#allocation2 + $0xfc] sm:$0xff] %v1585
          %1686 = vst [vmem:[#allocation2 + $0x104] sm:$0xf] %v1586
          %1687 = vst [vmem:[#allocation2 + $0x108] sm:$0xff] %v1587
          %1688 = vst [vmem:[#allocation2 + $0x110] sm:$0xf] %v1588
          %1689 = vst [vmem:[#allocation2 + $0x114] sm:$0xff] %v1589
          %1690 = vst [vmem:[#allocation2 + $0x11c] sm:$0xf] %v1590
          %1691 = vst [vmem:[#allocation2 + $0x120] sm:$0x33] %v1591
          %1692 = vst [vmem:[#allocation2 + $0x128] sm:$0x3] %v1592
        $region72: #{tpu_custom_call.1} parent=43 // pred_fallthru
          _
        %v1693 = vld [vmem:[#allocation2] sm:$0xff]
        %v1694 = vld [vmem:[#allocation2 + $0x8] sm:$0xf]
        %v1695 = vld [vmem:[#allocation2 + $0xc] sm:$0xff]
        %v1696 = vld [vmem:[#allocation2 + $0x14] sm:$0xf]
        %v1697 = vld [vmem:[#allocation2 + $0x18] sm:$0xff]
        %v1698 = vld [vmem:[#allocation2 + $0x20] sm:$0xf]
        %v1699 = vld [vmem:[#allocation2 + $0x24] sm:$0xff]
        %v1700 = vld [vmem:[#allocation2 + $0x2c] sm:$0xf]
        %v1701 = vld [vmem:[#allocation2 + $0x30] sm:$0xff]
        %v1702 = vld [vmem:[#allocation2 + $0x38] sm:$0xf]
        %v1703 = vld [vmem:[#allocation2 + $0x3c] sm:$0xff]
        %v1704 = vld [vmem:[#allocation2 + $0x44] sm:$0xf]
        %v1705 = vld [vmem:[#allocation2 + $0x48] sm:$0xff]
        %v1706 = vld [vmem:[#allocation2 + $0x50] sm:$0xf]
        %v1707 = vld [vmem:[#allocation2 + $0x54] sm:$0xff]
        %v1708 = vld [vmem:[#allocation2 + $0x5c] sm:$0xf]
        %v1709 = vld [vmem:[#allocation2 + $0x60] sm:$0xff]
        %v1710 = vld [vmem:[#allocation2 + $0x68] sm:$0xf]
        %v1711 = vld [vmem:[#allocation2 + $0x6c] sm:$0xff]
        %v1712 = vld [vmem:[#allocation2 + $0x74] sm:$0xf]
        %v1713 = vld [vmem:[#allocation2 + $0x78] sm:$0xff]
        %v1714 = vld [vmem:[#allocation2 + $0x80] sm:$0xf]
        %v1715 = vld [vmem:[#allocation2 + $0x84] sm:$0xff]
        %v1716 = vld [vmem:[#allocation2 + $0x8c] sm:$0xf]
        %v1717 = vld [vmem:[#allocation2 + $0x90] sm:$0xff]
        %v1718 = vld [vmem:[#allocation2 + $0x98] sm:$0xf]
        %v1719 = vld [vmem:[#allocation2 + $0x9c] sm:$0xff]
        %v1720 = vld [vmem:[#allocation2 + $0xa4] sm:$0xf]
        %v1721 = vld [vmem:[#allocation2 + $0xa8] sm:$0xff]
        %v1722 = vld [vmem:[#allocation2 + $0xb0] sm:$0xf]
        %v1723 = vld [vmem:[#allocation2 + $0xb4] sm:$0xff]
        %v1724 = vld [vmem:[#allocation2 + $0xbc] sm:$0xf]
        %v1725 = vld [vmem:[#allocation2 + $0xc0] sm:$0xff]
        %v1726 = vld [vmem:[#allocation2 + $0xc8] sm:$0xf]
        %v1727 = vld [vmem:[#allocation2 + $0xcc] sm:$0xff]
        %v1728 = vld [vmem:[#allocation2 + $0xd4] sm:$0xf]
        %v1729 = vld [vmem:[#allocation2 + $0xd8] sm:$0xff]
        %v1730 = vld [vmem:[#allocation2 + $0xe0] sm:$0xf]
        %v1731 = vld [vmem:[#allocation2 + $0xe4] sm:$0xff]
        %v1732 = vld [vmem:[#allocation2 + $0xec] sm:$0xf]
        %v1733 = vld [vmem:[#allocation2 + $0xf0] sm:$0xff]
        %v1734 = vld [vmem:[#allocation2 + $0xf8] sm:$0xf]
        %v1735 = vld [vmem:[#allocation2 + $0xfc] sm:$0xff]
        %v1736 = vld [vmem:[#allocation2 + $0x104] sm:$0xf]
        %v1737 = vld [vmem:[#allocation2 + $0x108] sm:$0xff]
        %v1738 = vld [vmem:[#allocation2 + $0x110] sm:$0xf]
        %v1739 = vld [vmem:[#allocation2 + $0x114] sm:$0xff]
        %v1740 = vld [vmem:[#allocation2 + $0x11c] sm:$0xf]
        %v1741 = vld [vmem:[#allocation2 + $0x120] sm:$0x33]
        %v1742 = vld [vmem:[#allocation2 + $0x128] sm:$0x3]
        %v1743 = vld [vmem:[%s342] sm:$0xff]
        %v1744 = vld [vmem:[%s342 + $0x8] sm:$0xf]
        %v1745 = vld [vmem:[%s342 + $0xc] sm:$0xff]
        %v1746 = vld [vmem:[%s342 + $0x14] sm:$0xf]
        %v1747 = vld [vmem:[%s342 + $0x18] sm:$0xff]
        %v1748 = vld [vmem:[%s342 + $0x20] sm:$0xf]
        %v1749 = vld [vmem:[%s342 + $0x24] sm:$0xff]
        %v1750 = vld [vmem:[%s342 + $0x2c] sm:$0xf]
        %v1751 = vld [vmem:[%s342 + $0x30] sm:$0xff]
        %v1752 = vld [vmem:[%s342 + $0x38] sm:$0xf]
        %v1753 = vld [vmem:[%s342 + $0x3c] sm:$0xff]
        %v1754 = vld [vmem:[%s342 + $0x44] sm:$0xf]
        %v1755 = vld [vmem:[%s342 + $0x48] sm:$0xff]
        %v1756 = vld [vmem:[%s342 + $0x50] sm:$0xf]
        %v1757 = vld [vmem:[%s342 + $0x54] sm:$0xff]
        %v1758 = vld [vmem:[%s342 + $0x5c] sm:$0xf]
        %v1759 = vld [vmem:[%s342 + $0x60] sm:$0xff]
        %v1760 = vld [vmem:[%s342 + $0x68] sm:$0xf]
        %v1761 = vld [vmem:[%s342 + $0x6c] sm:$0xff]
        %v1762 = vld [vmem:[%s342 + $0x74] sm:$0xf]
        %v1763 = vld [vmem:[%s342 + $0x78] sm:$0xff]
        %v1764 = vld [vmem:[%s342 + $0x80] sm:$0xf]
        %v1765 = vld [vmem:[%s342 + $0x84] sm:$0xff]
        %v1766 = vld [vmem:[%s342 + $0x8c] sm:$0xf]
        %v1767 = vld [vmem:[%s342 + $0x90] sm:$0xff]
        %v1768 = vld [vmem:[%s342 + $0x98] sm:$0xf]
        %v1769 = vld [vmem:[%s342 + $0x9c] sm:$0xff]
        %v1770 = vld [vmem:[%s342 + $0xa4] sm:$0xf]
        %v1771 = vld [vmem:[%s342 + $0xa8] sm:$0xff]
        %v1772 = vld [vmem:[%s342 + $0xb0] sm:$0xf]
        %v1773 = vld [vmem:[%s342 + $0xb4] sm:$0xff]
        %v1774 = vld [vmem:[%s342 + $0xbc] sm:$0xf]
        %v1775 = vld [vmem:[%s342 + $0xc0] sm:$0xff]
        %v1776 = vld [vmem:[%s342 + $0xc8] sm:$0xf]
        %v1777 = vld [vmem:[%s342 + $0xcc] sm:$0xff]
        %v1778 = vld [vmem:[%s342 + $0xd4] sm:$0xf]
        %v1779 = vld [vmem:[%s342 + $0xd8] sm:$0xff]
        %v1780 = vld [vmem:[%s342 + $0xe0] sm:$0xf]
        %v1781 = vld [vmem:[%s342 + $0xe4] sm:$0xff]
        %v1782 = vld [vmem:[%s342 + $0xec] sm:$0xf]
        %v1783 = vld [vmem:[%s342 + $0xf0] sm:$0xff]
        %v1784 = vld [vmem:[%s342 + $0xf8] sm:$0xf]
        %v1785 = vld [vmem:[%s342 + $0xfc] sm:$0xff]
        %v1786 = vld [vmem:[%s342 + $0x104] sm:$0xf]
        %v1787 = vld [vmem:[%s342 + $0x108] sm:$0xff]
        %v1788 = vld [vmem:[%s342 + $0x110] sm:$0xf]
        %v1789 = vld [vmem:[%s342 + $0x114] sm:$0xff]
        %v1790 = vld [vmem:[%s342 + $0x11c] sm:$0xf]
        %v1791 = vld [vmem:[%s342 + $0x120] sm:$0xff]
        %v1792 = vld [vmem:[%s342 + $0x128] sm:$0xf]
        %v1793 = vld [vmem:[%s342 + $0x12c] sm:$0xff]
        %v1794 = vld [vmem:[%s342 + $0x134] sm:$0xf]
        %v1795 = vld [vmem:[%s342 + $0x138] sm:$0xff]
        %v1796 = vld [vmem:[%s342 + $0x140] sm:$0xf]
        %v1797 = vld [vmem:[%s342 + $0x144] sm:$0xff]
        %v1798 = vld [vmem:[%s342 + $0x14c] sm:$0xf]
        %v1799 = vld [vmem:[%s342 + $0x150] sm:$0xff]
        %v1800 = vld [vmem:[%s342 + $0x158] sm:$0xf]
        %v1801 = vld [vmem:[%s342 + $0x15c] sm:$0xff]
        %v1802 = vld [vmem:[%s342 + $0x164] sm:$0xf]
        %v1803 = vld [vmem:[%s342 + $0x168] sm:$0xff]
        %v1804 = vld [vmem:[%s342 + $0x170] sm:$0xf]
        %v1805 = vld [vmem:[%s342 + $0x174] sm:$0xff]
        %v1806 = vld [vmem:[%s342 + $0x17c] sm:$0xf]
        %v1807 = vld [vmem:[%s342 + $0x180] sm:$0xff]
        %v1808 = vld [vmem:[%s342 + $0x188] sm:$0xf]
        %v1809 = vld [vmem:[%s342 + $0x18c] sm:$0xff]
        %v1810 = vld [vmem:[%s342 + $0x194] sm:$0xf]
        %v1811 = vld [vmem:[%s342 + $0x198] sm:$0xff]
        %v1812 = vld [vmem:[%s342 + $0x1a0] sm:$0xf]
        %v1813 = vld [vmem:[%s342 + $0x1a4] sm:$0xff]
        %v1814 = vld [vmem:[%s342 + $0x1ac] sm:$0xf]
        %v1815 = vld [vmem:[%s342 + $0x1b0] sm:$0xff]
        %v1816 = vld [vmem:[%s342 + $0x1b8] sm:$0xf]
        %v1817 = vld [vmem:[%s342 + $0x1bc] sm:$0xff]
        %v1818 = vld [vmem:[%s342 + $0x1c4] sm:$0xf]
        %v1819 = vld [vmem:[%s342 + $0x1c8] sm:$0xff]
        %v1820 = vld [vmem:[%s342 + $0x1d0] sm:$0xf]
        %v1821 = vld [vmem:[%s342 + $0x1d4] sm:$0xff]
        %v1822 = vld [vmem:[%s342 + $0x1dc] sm:$0xf]
        %v1823 = vld [vmem:[%s342 + $0x1e0] sm:$0xff]
        %v1824 = vld [vmem:[%s342 + $0x1e8] sm:$0xf]
        %v1825 = vld [vmem:[%s342 + $0x1ec] sm:$0xff]
        %v1826 = vld [vmem:[%s342 + $0x1f4] sm:$0xf]
        %v1827 = vld [vmem:[%s342 + $0x1f8] sm:$0xff]
        %v1828 = vld [vmem:[%s342 + $0x200] sm:$0xf]
        %v1829 = vld [vmem:[%s342 + $0x204] sm:$0xff]
        %v1830 = vld [vmem:[%s342 + $0x20c] sm:$0xf]
        %v1831 = vld [vmem:[%s342 + $0x210] sm:$0xff]
        %v1832 = vld [vmem:[%s342 + $0x218] sm:$0xf]
        %v1833 = vld [vmem:[%s342 + $0x21c] sm:$0xff]
        %v1834 = vld [vmem:[%s342 + $0x224] sm:$0xf]
        %v1835 = vld [vmem:[%s342 + $0x228] sm:$0xff]
        %v1836 = vld [vmem:[%s342 + $0x230] sm:$0xf]
        %v1837 = vld [vmem:[%s342 + $0x234] sm:$0xff]
        %v1838 = vld [vmem:[%s342 + $0x23c] sm:$0xf]
        %v1839 = vld [vmem:[%s351] sm:$0x7]
        %v1841 = vlaneseq
        %v1842 = vshrl.u32 %v1841, 7
        %v1843 = vsub.s32 0, %v1842
        %v1844 = vrot.slane %v1839, %v1843
        %v1845 = vlaneseq
        %v1846 = vshrl.u32 %v1845, 7
        %v1847 = vsub.s32 1, %v1846
        %v1848 = vrot.slane %v1839, %v1847
        %v1849 = vlaneseq
        %v1850 = vshrl.u32 %v1849, 7
        %v1851 = vsub.s32 2, %v1850
        %v1852 = vrot.slane %v1839, %v1851
        %v1906 = vunpack.c.l.b16 %v1693
        %v1907 = vunpack.c.h.b16 %v1693
        %v1908 = vunpack.c.l.b16 %v1694
        %v1909 = vunpack.c.l.b16 %v1695
        %v1910 = vunpack.c.h.b16 %v1695
        %v1911 = vunpack.c.l.b16 %v1696
        %v1912 = vunpack.c.l.b16 %v1697
        %v1913 = vunpack.c.h.b16 %v1697
        %v1914 = vunpack.c.l.b16 %v1698
        %v1915 = vunpack.c.l.b16 %v1699
        %v1916 = vunpack.c.h.b16 %v1699
        %v1917 = vunpack.c.l.b16 %v1700
        %v1918 = vunpack.c.l.b16 %v1701
        %v1919 = vunpack.c.h.b16 %v1701
        %v1920 = vunpack.c.l.b16 %v1702
        %v1921 = vunpack.c.l.b16 %v1703
        %v1922 = vunpack.c.h.b16 %v1703
        %v1923 = vunpack.c.l.b16 %v1704
        %v1924 = vunpack.c.l.b16 %v1705
        %v1925 = vunpack.c.h.b16 %v1705
        %v1926 = vunpack.c.l.b16 %v1706
        %v1927 = vunpack.c.l.b16 %v1707
        %v1928 = vunpack.c.h.b16 %v1707
        %v1929 = vunpack.c.l.b16 %v1708
        %v1930 = vunpack.c.l.b16 %v1709
        %v1931 = vunpack.c.h.b16 %v1709
        %v1932 = vunpack.c.l.b16 %v1710
        %v1933 = vunpack.c.l.b16 %v1711
        %v1934 = vunpack.c.h.b16 %v1711
        %v1935 = vunpack.c.l.b16 %v1712
        %v1936 = vunpack.c.l.b16 %v1713
        %v1937 = vunpack.c.h.b16 %v1713
        %v1938 = vunpack.c.l.b16 %v1714
        %v1939 = vunpack.c.l.b16 %v1715
        %v1940 = vunpack.c.h.b16 %v1715
        %v1941 = vunpack.c.l.b16 %v1716
        %v1942 = vunpack.c.l.b16 %v1717
        %v1943 = vunpack.c.h.b16 %v1717
        %v1944 = vunpack.c.l.b16 %v1718
        %v1945 = vunpack.c.l.b16 %v1719
        %v1946 = vunpack.c.h.b16 %v1719
        %v1947 = vunpack.c.l.b16 %v1720
        %v1948 = vunpack.c.l.b16 %v1721
        %v1949 = vunpack.c.h.b16 %v1721
        %v1950 = vunpack.c.l.b16 %v1722
        %v1951 = vunpack.c.l.b16 %v1723
        %v1952 = vunpack.c.h.b16 %v1723
        %v1953 = vunpack.c.l.b16 %v1724
        %v1954 = vunpack.c.l.b16 %v1725
        %v1955 = vunpack.c.h.b16 %v1725
        %v1956 = vunpack.c.l.b16 %v1726
        %v1957 = vunpack.c.l.b16 %v1727
        %v1958 = vunpack.c.h.b16 %v1727
        %v1959 = vunpack.c.l.b16 %v1728
        %v1960 = vunpack.c.l.b16 %v1729
        %v1961 = vunpack.c.h.b16 %v1729
        %v1962 = vunpack.c.l.b16 %v1730
        %v1963 = vunpack.c.l.b16 %v1731
        %v1964 = vunpack.c.h.b16 %v1731
        %v1965 = vunpack.c.l.b16 %v1732
        %v1966 = vunpack.c.l.b16 %v1733
        %v1967 = vunpack.c.h.b16 %v1733
        %v1968 = vunpack.c.l.b16 %v1734
        %v1969 = vunpack.c.l.b16 %v1735
        %v1970 = vunpack.c.h.b16 %v1735
        %v1971 = vunpack.c.l.b16 %v1736
        %v1972 = vunpack.c.l.b16 %v1737
        %v1973 = vunpack.c.h.b16 %v1737
        %v1974 = vunpack.c.l.b16 %v1738
        %v1975 = vunpack.c.l.b16 %v1739
        %v1976 = vunpack.c.h.b16 %v1739
        %v1977 = vunpack.c.l.b16 %v1740
        %v1978 = vunpack.c.l.b16 %v1741
        %v1979 = vunpack.c.h.b16 %v1741
        %v1980 = vunpack.c.l.b16 %v1742
        %v1981 = vpack.c.b16 %v1909, %v1906
        %v1982 = vpack.c.b16 %v1910, %v1907
        %v1983 = vpack.c.b16 %v1911, %v1908
        %v1984 = vpack.c.b16 %v1915, %v1912
        %v1985 = vpack.c.b16 %v1916, %v1913
        %v1986 = vpack.c.b16 %v1917, %v1914
        %v1987 = vpack.c.b16 %v1921, %v1918
        %v1988 = vpack.c.b16 %v1922, %v1919
        %v1989 = vpack.c.b16 %v1923, %v1920
        %v1990 = vpack.c.b16 %v1927, %v1924
        %v1991 = vpack.c.b16 %v1928, %v1925
        %v1992 = vpack.c.b16 %v1929, %v1926
        %v1993 = vpack.c.b16 %v1933, %v1930
        %v1994 = vpack.c.b16 %v1934, %v1931
        %v1995 = vpack.c.b16 %v1935, %v1932
        %v1996 = vpack.c.b16 %v1939, %v1936
        %v1997 = vpack.c.b16 %v1940, %v1937
        %v1998 = vpack.c.b16 %v1941, %v1938
        %v1999 = vpack.c.b16 %v1945, %v1942
        %v2000 = vpack.c.b16 %v1946, %v1943
        %v2001 = vpack.c.b16 %v1947, %v1944
        %v2002 = vpack.c.b16 %v1951, %v1948
        %v2003 = vpack.c.b16 %v1952, %v1949
        %v2004 = vpack.c.b16 %v1953, %v1950
        %v2005 = vpack.c.b16 %v1957, %v1954
        %v2006 = vpack.c.b16 %v1958, %v1955
        %v2007 = vpack.c.b16 %v1959, %v1956
        %v2008 = vpack.c.b16 %v1963, %v1960
        %v2009 = vpack.c.b16 %v1964, %v1961
        %v2010 = vpack.c.b16 %v1965, %v1962
        %v2011 = vpack.c.b16 %v1969, %v1966
        %v2012 = vpack.c.b16 %v1970, %v1967
        %v2013 = vpack.c.b16 %v1971, %v1968
        %v2014 = vpack.c.b16 %v1975, %v1972
        %v2015 = vpack.c.b16 %v1976, %v1973
        %v2016 = vpack.c.b16 %v1977, %v1974
        %v2017 = vpack.c.b16 %v1978, %v1978
        %v2018 = vpack.c.b16 %v1979, %v1979
        %v2019 = vpack.c.b16 %v1980, %v1980
        %v2155 = vunpack.c.l.b16 %v1743
        %v2156 = vunpack.c.h.b16 %v1743
        %v2157 = vunpack.c.l.b16 %v1744
        %v2158 = vunpack.c.l.b16 %v1745
        %v2159 = vunpack.c.h.b16 %v1745
        %v2160 = vunpack.c.l.b16 %v1746
        %v2161 = vunpack.c.l.b16 %v1747
        %v2162 = vunpack.c.h.b16 %v1747
        %v2163 = vunpack.c.l.b16 %v1748
        %v2164 = vunpack.c.l.b16 %v1749
        %v2165 = vunpack.c.h.b16 %v1749
        %v2166 = vunpack.c.l.b16 %v1750
        %v2167 = vunpack.c.l.b16 %v1751
        %v2168 = vunpack.c.h.b16 %v1751
        %v2169 = vunpack.c.l.b16 %v1752
        %v2170 = vunpack.c.l.b16 %v1753
        %v2171 = vunpack.c.h.b16 %v1753
        %v2172 = vunpack.c.l.b16 %v1754
        %v2173 = vunpack.c.l.b16 %v1755
        %v2174 = vunpack.c.h.b16 %v1755
        %v2175 = vunpack.c.l.b16 %v1756
        %v2176 = vunpack.c.l.b16 %v1757
        %v2177 = vunpack.c.h.b16 %v1757
        %v2178 = vunpack.c.l.b16 %v1758
        %v2179 = vunpack.c.l.b16 %v1759
        %v2180 = vunpack.c.h.b16 %v1759
        %v2181 = vunpack.c.l.b16 %v1760
        %v2182 = vunpack.c.l.b16 %v1761
        %v2183 = vunpack.c.h.b16 %v1761
        %v2184 = vunpack.c.l.b16 %v1762
        %v2185 = vunpack.c.l.b16 %v1763
        %v2186 = vunpack.c.h.b16 %v1763
        %v2187 = vunpack.c.l.b16 %v1764
        %v2188 = vunpack.c.l.b16 %v1765
        %v2189 = vunpack.c.h.b16 %v1765
        %v2190 = vunpack.c.l.b16 %v1766
        %v2191 = vunpack.c.l.b16 %v1767
        %v2192 = vunpack.c.h.b16 %v1767
        %v2193 = vunpack.c.l.b16 %v1768
        %v2194 = vunpack.c.l.b16 %v1769
        %v2195 = vunpack.c.h.b16 %v1769
        %v2196 = vunpack.c.l.b16 %v1770
        %v2197 = vunpack.c.l.b16 %v1771
        %v2198 = vunpack.c.h.b16 %v1771
        %v2199 = vunpack.c.l.b16 %v1772
        %v2200 = vunpack.c.l.b16 %v1773
        %v2201 = vunpack.c.h.b16 %v1773
        %v2202 = vunpack.c.l.b16 %v1774
        %v2203 = vunpack.c.l.b16 %v1775
        %v2204 = vunpack.c.h.b16 %v1775
        %v2205 = vunpack.c.l.b16 %v1776
        %v2206 = vunpack.c.l.b16 %v1777
        %v2207 = vunpack.c.h.b16 %v1777
        %v2208 = vunpack.c.l.b16 %v1778
        %v2209 = vunpack.c.l.b16 %v1779
        %v2210 = vunpack.c.h.b16 %v1779
        %v2211 = vunpack.c.l.b16 %v1780
        %v2212 = vunpack.c.l.b16 %v1781
        %v2213 = vunpack.c.h.b16 %v1781
        %v2214 = vunpack.c.l.b16 %v1782
        %v2215 = vunpack.c.l.b16 %v1783
        %v2216 = vunpack.c.h.b16 %v1783
        %v2217 = vunpack.c.l.b16 %v1784
        %v2218 = vunpack.c.l.b16 %v1785
        %v2219 = vunpack.c.h.b16 %v1785
        %v2220 = vunpack.c.l.b16 %v1786
        %v2221 = vunpack.c.l.b16 %v1787
        %v2222 = vunpack.c.h.b16 %v1787
        %v2223 = vunpack.c.l.b16 %v1788
        %v2224 = vunpack.c.l.b16 %v1789
        %v2225 = vunpack.c.h.b16 %v1789
        %v2226 = vunpack.c.l.b16 %v1790
        %v2227 = vunpack.c.l.b16 %v1791
        %v2228 = vunpack.c.h.b16 %v1791
        %v2229 = vunpack.c.l.b16 %v1792
        %v2230 = vunpack.c.l.b16 %v1793
        %v2231 = vunpack.c.h.b16 %v1793
        %v2232 = vunpack.c.l.b16 %v1794
        %v2233 = vunpack.c.l.b16 %v1795
        %v2234 = vunpack.c.h.b16 %v1795
        %v2235 = vunpack.c.l.b16 %v1796
        %v2236 = vunpack.c.l.b16 %v1797
        %v2237 = vunpack.c.h.b16 %v1797
        %v2238 = vunpack.c.l.b16 %v1798
        %v2239 = vunpack.c.l.b16 %v1799
        %v2240 = vunpack.c.h.b16 %v1799
        %v2241 = vunpack.c.l.b16 %v1800
        %v2242 = vunpack.c.l.b16 %v1801
        %v2243 = vunpack.c.h.b16 %v1801
        %v2244 = vunpack.c.l.b16 %v1802
        %v2245 = vunpack.c.l.b16 %v1803
        %v2246 = vunpack.c.h.b16 %v1803
        %v2247 = vunpack.c.l.b16 %v1804
        %v2248 = vunpack.c.l.b16 %v1805
        %v2249 = vunpack.c.h.b16 %v1805
        %v2250 = vunpack.c.l.b16 %v1806
        %v2251 = vunpack.c.l.b16 %v1807
        %v2252 = vunpack.c.h.b16 %v1807
        %v2253 = vunpack.c.l.b16 %v1808
        %v2254 = vunpack.c.l.b16 %v1809
        %v2255 = vunpack.c.h.b16 %v1809
        %v2256 = vunpack.c.l.b16 %v1810
        %v2257 = vunpack.c.l.b16 %v1811
        %v2258 = vunpack.c.h.b16 %v1811
        %v2259 = vunpack.c.l.b16 %v1812
        %v2260 = vunpack.c.l.b16 %v1813
        %v2261 = vunpack.c.h.b16 %v1813
        %v2262 = vunpack.c.l.b16 %v1814
        %v2263 = vunpack.c.l.b16 %v1815
        %v2264 = vunpack.c.h.b16 %v1815
        %v2265 = vunpack.c.l.b16 %v1816
        %v2266 = vunpack.c.l.b16 %v1817
        %v2267 = vunpack.c.h.b16 %v1817
        %v2268 = vunpack.c.l.b16 %v1818
        %v2269 = vunpack.c.l.b16 %v1819
        %v2270 = vunpack.c.h.b16 %v1819
        %v2271 = vunpack.c.l.b16 %v1820
        %v2272 = vunpack.c.l.b16 %v1821
        %v2273 = vunpack.c.h.b16 %v1821
        %v2274 = vunpack.c.l.b16 %v1822
        %v2275 = vunpack.c.l.b16 %v1823
        %v2276 = vunpack.c.h.b16 %v1823
        %v2277 = vunpack.c.l.b16 %v1824
        %v2278 = vunpack.c.l.b16 %v1825
        %v2279 = vunpack.c.h.b16 %v1825
        %v2280 = vunpack.c.l.b16 %v1826
        %v2281 = vunpack.c.l.b16 %v1827
        %v2282 = vunpack.c.h.b16 %v1827
        %v2283 = vunpack.c.l.b16 %v1828
        %v2284 = vunpack.c.l.b16 %v1829
        %v2285 = vunpack.c.h.b16 %v1829
        %v2286 = vunpack.c.l.b16 %v1830
        %v2287 = vunpack.c.l.b16 %v1831
        %v2288 = vunpack.c.h.b16 %v1831
        %v2289 = vunpack.c.l.b16 %v1832
        %v2290 = vunpack.c.l.b16 %v1833
        %v2291 = vunpack.c.h.b16 %v1833
        %v2292 = vunpack.c.l.b16 %v1834
        %v2293 = vunpack.c.l.b16 %v1835
        %v2294 = vunpack.c.h.b16 %v1835
        %v2295 = vunpack.c.l.b16 %v1836
        %v2296 = vunpack.c.l.b16 %v1837
        %v2297 = vunpack.c.h.b16 %v1837
        %v2298 = vunpack.c.l.b16 %v1838
        %v2299 = vpack.c.b16 %v2158, %v2155
        %v2300 = vpack.c.b16 %v2159, %v2156
        %v2301 = vpack.c.b16 %v2160, %v2157
        %v2302 = vpack.c.b16 %v2164, %v2161
        %v2303 = vpack.c.b16 %v2165, %v2162
        %v2304 = vpack.c.b16 %v2166, %v2163
        %v2305 = vpack.c.b16 %v2170, %v2167
        %v2306 = vpack.c.b16 %v2171, %v2168
        %v2307 = vpack.c.b16 %v2172, %v2169
        %v2308 = vpack.c.b16 %v2176, %v2173
        %v2309 = vpack.c.b16 %v2177, %v2174
        %v2310 = vpack.c.b16 %v2178, %v2175
        %v2311 = vpack.c.b16 %v2182, %v2179
        %v2312 = vpack.c.b16 %v2183, %v2180
        %v2313 = vpack.c.b16 %v2184, %v2181
        %v2314 = vpack.c.b16 %v2188, %v2185
        %v2315 = vpack.c.b16 %v2189, %v2186
        %v2316 = vpack.c.b16 %v2190, %v2187
        %v2317 = vpack.c.b16 %v2194, %v2191
        %v2318 = vpack.c.b16 %v2195, %v2192
        %v2319 = vpack.c.b16 %v2196, %v2193
        %v2320 = vpack.c.b16 %v2200, %v2197
        %v2321 = vpack.c.b16 %v2201, %v2198
        %v2322 = vpack.c.b16 %v2202, %v2199
        %v2323 = vpack.c.b16 %v2206, %v2203
        %v2324 = vpack.c.b16 %v2207, %v2204
        %v2325 = vpack.c.b16 %v2208, %v2205
        %v2326 = vpack.c.b16 %v2212, %v2209
        %v2327 = vpack.c.b16 %v2213, %v2210
        %v2328 = vpack.c.b16 %v2214, %v2211
        %v2329 = vpack.c.b16 %v2218, %v2215
        %v2330 = vpack.c.b16 %v2219, %v2216
        %v2331 = vpack.c.b16 %v2220, %v2217
        %v2332 = vpack.c.b16 %v2224, %v2221
        %v2333 = vpack.c.b16 %v2225, %v2222
        %v2334 = vpack.c.b16 %v2226, %v2223
        %v2335 = vpack.c.b16 %v2230, %v2227
        %v2336 = vpack.c.b16 %v2231, %v2228
        %v2337 = vpack.c.b16 %v2232, %v2229
        %v2338 = vpack.c.b16 %v2236, %v2233
        %v2339 = vpack.c.b16 %v2237, %v2234
        %v2340 = vpack.c.b16 %v2238, %v2235
        %v2341 = vpack.c.b16 %v2242, %v2239
        %v2342 = vpack.c.b16 %v2243, %v2240
        %v2343 = vpack.c.b16 %v2244, %v2241
        %v2344 = vpack.c.b16 %v2248, %v2245
        %v2345 = vpack.c.b16 %v2249, %v2246
        %v2346 = vpack.c.b16 %v2250, %v2247
        %v2347 = vpack.c.b16 %v2254, %v2251
        %v2348 = vpack.c.b16 %v2255, %v2252
        %v2349 = vpack.c.b16 %v2256, %v2253
        %v2350 = vpack.c.b16 %v2260, %v2257
        %v2351 = vpack.c.b16 %v2261, %v2258
        %v2352 = vpack.c.b16 %v2262, %v2259
        %v2353 = vpack.c.b16 %v2266, %v2263
        %v2354 = vpack.c.b16 %v2267, %v2264
        %v2355 = vpack.c.b16 %v2268, %v2265
        %v2356 = vpack.c.b16 %v2272, %v2269
        %v2357 = vpack.c.b16 %v2273, %v2270
        %v2358 = vpack.c.b16 %v2274, %v2271
        %v2359 = vpack.c.b16 %v2278, %v2275
        %v2360 = vpack.c.b16 %v2279, %v2276
        %v2361 = vpack.c.b16 %v2280, %v2277
        %v2362 = vpack.c.b16 %v2284, %v2281
        %v2363 = vpack.c.b16 %v2285, %v2282
        %v2364 = vpack.c.b16 %v2286, %v2283
        %v2365 = vpack.c.b16 %v2290, %v2287
        %v2366 = vpack.c.b16 %v2291, %v2288
        %v2367 = vpack.c.b16 %v2292, %v2289
        %v2368 = vpack.c.b16 %v2296, %v2293
        %v2369 = vpack.c.b16 %v2297, %v2294
        %v2370 = vpack.c.b16 %v2298, %v2295
        %2443 = vmatprep.subr.bf16.mxu0 %v2300
        %2444 = vmatpush1.bf16.msra.mxu0 %v2299
        %2445 = vmatprep.subr.bf16.mxu0 %v2303
        %2446 = vmatpush1.bf16.msra.mxu0 %v2302
        %2447 = vmatprep.subr.bf16.mxu0 %v2306
        %2448 = vmatpush1.bf16.msra.mxu0 %v2305
        %2449 = vmatprep.subr.bf16.mxu0 %v2309
        %2450 = vmatpush1.bf16.msra.mxu0 %v2308
        %2451 = vmatprep.subr.bf16.mxu0 %v2312
        %2452 = vmatpush1.bf16.msra.mxu0 %v2311
        %2453 = vmatprep.subr.bf16.mxu0 %v2315
        %2454 = vmatpush1.bf16.msra.mxu0 %v2314
        %2455 = vmatprep.subr.bf16.mxu0 %v2318
        %2456 = vmatpush1.bf16.msra.mxu0 %v2317
        %2457 = vmatprep.subr.bf16.mxu0 %v2321
        %2458 = vmatpush1.bf16.msra.mxu0 %v2320
        %2459 = vmatprep.subr.bf16.mxu0 %v2324
        %2460 = vmatpush1.bf16.msra.mxu0 %v2323
        %2461 = vmatprep.subr.bf16.mxu0 %v2327
        %2462 = vmatpush1.bf16.msra.mxu0 %v2326
        %2463 = vmatprep.subr.bf16.mxu0 %v2330
        %2464 = vmatpush1.bf16.msra.mxu0 %v2329
        %2465 = vmatprep.subr.bf16.mxu0 %v2333
        %2466 = vmatpush1.bf16.msra.mxu0 %v2332
        %2467 = vmatprep.subr.bf16.mxu0 %v2336
        %2468 = vmatpush1.bf16.msra.mxu0 %v2335
        %2469 = vmatprep.subr.bf16.mxu0 %v2339
        %2470 = vmatpush1.bf16.msra.mxu0 %v2338
        %2471 = vmatprep.subr.bf16.mxu0 %v2342
        %2472 = vmatpush1.bf16.msra.mxu0 %v2341
        %2473 = vmatprep.subr.bf16.mxu0 %v2345
        %2474 = vmatpush1.bf16.msra.mxu0 %v2344
        %2475 = vmatprep.mubr.bf16.mxu0 %v1982
        %2476 = vmatmul.mubr.bf16.gmra.mrb[0].mxu0 %v1981
        %v2477 = vpop.f32.mrb[0].mxu0
        %v2478 = vadd.f32 %v1844, %v2477
        %v2479 = vpop.f32.mrb[0].mxu0
        %v2480 = vadd.f32 %v1848, %v2479
        %v2481 = vpop.f32.mrb[0].mxu0
        %v2482 = vadd.f32 %v1844, %v2481
        %v2483 = vpop.f32.mrb[0].mxu0
        %v2484 = vadd.f32 %v1848, %v2483
        %2485 = vmatprep.mubr.bf16.mxu0 %v1985
        %2486 = vmatmul.mubr.bf16.gmra.mrb[0].mxu0 %v1984
        %v2487 = vpop.f32.mrb[0].mxu0
        %v2488 = vadd.f32 %v1844, %v2487
        %v2489 = vpop.f32.mrb[0].mxu0
        %v2490 = vadd.f32 %v1848, %v2489
        %v2491 = vpop.f32.mrb[0].mxu0
        %v2492 = vadd.f32 %v1844, %v2491
        %v2493 = vpop.f32.mrb[0].mxu0
        %v2494 = vadd.f32 %v1848, %v2493
        %2495 = vmatprep.mubr.bf16.mxu0 %v1988
        %2496 = vmatmul.mubr.bf16.gmra.mrb[0].mxu0 %v1987
        %v2497 = vpop.f32.mrb[0].mxu0
        %v2498 = vadd.f32 %v1844, %v2497
        %v2499 = vpop.f32.mrb[0].mxu0
        %v2500 = vadd.f32 %v1848, %v2499
        %v2501 = vpop.f32.mrb[0].mxu0
        %v2502 = vadd.f32 %v1844, %v2501
        %v2503 = vpop.f32.mrb[0].mxu0
        %v2504 = vadd.f32 %v1848, %v2503
        %2505 = vmatprep.mubr.bf16.mxu0 %v1991
        %2506 = vmatmul.mubr.bf16.gmra.mrb[0].mxu0 %v1990
        %v2507 = vpop.f32.mrb[0].mxu0
        %v2508 = vadd.f32 %v1844, %v2507
        %v2509 = vpop.f32.mrb[0].mxu0
        %v2510 = vadd.f32 %v1848, %v2509
        %v2511 = vpop.f32.mrb[0].mxu0
        %v2512 = vadd.f32 %v1844, %v2511
        %v2513 = vpop.f32.mrb[0].mxu0
        %v2514 = vadd.f32 %v1848, %v2513
        %2515 = vmatprep.mubr.bf16.mxu0 %v1994
        %2516 = vmatmul.mubr.bf16.gmra.mrb[0].mxu0 %v1993
        %v2517 = vpop.f32.mrb[0].mxu0
        %v2518 = vadd.f32 %v1844, %v2517
        %v2519 = vpop.f32.mrb[0].mxu0
        %v2520 = vadd.f32 %v1848, %v2519
        %v2521 = vpop.f32.mrb[0].mxu0
        %v2522 = vadd.f32 %v1844, %v2521
        %v2523 = vpop.f32.mrb[0].mxu0
        %v2524 = vadd.f32 %v1848, %v2523
        %2525 = vmatprep.mubr.bf16.mxu0 %v1997
        %2526 = vmatmul.mubr.bf16.gmra.mrb[0].mxu0 %v1996
        %v2527 = vpop.f32.mrb[0].mxu0
        %v2528 = vadd.f32 %v1844, %v2527
        %v2529 = vpop.f32.mrb[0].mxu0
        %v2530 = vadd.f32 %v1848, %v2529
        %v2531 = vpop.f32.mrb[0].mxu0
        %v2532 = vadd.f32 %v1844, %v2531
        %v2533 = vpop.f32.mrb[0].mxu0
        %v2534 = vadd.f32 %v1848, %v2533
        %2535 = vmatprep.mubr.bf16.mxu0 %v2000
        %2536 = vmatmul.mubr.bf16.gmra.mrb[0].mxu0 %v1999
        %v2537 = vpop.f32.mrb[0].mxu0
        %v2538 = vadd.f32 %v1844, %v2537
        %v2539 = vpop.f32.mrb[0].mxu0
        %v2540 = vadd.f32 %v1848, %v2539
        %v2541 = vpop.f32.mrb[0].mxu0
        %v2542 = vadd.f32 %v1844, %v2541
        %v2543 = vpop.f32.mrb[0].mxu0
        %v2544 = vadd.f32 %v1848, %v2543
        %2545 = vmatprep.mubr.bf16.mxu0 %v2003
        %2546 = vmatmul.mubr.bf16.gmra.mrb[0].mxu0 %v2002
        %v2547 = vpop.f32.mrb[0].mxu0
        %v2548 = vadd.f32 %v1844, %v2547
        %v2549 = vpop.f32.mrb[0].mxu0
        %v2550 = vadd.f32 %v1848, %v2549
        %v2551 = vpop.f32.mrb[0].mxu0
        %v2552 = vadd.f32 %v1844, %v2551
        %v2553 = vpop.f32.mrb[0].mxu0
        %v2554 = vadd.f32 %v1848, %v2553
        %2555 = vmatprep.mubr.bf16.mxu0 %v2006
        %2556 = vmatmul.mubr.bf16.gmra.mrb[0].mxu0 %v2005
        %v2557 = vpop.f32.mrb[0].mxu0
        %v2558 = vadd.f32 %v1844, %v2557
        %v2559 = vpop.f32.mrb[0].mxu0
        %v2560 = vadd.f32 %v1848, %v2559
        %v2561 = vpop.f32.mrb[0].mxu0
        %v2562 = vadd.f32 %v1844, %v2561
        %v2563 = vpop.f32.mrb[0].mxu0
        %v2564 = vadd.f32 %v1848, %v2563
        %2565 = vmatprep.mubr.bf16.mxu0 %v2009
        %2566 = vmatmul.mubr.bf16.gmra.mrb[0].mxu0 %v2008
        %v2567 = vpop.f32.mrb[0].mxu0
        %v2568 = vadd.f32 %v1844, %v2567
        %v2569 = vpop.f32.mrb[0].mxu0
        %v2570 = vadd.f32 %v1848, %v2569
        %v2571 = vpop.f32.mrb[0].mxu0
        %v2572 = vadd.f32 %v1844, %v2571
        %v2573 = vpop.f32.mrb[0].mxu0
        %v2574 = vadd.f32 %v1848, %v2573
        %2575 = vmatprep.mubr.bf16.mxu0 %v2012
        %2576 = vmatmul.mubr.bf16.gmra.mrb[0].mxu0 %v2011
        %v2577 = vpop.f32.mrb[0].mxu0
        %v2578 = vadd.f32 %v1844, %v2577
        %v2579 = vpop.f32.mrb[0].mxu0
        %v2580 = vadd.f32 %v1848, %v2579
        %v2581 = vpop.f32.mrb[0].mxu0
        %v2582 = vadd.f32 %v1844, %v2581
        %v2583 = vpop.f32.mrb[0].mxu0
        %v2584 = vadd.f32 %v1848, %v2583
        %2585 = vmatprep.mubr.bf16.mxu0 %v2015
        %2586 = vmatmul.mubr.bf16.gmra.mrb[0].mxu0 %v2014
        %v2587 = vpop.f32.mrb[0].mxu0
        %v2588 = vadd.f32 %v1844, %v2587
        %v2589 = vpop.f32.mrb[0].mxu0
        %v2590 = vadd.f32 %v1848, %v2589
        %v2591 = vpop.f32.mrb[0].mxu0
        %v2592 = vadd.f32 %v1844, %v2591
        %v2593 = vpop.f32.mrb[0].mxu0
        %v2594 = vadd.f32 %v1848, %v2593
        %2595 = vmatprep.mubr.bf16.mxu0 %v2018
        %2596 = vmatmul.mubr.bf16.gmra.mrb[0].mxu0 %v2017
        %v2597 = vpop.f32.mrb[0].mxu0
        %v2598 = vadd.f32 %v1844, %v2597
        %v2599 = vpop.f32.mrb[0].mxu0
        %v2600 = vadd.f32 %v1848, %v2599
        %v2601 = vpop.f32.mrb[0].mxu0
        %v2602 = vpop.f32.mrb[0].mxu0
        %2603 = vdwg.mxu0
        %2604 = vmatprep.subr.bf16.mxu0 %v2348
        %2605 = vmatpush1.bf16.msra.mxu0 %v2347
        %2606 = vmatprep.subr.bf16.mxu0 %v2351
        %2607 = vmatpush1.bf16.msra.mxu0 %v2350
        %2608 = vmatprep.subr.bf16.mxu0 %v2354
        %2609 = vmatpush1.bf16.msra.mxu0 %v2353
        %2610 = vmatprep.subr.bf16.mxu0 %v2357
        %2611 = vmatpush1.bf16.msra.mxu0 %v2356
        %2612 = vmatprep.subr.bf16.mxu0 %v2360
        %2613 = vmatpush1.bf16.msra.mxu0 %v2359
        %2614 = vmatprep.subr.bf16.mxu0 %v2363
        %2615 = vmatpush1.bf16.msra.mxu0 %v2362
        %2616 = vmatprep.subr.bf16.mxu0 %v2366
        %2617 = vmatpush1.bf16.msra.mxu0 %v2365
        %2618 = vmatprep.subr.bf16.mxu0 %v2369
        %2619 = vmatpush1.bf16.msra.mxu0 %v2368
        %2620 = vmatprep.subr.bf16.mxu0 0
        %2621 = vmatpush1.bf16.msra.mxu0 0
        %2622 = vmatprep.subr.bf16.mxu0 0
        %2623 = vmatpush1.bf16.msra.mxu0 0
        %2624 = vmatprep.subr.bf16.mxu0 0
        %2625 = vmatpush1.bf16.msra.mxu0 0
        %2626 = vmatprep.subr.bf16.mxu0 0
        %2627 = vmatpush1.bf16.msra.mxu0 0
        %2628 = vmatprep.subr.bf16.mxu0 0
        %2629 = vmatpush1.bf16.msra.mxu0 0
        %2630 = vmatprep.subr.bf16.mxu0 0
        %2631 = vmatpush1.bf16.msra.mxu0 0
        %2632 = vmatprep.subr.bf16.mxu0 0
        %2633 = vmatpush1.bf16.msra.mxu0 0
        %2634 = vmatprep.subr.bf16.mxu0 0
        %2635 = vmatpush1.bf16.msra.mxu0 0
        %2636 = vmatprep.mubr.bf16.mxu0 0
        %2637 = vmatmul.mubr.bf16.gmra.mrb[0].mxu0 %v1983
        %v2638 = vpop.f32.mrb[0].mxu0
        %v2639 = vadd.f32 %v2478, %v2638
        %v2640 = vpop.f32.mrb[0].mxu0
        %v2641 = vadd.f32 %v2480, %v2640
        %v2642 = vpop.f32.mrb[0].mxu0
        %v2643 = vadd.f32 %v2482, %v2642
        %v2644 = vpop.f32.mrb[0].mxu0
        %v2645 = vadd.f32 %v2484, %v2644
        %2646 = vmatprep.mubr.bf16.mxu0 0
        %2647 = vmatmul.mubr.bf16.gmra.mrb[0].mxu0 %v1986
        %v2648 = vpop.f32.mrb[0].mxu0
        %v2649 = vadd.f32 %v2488, %v2648
        %v2650 = vpop.f32.mrb[0].mxu0
        %v2651 = vadd.f32 %v2490, %v2650
        %v2652 = vpop.f32.mrb[0].mxu0
        %v2653 = vadd.f32 %v2492, %v2652
        %v2654 = vpop.f32.mrb[0].mxu0
        %v2655 = vadd.f32 %v2494, %v2654
        %2656 = vmatprep.mubr.bf16.mxu0 0
        %2657 = vmatmul.mubr.bf16.gmra.mrb[0].mxu0 %v1989
        %v2658 = vpop.f32.mrb[0].mxu0
        %v2659 = vadd.f32 %v2498, %v2658
        %v2660 = vpop.f32.mrb[0].mxu0
        %v2661 = vadd.f32 %v2500, %v2660
        %v2662 = vpop.f32.mrb[0].mxu0
        %v2663 = vadd.f32 %v2502, %v2662
        %v2664 = vpop.f32.mrb[0].mxu0
        %v2665 = vadd.f32 %v2504, %v2664
        %2666 = vmatprep.mubr.bf16.mxu0 0
        %2667 = vmatmul.mubr.bf16.gmra.mrb[0].mxu0 %v1992
        %v2668 = vpop.f32.mrb[0].mxu0
        %v2669 = vadd.f32 %v2508, %v2668
        %v2670 = vpop.f32.mrb[0].mxu0
        %v2671 = vadd.f32 %v2510, %v2670
        %v2672 = vpop.f32.mrb[0].mxu0
        %v2673 = vadd.f32 %v2512, %v2672
        %v2674 = vpop.f32.mrb[0].mxu0
        %v2675 = vadd.f32 %v2514, %v2674
        %2676 = vmatprep.mubr.bf16.mxu0 0
        %2677 = vmatmul.mubr.bf16.gmra.mrb[0].mxu0 %v1995
        %v2678 = vpop.f32.mrb[0].mxu0
        %v2679 = vadd.f32 %v2518, %v2678
        %v2680 = vpop.f32.mrb[0].mxu0
        %v2681 = vadd.f32 %v2520, %v2680
        %v2682 = vpop.f32.mrb[0].mxu0
        %v2683 = vadd.f32 %v2522, %v2682
        %v2684 = vpop.f32.mrb[0].mxu0
        %v2685 = vadd.f32 %v2524, %v2684
        %2686 = vmatprep.mubr.bf16.mxu0 0
        %2687 = vmatmul.mubr.bf16.gmra.mrb[0].mxu0 %v1998
        %v2688 = vpop.f32.mrb[0].mxu0
        %v2689 = vadd.f32 %v2528, %v2688
        %v2690 = vpop.f32.mrb[0].mxu0
        %v2691 = vadd.f32 %v2530, %v2690
        %v2692 = vpop.f32.mrb[0].mxu0
        %v2693 = vadd.f32 %v2532, %v2692
        %v2694 = vpop.f32.mrb[0].mxu0
        %v2695 = vadd.f32 %v2534, %v2694
        %2696 = vmatprep.mubr.bf16.mxu0 0
        %2697 = vmatmul.mubr.bf16.gmra.mrb[0].mxu0 %v2001
        %v2698 = vpop.f32.mrb[0].mxu0
        %v2699 = vadd.f32 %v2538, %v2698
        %v2700 = vpop.f32.mrb[0].mxu0
        %v2701 = vadd.f32 %v2540, %v2700
        %v2702 = vpop.f32.mrb[0].mxu0
        %v2703 = vadd.f32 %v2542, %v2702
        %v2704 = vpop.f32.mrb[0].mxu0
        %v2705 = vadd.f32 %v2544, %v2704
        %2706 = vmatprep.mubr.bf16.mxu0 0
        %2707 = vmatmul.mubr.bf16.gmra.mrb[0].mxu0 %v2004
        %v2708 = vpop.f32.mrb[0].mxu0
        %v2709 = vadd.f32 %v2548, %v2708
        %v2710 = vpop.f32.mrb[0].mxu0
        %v2711 = vadd.f32 %v2550, %v2710
        %v2712 = vpop.f32.mrb[0].mxu0
        %v2713 = vadd.f32 %v2552, %v2712
        %v2714 = vpop.f32.mrb[0].mxu0
        %v2715 = vadd.f32 %v2554, %v2714
        %2716 = vmatprep.mubr.bf16.mxu0 0
        %2717 = vmatmul.mubr.bf16.gmra.mrb[0].mxu0 %v2007
        %v2718 = vpop.f32.mrb[0].mxu0
        %v2719 = vadd.f32 %v2558, %v2718
        %v2720 = vpop.f32.mrb[0].mxu0
        %v2721 = vadd.f32 %v2560, %v2720
        %v2722 = vpop.f32.mrb[0].mxu0
        %v2723 = vadd.f32 %v2562, %v2722
        %v2724 = vpop.f32.mrb[0].mxu0
        %v2725 = vadd.f32 %v2564, %v2724
        %2726 = vmatprep.mubr.bf16.mxu0 0
        %2727 = vmatmul.mubr.bf16.gmra.mrb[0].mxu0 %v2010
        %v2728 = vpop.f32.mrb[0].mxu0
        %v2729 = vadd.f32 %v2568, %v2728
        %v2730 = vpop.f32.mrb[0].mxu0
        %v2731 = vadd.f32 %v2570, %v2730
        %v2732 = vpop.f32.mrb[0].mxu0
        %v2733 = vadd.f32 %v2572, %v2732
        %v2734 = vpop.f32.mrb[0].mxu0
        %v2735 = vadd.f32 %v2574, %v2734
        %2736 = vmatprep.mubr.bf16.mxu0 0
        %2737 = vmatmul.mubr.bf16.gmra.mrb[0].mxu0 %v2013
        %v2738 = vpop.f32.mrb[0].mxu0
        %v2739 = vadd.f32 %v2578, %v2738
        %v2740 = vpop.f32.mrb[0].mxu0
        %v2741 = vadd.f32 %v2580, %v2740
        %v2742 = vpop.f32.mrb[0].mxu0
        %v2743 = vadd.f32 %v2582, %v2742
        %v2744 = vpop.f32.mrb[0].mxu0
        %v2745 = vadd.f32 %v2584, %v2744
        %2746 = vmatprep.mubr.bf16.mxu0 0
        %2747 = vmatmul.mubr.bf16.gmra.mrb[0].mxu0 %v2016
        %v2748 = vpop.f32.mrb[0].mxu0
        %v2749 = vadd.f32 %v2588, %v2748
        %v2750 = vpop.f32.mrb[0].mxu0
        %v2751 = vadd.f32 %v2590, %v2750
        %v2752 = vpop.f32.mrb[0].mxu0
        %v2753 = vadd.f32 %v2592, %v2752
        %v2754 = vpop.f32.mrb[0].mxu0
        %v2755 = vadd.f32 %v2594, %v2754
        %2756 = vmatprep.mubr.bf16.mxu0 0
        %2757 = vmatmul.mubr.bf16.gmra.mrb[0].mxu0 %v2019
        %v2758 = vpop.f32.mrb[0].mxu0
        %v2759 = vadd.f32 %v2598, %v2758
        %v2760 = vpop.f32.mrb[0].mxu0
        %v2761 = vadd.f32 %v2600, %v2760
        %v2762 = vpop.f32.mrb[0].mxu0
        %v2763 = vpop.f32.mrb[0].mxu0
        %2764 = vdwg.mxu0
        %2765 = vmatprep.subr.bf16.mxu0 0
        %2766 = vmatpush1.bf16.msra.mxu0 %v2301
        %2767 = vmatprep.subr.bf16.mxu0 0
        %2768 = vmatpush1.bf16.msra.mxu0 %v2304
        %2769 = vmatprep.subr.bf16.mxu0 0
        %2770 = vmatpush1.bf16.msra.mxu0 %v2307
        %2771 = vmatprep.subr.bf16.mxu0 0
        %2772 = vmatpush1.bf16.msra.mxu0 %v2310
        %2773 = vmatprep.subr.bf16.mxu0 0
        %2774 = vmatpush1.bf16.msra.mxu0 %v2313
        %2775 = vmatprep.subr.bf16.mxu0 0
        %2776 = vmatpush1.bf16.msra.mxu0 %v2316
        %2777 = vmatprep.subr.bf16.mxu0 0
        %2778 = vmatpush1.bf16.msra.mxu0 %v2319
        %2779 = vmatprep.subr.bf16.mxu0 0
        %2780 = vmatpush1.bf16.msra.mxu0 %v2322
        %2781 = vmatprep.subr.bf16.mxu0 0
        %2782 = vmatpush1.bf16.msra.mxu0 %v2325
        %2783 = vmatprep.subr.bf16.mxu0 0
        %2784 = vmatpush1.bf16.msra.mxu0 %v2328
        %2785 = vmatprep.subr.bf16.mxu0 0
        %2786 = vmatpush1.bf16.msra.mxu0 %v2331
        %2787 = vmatprep.subr.bf16.mxu0 0
        %2788 = vmatpush1.bf16.msra.mxu0 %v2334
        %2789 = vmatprep.subr.bf16.mxu0 0
        %2790 = vmatpush1.bf16.msra.mxu0 %v2337
        %2791 = vmatprep.subr.bf16.mxu0 0
        %2792 = vmatpush1.bf16.msra.mxu0 %v2340
        %2793 = vmatprep.subr.bf16.mxu0 0
        %2794 = vmatpush1.bf16.msra.mxu0 %v2343
        %2795 = vmatprep.subr.bf16.mxu0 0
        %2796 = vmatpush1.bf16.msra.mxu0 %v2346
        %2797 = vmatprep.mubr.bf16.mxu0 %v1982
        %2798 = vmatmul.mubr.bf16.gmra.mrb[0].mxu0 %v1981
        %v2799 = vpop.f32.mrb[0].mxu0
        %v2800 = vadd.f32 %v1852, %v2799
        %v2801 = vpop.f32.mrb[0].mxu0
        %v2802 = vpop.f32.mrb[0].mxu0
        %v2803 = vadd.f32 %v1852, %v2802
        %v2804 = vpop.f32.mrb[0].mxu0
        %2805 = vmatprep.mubr.bf16.mxu0 %v1985
        %2806 = vmatmul.mubr.bf16.gmra.mrb[0].mxu0 %v1984
        %v2807 = vpop.f32.mrb[0].mxu0
        %v2808 = vadd.f32 %v1852, %v2807
        %v2809 = vpop.f32.mrb[0].mxu0
        %v2810 = vpop.f32.mrb[0].mxu0
        %v2811 = vadd.f32 %v1852, %v2810
        %v2812 = vpop.f32.mrb[0].mxu0
        %2813 = vmatprep.mubr.bf16.mxu0 %v1988
        %2814 = vmatmul.mubr.bf16.gmra.mrb[0].mxu0 %v1987
        %v2815 = vpop.f32.mrb[0].mxu0
        %v2816 = vadd.f32 %v1852, %v2815
        %v2817 = vpop.f32.mrb[0].mxu0
        %v2818 = vpop.f32.mrb[0].mxu0
        %v2819 = vadd.f32 %v1852, %v2818
        %v2820 = vpop.f32.mrb[0].mxu0
        %2821 = vmatprep.mubr.bf16.mxu0 %v1991
        %2822 = vmatmul.mubr.bf16.gmra.mrb[0].mxu0 %v1990
        %v2823 = vpop.f32.mrb[0].mxu0
        %v2824 = vadd.f32 %v1852, %v2823
        %v2825 = vpop.f32.mrb[0].mxu0
        %v2826 = vpop.f32.mrb[0].mxu0
        %v2827 = vadd.f32 %v1852, %v2826
        %v2828 = vpop.f32.mrb[0].mxu0
        %2829 = vmatprep.mubr.bf16.mxu0 %v1994
        %2830 = vmatmul.mubr.bf16.gmra.mrb[0].mxu0 %v1993
        %v2831 = vpop.f32.mrb[0].mxu0
        %v2832 = vadd.f32 %v1852, %v2831
        %v2833 = vpop.f32.mrb[0].mxu0
        %v2834 = vpop.f32.mrb[0].mxu0
        %v2835 = vadd.f32 %v1852, %v2834
        %v2836 = vpop.f32.mrb[0].mxu0
        %2837 = vmatprep.mubr.bf16.mxu0 %v1997
        %2838 = vmatmul.mubr.bf16.gmra.mrb[0].mxu0 %v1996
        %v2839 = vpop.f32.mrb[0].mxu0
        %v2840 = vadd.f32 %v1852, %v2839
        %v2841 = vpop.f32.mrb[0].mxu0
        %v2842 = vpop.f32.mrb[0].mxu0
        %v2843 = vadd.f32 %v1852, %v2842
        %v2844 = vpop.f32.mrb[0].mxu0
        %2845 = vmatprep.mubr.bf16.mxu0 %v2000
        %2846 = vmatmul.mubr.bf16.gmra.mrb[0].mxu0 %v1999
        %v2847 = vpop.f32.mrb[0].mxu0
        %v2848 = vadd.f32 %v1852, %v2847
        %v2849 = vpop.f32.mrb[0].mxu0
        %v2850 = vpop.f32.mrb[0].mxu0
        %v2851 = vadd.f32 %v1852, %v2850
        %v2852 = vpop.f32.mrb[0].mxu0
        %2853 = vmatprep.mubr.bf16.mxu0 %v2003
        %2854 = vmatmul.mubr.bf16.gmra.mrb[0].mxu0 %v2002
        %v2855 = vpop.f32.mrb[0].mxu0
        %v2856 = vadd.f32 %v1852, %v2855
        %v2857 = vpop.f32.mrb[0].mxu0
        %v2858 = vpop.f32.mrb[0].mxu0
        %v2859 = vadd.f32 %v1852, %v2858
        %v2860 = vpop.f32.mrb[0].mxu0
        %2861 = vmatprep.mubr.bf16.mxu0 %v2006
        %2862 = vmatmul.mubr.bf16.gmra.mrb[0].mxu0 %v2005
        %v2863 = vpop.f32.mrb[0].mxu0
        %v2864 = vadd.f32 %v1852, %v2863
        %v2865 = vpop.f32.mrb[0].mxu0
        %v2866 = vpop.f32.mrb[0].mxu0
        %v2867 = vadd.f32 %v1852, %v2866
        %v2868 = vpop.f32.mrb[0].mxu0
        %2869 = vmatprep.mubr.bf16.mxu0 %v2009
        %2870 = vmatmul.mubr.bf16.gmra.mrb[0].mxu0 %v2008
        %v2871 = vpop.f32.mrb[0].mxu0
        %v2872 = vadd.f32 %v1852, %v2871
        %v2873 = vpop.f32.mrb[0].mxu0
        %v2874 = vpop.f32.mrb[0].mxu0
        %v2875 = vadd.f32 %v1852, %v2874
        %v2876 = vpop.f32.mrb[0].mxu0
        %2877 = vmatprep.mubr.bf16.mxu0 %v2012
        %2878 = vmatmul.mubr.bf16.gmra.mrb[0].mxu0 %v2011
        %v2879 = vpop.f32.mrb[0].mxu0
        %v2880 = vadd.f32 %v1852, %v2879
        %v2881 = vpop.f32.mrb[0].mxu0
        %v2882 = vpop.f32.mrb[0].mxu0
        %v2883 = vadd.f32 %v1852, %v2882
        %v2884 = vpop.f32.mrb[0].mxu0
        %2885 = vmatprep.mubr.bf16.mxu0 %v2015
        %2886 = vmatmul.mubr.bf16.gmra.mrb[0].mxu0 %v2014
        %v2887 = vpop.f32.mrb[0].mxu0
        %v2888 = vadd.f32 %v1852, %v2887
        %v2889 = vpop.f32.mrb[0].mxu0
        %v2890 = vpop.f32.mrb[0].mxu0
        %v2891 = vadd.f32 %v1852, %v2890
        %v2892 = vpop.f32.mrb[0].mxu0
        %2893 = vmatprep.mubr.bf16.mxu0 %v2018
        %2894 = vmatmul.mubr.bf16.gmra.mrb[0].mxu0 %v2017
        %v2895 = vpop.f32.mrb[0].mxu0
        %v2896 = vadd.f32 %v1852, %v2895
        %v2897 = vpop.f32.mrb[0].mxu0
        %v2898 = vpop.f32.mrb[0].mxu0
        %v2899 = vpop.f32.mrb[0].mxu0
        %2900 = vdwg.mxu0
        %2901 = vmatprep.subr.bf16.mxu0 0
        %2902 = vmatpush1.bf16.msra.mxu0 %v2349
        %2903 = vmatprep.subr.bf16.mxu0 0
        %2904 = vmatpush1.bf16.msra.mxu0 %v2352
        %2905 = vmatprep.subr.bf16.mxu0 0
        %2906 = vmatpush1.bf16.msra.mxu0 %v2355
        %2907 = vmatprep.subr.bf16.mxu0 0
        %2908 = vmatpush1.bf16.msra.mxu0 %v2358
        %2909 = vmatprep.subr.bf16.mxu0 0
        %2910 = vmatpush1.bf16.msra.mxu0 %v2361
        %2911 = vmatprep.subr.bf16.mxu0 0
        %2912 = vmatpush1.bf16.msra.mxu0 %v2364
        %2913 = vmatprep.subr.bf16.mxu0 0
        %2914 = vmatpush1.bf16.msra.mxu0 %v2367
        %2915 = vmatprep.subr.bf16.mxu0 0
        %2916 = vmatpush1.bf16.msra.mxu0 %v2370
        %2917 = vmatprep.subr.bf16.mxu0 0
        %2918 = vmatpush1.bf16.msra.mxu0 0
        %2919 = vmatprep.subr.bf16.mxu0 0
        %2920 = vmatpush1.bf16.msra.mxu0 0
        %2921 = vmatprep.subr.bf16.mxu0 0
        %2922 = vmatpush1.bf16.msra.mxu0 0
        %2923 = vmatprep.subr.bf16.mxu0 0
        %2924 = vmatpush1.bf16.msra.mxu0 0
        %2925 = vmatprep.subr.bf16.mxu0 0
        %2926 = vmatpush1.bf16.msra.mxu0 0
        %2927 = vmatprep.subr.bf16.mxu0 0
        %2928 = vmatpush1.bf16.msra.mxu0 0
        %2929 = vmatprep.subr.bf16.mxu0 0
        %2930 = vmatpush1.bf16.msra.mxu0 0
        %2931 = vmatprep.subr.bf16.mxu0 0
        %2932 = vmatpush1.bf16.msra.mxu0 0
        %2933 = vmatprep.mubr.bf16.mxu0 0
        %2934 = vmatmul.mubr.bf16.gmra.mrb[0].mxu0 %v1983
        %v2935 = vpop.f32.mrb[0].mxu0
        %v2936 = vadd.f32 %v2800, %v2935
        %v2937 = vpop.f32.mrb[0].mxu0
        %v2938 = vpop.f32.mrb[0].mxu0
        %v2939 = vadd.f32 %v2803, %v2938
        %v2940 = vpop.f32.mrb[0].mxu0
        %2941 = vmatprep.mubr.bf16.mxu0 0
        %2942 = vmatmul.mubr.bf16.gmra.mrb[0].mxu0 %v1986
        %v2943 = vpop.f32.mrb[0].mxu0
        %v2944 = vadd.f32 %v2808, %v2943
        %v2945 = vpop.f32.mrb[0].mxu0
        %v2946 = vpop.f32.mrb[0].mxu0
        %v2947 = vadd.f32 %v2811, %v2946
        %v2948 = vpop.f32.mrb[0].mxu0
        %2949 = vmatprep.mubr.bf16.mxu0 0
        %2950 = vmatmul.mubr.bf16.gmra.mrb[0].mxu0 %v1989
        %v2951 = vpop.f32.mrb[0].mxu0
        %v2952 = vadd.f32 %v2816, %v2951
        %v2953 = vpop.f32.mrb[0].mxu0
        %v2954 = vpop.f32.mrb[0].mxu0
        %v2955 = vadd.f32 %v2819, %v2954
        %v2956 = vpop.f32.mrb[0].mxu0
        %2957 = vmatprep.mubr.bf16.mxu0 0
        %2958 = vmatmul.mubr.bf16.gmra.mrb[0].mxu0 %v1992
        %v2959 = vpop.f32.mrb[0].mxu0
        %v2960 = vadd.f32 %v2824, %v2959
        %v2961 = vpop.f32.mrb[0].mxu0
        %v2962 = vpop.f32.mrb[0].mxu0
        %v2963 = vadd.f32 %v2827, %v2962
        %v2964 = vpop.f32.mrb[0].mxu0
        %2965 = vmatprep.mubr.bf16.mxu0 0
        %2966 = vmatmul.mubr.bf16.gmra.mrb[0].mxu0 %v1995
        %v2967 = vpop.f32.mrb[0].mxu0
        %v2968 = vadd.f32 %v2832, %v2967
        %v2969 = vpop.f32.mrb[0].mxu0
        %v2970 = vpop.f32.mrb[0].mxu0
        %v2971 = vadd.f32 %v2835, %v2970
        %v2972 = vpop.f32.mrb[0].mxu0
        %2973 = vmatprep.mubr.bf16.mxu0 0
        %2974 = vmatmul.mubr.bf16.gmra.mrb[0].mxu0 %v1998
        %v2975 = vpop.f32.mrb[0].mxu0
        %v2976 = vadd.f32 %v2840, %v2975
        %v2977 = vpop.f32.mrb[0].mxu0
        %v2978 = vpop.f32.mrb[0].mxu0
        %v2979 = vadd.f32 %v2843, %v2978
        %v2980 = vpop.f32.mrb[0].mxu0
        %2981 = vmatprep.mubr.bf16.mxu0 0
        %2982 = vmatmul.mubr.bf16.gmra.mrb[0].mxu0 %v2001
        %v2983 = vpop.f32.mrb[0].mxu0
        %v2984 = vadd.f32 %v2848, %v2983
        %v2985 = vpop.f32.mrb[0].mxu0
        %v2986 = vpop.f32.mrb[0].mxu0
        %v2987 = vadd.f32 %v2851, %v2986
        %v2988 = vpop.f32.mrb[0].mxu0
        %2989 = vmatprep.mubr.bf16.mxu0 0
        %2990 = vmatmul.mubr.bf16.gmra.mrb[0].mxu0 %v2004
        %v2991 = vpop.f32.mrb[0].mxu0
        %v2992 = vadd.f32 %v2856, %v2991
        %v2993 = vpop.f32.mrb[0].mxu0
        %v2994 = vpop.f32.mrb[0].mxu0
        %v2995 = vadd.f32 %v2859, %v2994
        %v2996 = vpop.f32.mrb[0].mxu0
        %2997 = vmatprep.mubr.bf16.mxu0 0
        %2998 = vmatmul.mubr.bf16.gmra.mrb[0].mxu0 %v2007
        %v2999 = vpop.f32.mrb[0].mxu0
        %v3000 = vadd.f32 %v2864, %v2999
        %v3001 = vpop.f32.mrb[0].mxu0
        %v3002 = vpop.f32.mrb[0].mxu0
        %v3003 = vadd.f32 %v2867, %v3002
        %v3004 = vpop.f32.mrb[0].mxu0
        %3005 = vmatprep.mubr.bf16.mxu0 0
        %3006 = vmatmul.mubr.bf16.gmra.mrb[0].mxu0 %v2010
        %v3007 = vpop.f32.mrb[0].mxu0
        %v3008 = vadd.f32 %v2872, %v3007
        %v3009 = vpop.f32.mrb[0].mxu0
        %v3010 = vpop.f32.mrb[0].mxu0
        %v3011 = vadd.f32 %v2875, %v3010
        %v3012 = vpop.f32.mrb[0].mxu0
        %3013 = vmatprep.mubr.bf16.mxu0 0
        %3014 = vmatmul.mubr.bf16.gmra.mrb[0].mxu0 %v2013
        %v3015 = vpop.f32.mrb[0].mxu0
        %v3016 = vadd.f32 %v2880, %v3015
        %v3017 = vpop.f32.mrb[0].mxu0
        %v3018 = vpop.f32.mrb[0].mxu0
        %v3019 = vadd.f32 %v2883, %v3018
        %v3020 = vpop.f32.mrb[0].mxu0
        %3021 = vmatprep.mubr.bf16.mxu0 0
        %3022 = vmatmul.mubr.bf16.gmra.mrb[0].mxu0 %v2016
        %v3023 = vpop.f32.mrb[0].mxu0
        %v3024 = vadd.f32 %v2888, %v3023
        %v3025 = vpop.f32.mrb[0].mxu0
        %v3026 = vpop.f32.mrb[0].mxu0
        %v3027 = vadd.f32 %v2891, %v3026
        %v3028 = vpop.f32.mrb[0].mxu0
        %3029 = vmatprep.mubr.bf16.mxu0 0
        %3030 = vmatmul.mubr.bf16.gmra.mrb[0].mxu0 %v2019
        %v3031 = vpop.f32.mrb[0].mxu0
        %v3032 = vadd.f32 %v2896, %v3031
        %v3033 = vpop.f32.mrb[0].mxu0
        %v3034 = vpop.f32.mrb[0].mxu0
        %v3035 = vpop.f32.mrb[0].mxu0
        %3036 = vdwg.mxu0
        %v3037 = vmul.f32 %v2639, 0.5
        %v3038 = vmul.f32 %v2641, 0.5
        %v3039 = vmul.f32 %v2936, 0.5
        %v3040 = vmul.f32 %v2643, 0.5
        %v3041 = vmul.f32 %v2645, 0.5
        %v3042 = vmul.f32 %v2939, 0.5
        %v3043 = vmul.f32 %v2649, 0.5
        %v3044 = vmul.f32 %v2651, 0.5
        %v3045 = vmul.f32 %v2944, 0.5
        %v3046 = vmul.f32 %v2653, 0.5
        %v3047 = vmul.f32 %v2655, 0.5
        %v3048 = vmul.f32 %v2947, 0.5
        %v3049 = vmul.f32 %v2659, 0.5
        %v3050 = vmul.f32 %v2661, 0.5
        %v3051 = vmul.f32 %v2952, 0.5
        %v3052 = vmul.f32 %v2663, 0.5
        %v3053 = vmul.f32 %v2665, 0.5
        %v3054 = vmul.f32 %v2955, 0.5
        %v3055 = vmul.f32 %v2669, 0.5
        %v3056 = vmul.f32 %v2671, 0.5
        %v3057 = vmul.f32 %v2960, 0.5
        %v3058 = vmul.f32 %v2673, 0.5
        %v3059 = vmul.f32 %v2675, 0.5
        %v3060 = vmul.f32 %v2963, 0.5
        %v3061 = vmul.f32 %v2679, 0.5
        %v3062 = vmul.f32 %v2681, 0.5
        %v3063 = vmul.f32 %v2968, 0.5
        %v3064 = vmul.f32 %v2683, 0.5
        %v3065 = vmul.f32 %v2685, 0.5
        %v3066 = vmul.f32 %v2971, 0.5
        %v3067 = vmul.f32 %v2689, 0.5
        %v3068 = vmul.f32 %v2691, 0.5
        %v3069 = vmul.f32 %v2976, 0.5
        %v3070 = vmul.f32 %v2693, 0.5
        %v3071 = vmul.f32 %v2695, 0.5
        %v3072 = vmul.f32 %v2979, 0.5
        %v3073 = vmul.f32 %v2699, 0.5
        %v3074 = vmul.f32 %v2701, 0.5
        %v3075 = vmul.f32 %v2984, 0.5
        %v3076 = vmul.f32 %v2703, 0.5
        %v3077 = vmul.f32 %v2705, 0.5
        %v3078 = vmul.f32 %v2987, 0.5
        %v3079 = vmul.f32 %v2709, 0.5
        %v3080 = vmul.f32 %v2711, 0.5
        %v3081 = vmul.f32 %v2992, 0.5
        %v3082 = vmul.f32 %v2713, 0.5
        %v3083 = vmul.f32 %v2715, 0.5
        %v3084 = vmul.f32 %v2995, 0.5
        %v3085 = vmul.f32 %v2719, 0.5
        %v3086 = vmul.f32 %v2721, 0.5
        %v3087 = vmul.f32 %v3000, 0.5
        %v3088 = vmul.f32 %v2723, 0.5
        %v3089 = vmul.f32 %v2725, 0.5
        %v3090 = vmul.f32 %v3003, 0.5
        %v3091 = vmul.f32 %v2729, 0.5
        %v3092 = vmul.f32 %v2731, 0.5
        %v3093 = vmul.f32 %v3008, 0.5
        %v3094 = vmul.f32 %v2733, 0.5
        %v3095 = vmul.f32 %v2735, 0.5
        %v3096 = vmul.f32 %v3011, 0.5
        %v3097 = vmul.f32 %v2739, 0.5
        %v3098 = vmul.f32 %v2741, 0.5
        %v3099 = vmul.f32 %v3016, 0.5
        %v3100 = vmul.f32 %v2743, 0.5
        %v3101 = vmul.f32 %v2745, 0.5
        %v3102 = vmul.f32 %v3019, 0.5
        %v3103 = vmul.f32 %v2749, 0.5
        %v3104 = vmul.f32 %v2751, 0.5
        %v3105 = vmul.f32 %v3024, 0.5
        %v3106 = vmul.f32 %v2753, 0.5
        %v3107 = vmul.f32 %v2755, 0.5
        %v3108 = vmul.f32 %v3027, 0.5
        %v3109 = vmul.f32 %v2759, 0.5
        %v3110 = vmul.f32 %v2761, 0.5
        %v3111 = vmul.f32 %v3032, 0.5
        %v3112 = vmul.f32 %v2639, 0.70710677
        %v3113 = vmul.f32 %v2641, 0.70710677
        %v3114 = vmul.f32 %v2936, 0.70710677
        %v3115 = vmul.f32 %v2643, 0.70710677
        %v3116 = vmul.f32 %v2645, 0.70710677
        %v3117 = vmul.f32 %v2939, 0.70710677
        %v3118 = vmul.f32 %v2649, 0.70710677
        %v3119 = vmul.f32 %v2651, 0.70710677
        %v3120 = vmul.f32 %v2944, 0.70710677
        %v3121 = vmul.f32 %v2653, 0.70710677
        %v3122 = vmul.f32 %v2655, 0.70710677
        %v3123 = vmul.f32 %v2947, 0.70710677
        %v3124 = vmul.f32 %v2659, 0.70710677
        %v3125 = vmul.f32 %v2661, 0.70710677
        %v3126 = vmul.f32 %v2952, 0.70710677
        %v3127 = vmul.f32 %v2663, 0.70710677
        %v3128 = vmul.f32 %v2665, 0.70710677
        %v3129 = vmul.f32 %v2955, 0.70710677
        %v3130 = vmul.f32 %v2669, 0.70710677
        %v3131 = vmul.f32 %v2671, 0.70710677
        %v3132 = vmul.f32 %v2960, 0.70710677
        %v3133 = vmul.f32 %v2673, 0.70710677
        %v3134 = vmul.f32 %v2675, 0.70710677
        %v3135 = vmul.f32 %v2963, 0.70710677
        %v3136 = vmul.f32 %v2679, 0.70710677
        %v3137 = vmul.f32 %v2681, 0.70710677
        %v3138 = vmul.f32 %v2968, 0.70710677
        %v3139 = vmul.f32 %v2683, 0.70710677
        %v3140 = vmul.f32 %v2685, 0.70710677
        %v3141 = vmul.f32 %v2971, 0.70710677
        %v3142 = vmul.f32 %v2689, 0.70710677
        %v3143 = vmul.f32 %v2691, 0.70710677
        %v3144 = vmul.f32 %v2976, 0.70710677
        %v3145 = vmul.f32 %v2693, 0.70710677
        %v3146 = vmul.f32 %v2695, 0.70710677
        %v3147 = vmul.f32 %v2979, 0.70710677
        %v3148 = vmul.f32 %v2699, 0.70710677
        %v3149 = vmul.f32 %v2701, 0.70710677
        %v3150 = vmul.f32 %v2984, 0.70710677
        %v3151 = vmul.f32 %v2703, 0.70710677
        %v3152 = vmul.f32 %v2705, 0.70710677
        %v3153 = vmul.f32 %v2987, 0.70710677
        %v3154 = vmul.f32 %v2709, 0.70710677
        %v3155 = vmul.f32 %v2711, 0.70710677
        %v3156 = vmul.f32 %v2992, 0.70710677
        %v3157 = vmul.f32 %v2713, 0.70710677
        %v3158 = vmul.f32 %v2715, 0.70710677
        %v3159 = vmul.f32 %v2995, 0.70710677
        %v3160 = vmul.f32 %v2719, 0.70710677
        %v3161 = vmul.f32 %v2721, 0.70710677
        %v3162 = vmul.f32 %v3000, 0.70710677
        %v3163 = vmul.f32 %v2723, 0.70710677
        %v3164 = vmul.f32 %v2725, 0.70710677
        %v3165 = vmul.f32 %v3003, 0.70710677
        %v3166 = vmul.f32 %v2729, 0.70710677
        %v3167 = vmul.f32 %v2731, 0.70710677
        %v3168 = vmul.f32 %v3008, 0.70710677
        %v3169 = vmul.f32 %v2733, 0.70710677
        %v3170 = vmul.f32 %v2735, 0.70710677
        %v3171 = vmul.f32 %v3011, 0.70710677
        %v3172 = vmul.f32 %v2739, 0.70710677
        %v3173 = vmul.f32 %v2741, 0.70710677
        %v3174 = vmul.f32 %v3016, 0.70710677
        %v3175 = vmul.f32 %v2743, 0.70710677
        %v3176 = vmul.f32 %v2745, 0.70710677
        %v3177 = vmul.f32 %v3019, 0.70710677
        %v3178 = vmul.f32 %v2749, 0.70710677
        %v3179 = vmul.f32 %v2751, 0.70710677
        %v3180 = vmul.f32 %v3024, 0.70710677
        %v3181 = vmul.f32 %v2753, 0.70710677
        %v3182 = vmul.f32 %v2755, 0.70710677
        %v3183 = vmul.f32 %v3027, 0.70710677
        %v3184 = vmul.f32 %v2759, 0.70710677
        %v3185 = vmul.f32 %v2761, 0.70710677
        %v3186 = vmul.f32 %v3032, 0.70710677
        %v3187 = verf.f32.pop %v3112
        %v3188 = verf.f32.pop %v3113
        %v3189 = verf.f32.pop %v3114
        %v3190 = verf.f32.pop %v3115
        %v3191 = verf.f32.pop %v3116
        %v3192 = verf.f32.pop %v3117
        %v3193 = verf.f32.pop %v3118
        %v3194 = verf.f32.pop %v3119
        %v3195 = verf.f32.pop %v3120
        %v3196 = verf.f32.pop %v3121
        %v3197 = verf.f32.pop %v3122
        %v3198 = verf.f32.pop %v3123
        %v3199 = verf.f32.pop %v3124
        %v3200 = verf.f32.pop %v3125
        %v3201 = verf.f32.pop %v3126
        %v3202 = verf.f32.pop %v3127
        %v3203 = verf.f32.pop %v3128
        %v3204 = verf.f32.pop %v3129
        %v3205 = verf.f32.pop %v3130
        %v3206 = verf.f32.pop %v3131
        %v3207 = verf.f32.pop %v3132
        %v3208 = verf.f32.pop %v3133
        %v3209 = verf.f32.pop %v3134
        %v3210 = verf.f32.pop %v3135
        %v3211 = verf.f32.pop %v3136
        %v3212 = verf.f32.pop %v3137
        %v3213 = verf.f32.pop %v3138
        %v3214 = verf.f32.pop %v3139
        %v3215 = verf.f32.pop %v3140
        %v3216 = verf.f32.pop %v3141
        %v3217 = verf.f32.pop %v3142
        %v3218 = verf.f32.pop %v3143
        %v3219 = verf.f32.pop %v3144
        %v3220 = verf.f32.pop %v3145
        %v3221 = verf.f32.pop %v3146
        %v3222 = verf.f32.pop %v3147
        %v3223 = verf.f32.pop %v3148
        %v3224 = verf.f32.pop %v3149
        %v3225 = verf.f32.pop %v3150
        %v3226 = verf.f32.pop %v3151
        %v3227 = verf.f32.pop %v3152
        %v3228 = verf.f32.pop %v3153
        %v3229 = verf.f32.pop %v3154
        %v3230 = verf.f32.pop %v3155
        %v3231 = verf.f32.pop %v3156
        %v3232 = verf.f32.pop %v3157
        %v3233 = verf.f32.pop %v3158
        %v3234 = verf.f32.pop %v3159
        %v3235 = verf.f32.pop %v3160
        %v3236 = verf.f32.pop %v3161
        %v3237 = verf.f32.pop %v3162
        %v3238 = verf.f32.pop %v3163
        %v3239 = verf.f32.pop %v3164
        %v3240 = verf.f32.pop %v3165
        %v3241 = verf.f32.pop %v3166
        %v3242 = verf.f32.pop %v3167
        %v3243 = verf.f32.pop %v3168
        %v3244 = verf.f32.pop %v3169
        %v3245 = verf.f32.pop %v3170
        %v3246 = verf.f32.pop %v3171
        %v3247 = verf.f32.pop %v3172
        %v3248 = verf.f32.pop %v3173
        %v3249 = verf.f32.pop %v3174
        %v3250 = verf.f32.pop %v3175
        %v3251 = verf.f32.pop %v3176
        %v3252 = verf.f32.pop %v3177
        %v3253 = verf.f32.pop %v3178
        %v3254 = verf.f32.pop %v3179
        %v3255 = verf.f32.pop %v3180
        %v3256 = verf.f32.pop %v3181
        %v3257 = verf.f32.pop %v3182
        %v3258 = verf.f32.pop %v3183
        %v3259 = verf.f32.pop %v3184
        %v3260 = verf.f32.pop %v3185
        %v3261 = verf.f32.pop %v3186
        %v3262 = vadd.f32 %v3187, 1.0
        %v3263 = vadd.f32 %v3188, 1.0
        %v3264 = vadd.f32 %v3189, 1.0
        %v3265 = vadd.f32 %v3190, 1.0
        %v3266 = vadd.f32 %v3191, 1.0
        %v3267 = vadd.f32 %v3192, 1.0
        %v3268 = vadd.f32 %v3193, 1.0
        %v3269 = vadd.f32 %v3194, 1.0
        %v3270 = vadd.f32 %v3195, 1.0
        %v3271 = vadd.f32 %v3196, 1.0
        %v3272 = vadd.f32 %v3197, 1.0
        %v3273 = vadd.f32 %v3198, 1.0
        %v3274 = vadd.f32 %v3199, 1.0
        %v3275 = vadd.f32 %v3200, 1.0
        %v3276 = vadd.f32 %v3201, 1.0
        %v3277 = vadd.f32 %v3202, 1.0
        %v3278 = vadd.f32 %v3203, 1.0
        %v3279 = vadd.f32 %v3204, 1.0
        %v3280 = vadd.f32 %v3205, 1.0
        %v3281 = vadd.f32 %v3206, 1.0
        %v3282 = vadd.f32 %v3207, 1.0
        %v3283 = vadd.f32 %v3208, 1.0
        %v3284 = vadd.f32 %v3209, 1.0
        %v3285 = vadd.f32 %v3210, 1.0
        %v3286 = vadd.f32 %v3211, 1.0
        %v3287 = vadd.f32 %v3212, 1.0
        %v3288 = vadd.f32 %v3213, 1.0
        %v3289 = vadd.f32 %v3214, 1.0
        %v3290 = vadd.f32 %v3215, 1.0
        %v3291 = vadd.f32 %v3216, 1.0
        %v3292 = vadd.f32 %v3217, 1.0
        %v3293 = vadd.f32 %v3218, 1.0
        %v3294 = vadd.f32 %v3219, 1.0
        %v3295 = vadd.f32 %v3220, 1.0
        %v3296 = vadd.f32 %v3221, 1.0
        %v3297 = vadd.f32 %v3222, 1.0
        %v3298 = vadd.f32 %v3223, 1.0
        %v3299 = vadd.f32 %v3224, 1.0
        %v3300 = vadd.f32 %v3225, 1.0
        %v3301 = vadd.f32 %v3226, 1.0
        %v3302 = vadd.f32 %v3227, 1.0
        %v3303 = vadd.f32 %v3228, 1.0
        %v3304 = vadd.f32 %v3229, 1.0
        %v3305 = vadd.f32 %v3230, 1.0
        %v3306 = vadd.f32 %v3231, 1.0
        %v3307 = vadd.f32 %v3232, 1.0
        %v3308 = vadd.f32 %v3233, 1.0
        %v3309 = vadd.f32 %v3234, 1.0
        %v3310 = vadd.f32 %v3235, 1.0
        %v3311 = vadd.f32 %v3236, 1.0
        %v3312 = vadd.f32 %v3237, 1.0
        %v3313 = vadd.f32 %v3238, 1.0
        %v3314 = vadd.f32 %v3239, 1.0
        %v3315 = vadd.f32 %v3240, 1.0
        %v3316 = vadd.f32 %v3241, 1.0
        %v3317 = vadd.f32 %v3242, 1.0
        %v3318 = vadd.f32 %v3243, 1.0
        %v3319 = vadd.f32 %v3244, 1.0
        %v3320 = vadd.f32 %v3245, 1.0
        %v3321 = vadd.f32 %v3246, 1.0
        %v3322 = vadd.f32 %v3247, 1.0
        %v3323 = vadd.f32 %v3248, 1.0
        %v3324 = vadd.f32 %v3249, 1.0
        %v3325 = vadd.f32 %v3250, 1.0
        %v3326 = vadd.f32 %v3251, 1.0
        %v3327 = vadd.f32 %v3252, 1.0
        %v3328 = vadd.f32 %v3253, 1.0
        %v3329 = vadd.f32 %v3254, 1.0
        %v3330 = vadd.f32 %v3255, 1.0
        %v3331 = vadd.f32 %v3256, 1.0
        %v3332 = vadd.f32 %v3257, 1.0
        %v3333 = vadd.f32 %v3258, 1.0
        %v3334 = vadd.f32 %v3259, 1.0
        %v3335 = vadd.f32 %v3260, 1.0
        %v3336 = vadd.f32 %v3261, 1.0
        %v3337 = vmul.f32 %v3037, %v3262
        %v3338 = vmul.f32 %v3038, %v3263
        %v3339 = vmul.f32 %v3039, %v3264
        %v3340 = vmul.f32 %v3040, %v3265
        %v3341 = vmul.f32 %v3041, %v3266
        %v3342 = vmul.f32 %v3042, %v3267
        %v3343 = vmul.f32 %v3043, %v3268
        %v3344 = vmul.f32 %v3044, %v3269
        %v3345 = vmul.f32 %v3045, %v3270
        %v3346 = vmul.f32 %v3046, %v3271
        %v3347 = vmul.f32 %v3047, %v3272
        %v3348 = vmul.f32 %v3048, %v3273
        %v3349 = vmul.f32 %v3049, %v3274
        %v3350 = vmul.f32 %v3050, %v3275
        %v3351 = vmul.f32 %v3051, %v3276
        %v3352 = vmul.f32 %v3052, %v3277
        %v3353 = vmul.f32 %v3053, %v3278
        %v3354 = vmul.f32 %v3054, %v3279
        %v3355 = vmul.f32 %v3055, %v3280
        %v3356 = vmul.f32 %v3056, %v3281
        %v3357 = vmul.f32 %v3057, %v3282
        %v3358 = vmul.f32 %v3058, %v3283
        %v3359 = vmul.f32 %v3059, %v3284
        %v3360 = vmul.f32 %v3060, %v3285
        %v3361 = vmul.f32 %v3061, %v3286
        %v3362 = vmul.f32 %v3062, %v3287
        %v3363 = vmul.f32 %v3063, %v3288
        %v3364 = vmul.f32 %v3064, %v3289
        %v3365 = vmul.f32 %v3065, %v3290
        %v3366 = vmul.f32 %v3066, %v3291
        %v3367 = vmul.f32 %v3067, %v3292
        %v3368 = vmul.f32 %v3068, %v3293
        %v3369 = vmul.f32 %v3069, %v3294
        %v3370 = vmul.f32 %v3070, %v3295
        %v3371 = vmul.f32 %v3071, %v3296
        %v3372 = vmul.f32 %v3072, %v3297
        %v3373 = vmul.f32 %v3073, %v3298
        %v3374 = vmul.f32 %v3074, %v3299
        %v3375 = vmul.f32 %v3075, %v3300
        %v3376 = vmul.f32 %v3076, %v3301
        %v3377 = vmul.f32 %v3077, %v3302
        %v3378 = vmul.f32 %v3078, %v3303
        %v3379 = vmul.f32 %v3079, %v3304
        %v3380 = vmul.f32 %v3080, %v3305
        %v3381 = vmul.f32 %v3081, %v3306
        %v3382 = vmul.f32 %v3082, %v3307
        %v3383 = vmul.f32 %v3083, %v3308
        %v3384 = vmul.f32 %v3084, %v3309
        %v3385 = vmul.f32 %v3085, %v3310
        %v3386 = vmul.f32 %v3086, %v3311
        %v3387 = vmul.f32 %v3087, %v3312
        %v3388 = vmul.f32 %v3088, %v3313
        %v3389 = vmul.f32 %v3089, %v3314
        %v3390 = vmul.f32 %v3090, %v3315
        %v3391 = vmul.f32 %v3091, %v3316
        %v3392 = vmul.f32 %v3092, %v3317
        %v3393 = vmul.f32 %v3093, %v3318
        %v3394 = vmul.f32 %v3094, %v3319
        %v3395 = vmul.f32 %v3095, %v3320
        %v3396 = vmul.f32 %v3096, %v3321
        %v3397 = vmul.f32 %v3097, %v3322
        %v3398 = vmul.f32 %v3098, %v3323
        %v3399 = vmul.f32 %v3099, %v3324
        %v3400 = vmul.f32 %v3100, %v3325
        %v3401 = vmul.f32 %v3101, %v3326
        %v3402 = vmul.f32 %v3102, %v3327
        %v3403 = vmul.f32 %v3103, %v3328
        %v3404 = vmul.f32 %v3104, %v3329
        %v3405 = vmul.f32 %v3105, %v3330
        %v3406 = vmul.f32 %v3106, %v3331
        %v3407 = vmul.f32 %v3107, %v3332
        %v3408 = vmul.f32 %v3108, %v3333
        %v3409 = vmul.f32 %v3109, %v3334
        %v3410 = vmul.f32 %v3110, %v3335
        %v3411 = vmul.f32 %v3111, %v3336
        %3412 = vst [vmem:[%s384] sm:$0xff] %v3337
        %3413 = vst [vmem:[%s384 + $0x8] sm:$0xff] %v3338
        %3414 = vst [vmem:[%s384 + $0x10] sm:$0xff] %v3339
        %3415 = vst [vmem:[%s384 + $0x18] sm:$0xff] %v3340
        %3416 = vst [vmem:[%s384 + $0x20] sm:$0xff] %v3341
        %3417 = vst [vmem:[%s384 + $0x28] sm:$0xff] %v3342
        %3418 = vst [vmem:[%s384 + $0x30] sm:$0xff] %v3343
        %3419 = vst [vmem:[%s384 + $0x38] sm:$0xff] %v3344
        %3420 = vst [vmem:[%s384 + $0x40] sm:$0xff] %v3345
        %3421 = vst [vmem:[%s384 + $0x48] sm:$0xff] %v3346
        %3422 = vst [vmem:[%s384 + $0x50] sm:$0xff] %v3347
        %3423 = vst [vmem:[%s384 + $0x58] sm:$0xff] %v3348
        %3424 = vst [vmem:[%s384 + $0x60] sm:$0xff] %v3349
        %3425 = vst [vmem:[%s384 + $0x68] sm:$0xff] %v3350
        %3426 = vst [vmem:[%s384 + $0x70] sm:$0xff] %v3351
        %3427 = vst [vmem:[%s384 + $0x78] sm:$0xff] %v3352
        %3428 = vst [vmem:[%s384 + $0x80] sm:$0xff] %v3353
        %3429 = vst [vmem:[%s384 + $0x88] sm:$0xff] %v3354
        %3430 = vst [vmem:[%s384 + $0x90] sm:$0xff] %v3355
        %3431 = vst [vmem:[%s384 + $0x98] sm:$0xff] %v3356
        %3432 = vst [vmem:[%s384 + $0xa0] sm:$0xff] %v3357
        %3433 = vst [vmem:[%s384 + $0xa8] sm:$0xff] %v3358
        %3434 = vst [vmem:[%s384 + $0xb0] sm:$0xff] %v3359
        %3435 = vst [vmem:[%s384 + $0xb8] sm:$0xff] %v3360
        %3436 = vst [vmem:[%s384 + $0xc0] sm:$0xff] %v3361
        %3437 = vst [vmem:[%s384 + $0xc8] sm:$0xff] %v3362
        %3438 = vst [vmem:[%s384 + $0xd0] sm:$0xff] %v3363
        %3439 = vst [vmem:[%s384 + $0xd8] sm:$0xff] %v3364
        %3440 = vst [vmem:[%s384 + $0xe0] sm:$0xff] %v3365
        %3441 = vst [vmem:[%s384 + $0xe8] sm:$0xff] %v3366
        %3442 = vst [vmem:[%s384 + $0xf0] sm:$0xff] %v3367
        %3443 = vst [vmem:[%s384 + $0xf8] sm:$0xff] %v3368
        %3444 = vst [vmem:[%s384 + $0x100] sm:$0xff] %v3369
        %3445 = vst [vmem:[%s384 + $0x108] sm:$0xff] %v3370
        %3446 = vst [vmem:[%s384 + $0x110] sm:$0xff] %v3371
        %3447 = vst [vmem:[%s384 + $0x118] sm:$0xff] %v3372
        %3448 = vst [vmem:[%s384 + $0x120] sm:$0xff] %v3373
        %3449 = vst [vmem:[%s384 + $0x128] sm:$0xff] %v3374
        %3450 = vst [vmem:[%s384 + $0x130] sm:$0xff] %v3375
        %3451 = vst [vmem:[%s384 + $0x138] sm:$0xff] %v3376
        %3452 = vst [vmem:[%s384 + $0x140] sm:$0xff] %v3377
        %3453 = vst [vmem:[%s384 + $0x148] sm:$0xff] %v3378
        %3454 = vst [vmem:[%s384 + $0x150] sm:$0xff] %v3379
        %3455 = vst [vmem:[%s384 + $0x158] sm:$0xff] %v3380
        %3456 = vst [vmem:[%s384 + $0x160] sm:$0xff] %v3381
        %3457 = vst [vmem:[%s384 + $0x168] sm:$0xff] %v3382
        %3458 = vst [vmem:[%s384 + $0x170] sm:$0xff] %v3383
        %3459 = vst [vmem:[%s384 + $0x178] sm:$0xff] %v3384
        %3460 = vst [vmem:[%s384 + $0x180] sm:$0xff] %v3385
        %3461 = vst [vmem:[%s384 + $0x188] sm:$0xff] %v3386
        %3462 = vst [vmem:[%s384 + $0x190] sm:$0xff] %v3387
        %3463 = vst [vmem:[%s384 + $0x198] sm:$0xff] %v3388
        %3464 = vst [vmem:[%s384 + $0x1a0] sm:$0xff] %v3389
        %3465 = vst [vmem:[%s384 + $0x1a8] sm:$0xff] %v3390
        %3466 = vst [vmem:[%s384 + $0x1b0] sm:$0xff] %v3391
        %3467 = vst [vmem:[%s384 + $0x1b8] sm:$0xff] %v3392
        %3468 = vst [vmem:[%s384 + $0x1c0] sm:$0xff] %v3393
        %3469 = vst [vmem:[%s384 + $0x1c8] sm:$0xff] %v3394
        %3470 = vst [vmem:[%s384 + $0x1d0] sm:$0xff] %v3395
        %3471 = vst [vmem:[%s384 + $0x1d8] sm:$0xff] %v3396
        %3472 = vst [vmem:[%s384 + $0x1e0] sm:$0xff] %v3397
        %3473 = vst [vmem:[%s384 + $0x1e8] sm:$0xff] %v3398
        %3474 = vst [vmem:[%s384 + $0x1f0] sm:$0xff] %v3399
        %3475 = vst [vmem:[%s384 + $0x1f8] sm:$0xff] %v3400
        %3476 = vst [vmem:[%s384 + $0x200] sm:$0xff] %v3401
        %3477 = vst [vmem:[%s384 + $0x208] sm:$0xff] %v3402
        %3478 = vst [vmem:[%s384 + $0x210] sm:$0xff] %v3403
        %3479 = vst [vmem:[%s384 + $0x218] sm:$0xff] %v3404
        %3480 = vst [vmem:[%s384 + $0x220] sm:$0xff] %v3405
        %3481 = vst [vmem:[%s384 + $0x228] sm:$0xff] %v3406
        %3482 = vst [vmem:[%s384 + $0x230] sm:$0xff] %v3407
        %3483 = vst [vmem:[%s384 + $0x238] sm:$0xff] %v3408
        %3484 = vst [vmem:[%s384 + $0x240] sm:$0xf] %v3409
        %3485 = vst [vmem:[%s384 + $0x248] sm:$0xf] %v3410
        %3486 = vst [vmem:[%s384 + $0x250] sm:$0xf] %v3411
        %s3487 = sand.u32 %s191, 1
        %s3488 = scalar_lea.sflag [#allocation5], %s3487
        %s3489 = sand.u32 %s191, 1
        %s3490 = smul.addr %s3489, 600
        %s3491 = scalar_lea.vmem [#allocation13], %s3490
        // Predicated region
        $region73: #{tpu_custom_call.1} parent=43 // pred_check
          %p3492 = pneg %p201
        $region74: #{tpu_custom_call.1} parent=43 // pred_check_branch
          %3494 = sbr.rel (%p3492) target = $region76
        $region75: #{tpu_custom_call.1} parent=43 // pred_region
          %s3495 = smul.u32 %s27, 4
          %s3496 = sadd.s32 %s3495, %s28
          %s3497 = smul.u32 3, %s3496
          %s3499 = ssub.s32 9600, 9600
          %3500 = vsyncadd %s3488, %s3499
          %s3501 = smul.addr %s3497, 128
          %s3502 = scalar_lea.hbm %s6, %s3501
          %s3503 = sshll.u32 %s3491, 4
          %s3504 = int_to_ptr.vmem [resolvable:$true] %s3503
          %3509 = dma.vmem_to_hbm [thread:$0]  %s3504, 9600, %s3502, %s3488, 384, 1536, 24
        $region76: #{tpu_custom_call.1} parent=43 // pred_fallthru
          _
      $region44: #{tpu_custom_call.1} parent=5 // pred_fallthru
        _
      %p3510 = scmp.le.s32.totalorder 2, %s18
      // Predicated region
      $region77: #{tpu_custom_call.1} parent=5 // pred_check
        %p3511 = pneg %p3510
      $region78: #{tpu_custom_call.1} parent=5 // pred_check_branch
        %3513 = sbr.rel (%p3511) target = $region80
      $region79: #{tpu_custom_call.1} parent=5 // pred_region
        %s3514 = ssub.s32 %s18, 2
        // Predicated region
        $region81: #{tpu_custom_call.1} parent=79 // pred_check
          %p3515 = pneg %p207
        $region82: #{tpu_custom_call.1} parent=79 // pred_check_branch
          %3517 = sbr.rel (%p3515) target = $region84
        $region83: #{tpu_custom_call.1} parent=79 // pred_region
          %s3518 = sand.u32 %s192, 1
          %s3519 = scalar_lea.sflag [#allocation5], %s3518
          %s3520 = sand.u32 %s192, 1
          %s3521 = smul.addr %s3520, 600
          %s3522 = scalar_lea.vmem [#allocation13], %s3521
          %3523 = dma.done %s3519, 9600
        $region84: #{tpu_custom_call.1} parent=79 // pred_fallthru
          _
      $region80: #{tpu_custom_call.1} parent=5 // pred_fallthru
        _
    $region6: #{tpu_custom_call.1} parent=1 // loop_footer
      %s22 = sadd.s32 1, %s18
    $region7: #{tpu_custom_call.1} parent=1 // loop_footer_branch
      %17 = sbr.rel target = $region3
    $region8: #{tpu_custom_call.1} parent=1 // loop_exit
      _
    %3524 = vsyncpa [#allocation4], 1
    %s3525 = scalar_lea.sflag [#allocation4], 1
    %3526 = vsyncpa %s3525, 1
    %3527 = vsyncpa [#allocation7], 1
    %3528 = vsyncpa [#allocation10], 1
    %3529 = vsyncpa [#allocation5], 1
    %s3530 = scalar_lea.sflag [#allocation5], 1
    %3531 = vsyncpa %s3530, 1

</llo_original>
